<compile_context>
chip_gen: v5e
topology: v5e:2x2
jax: 0.10.0
libtpu: 0.0.40
codegen_flags: <defaults>
</compile_context>

<pallas_src>
import jax
import jax.numpy as jnp
from jax.experimental import pallas as pl
from jax.experimental.pallas import tpu as pltpu

LANES = 128          # lane-dense padded channel width for all intermediates
NEG_SLOPE = 0.01
BN_EPS = 1e-5


def _round_up(x, m):
    return (x + m - 1) // m * m


# ---------------------------------------------------------------------------
# Kernel 1: layer-1 conv with taps folded into K (single bf16 matmul) + stats
# ---------------------------------------------------------------------------

def conv1_folded(x_folded, w_folded, *, H, W):
    """x_folded: (N, Mext, Kf) bf16 — layer-1 input with the 9 taps folded into K.
       w_folded: (Kf, Cp)     bf16 — matching folded weights (Cp = 128-padded Cout).

    Returns:
      y_ext (N, Mext, Cp) bf16 : extended conv output, Mext = H*(W+2); the 2
                                 trailing columns per spatial row are junk.
      psum, psq (N, 1, Cp) f32 : per-image channel sum / sum-of-squares over
                                 valid pixels (training-mode BN partials).
    """
    N, Mext, Kf = x_folded.shape
    _, Cp = w_folded.shape
    Wp = W + 2
    assert Mext == H * Wp

    def kernel(x_ref, w_ref, y_ref, s_ref, q_ref):
        acc = jnp.dot(x_ref[0], w_ref[...],
                      preferred_element_type=jnp.float32)           # (Mext, Cp) f32
        # BN stats over valid pixels only; column-sum via MXU (mask row-vectors).
        valid = (jax.lax.broadcasted_iota(jnp.int32, (8, Mext), 1) % Wp < W
                 ).astype(jnp.float32)
        s = jnp.dot(valid, acc, preferred_element_type=jnp.float32)        # (8, Cp)
        q = jnp.dot(valid, acc * acc, preferred_element_type=jnp.float32)  # (8, Cp)
        s_ref[0] = s[0:1, :]
        q_ref[0] = q[0:1, :]
        y_ref[0] = acc.astype(y_ref.dtype)

    return pl.pallas_call(
        kernel,
        out_shape=(
            jax.ShapeDtypeStruct((N, Mext, Cp), jnp.bfloat16),
            jax.ShapeDtypeStruct((N, 1, Cp), jnp.float32),
            jax.ShapeDtypeStruct((N, 1, Cp), jnp.float32),
        ),
        grid_spec=pltpu.PrefetchScalarGridSpec(
            num_scalar_prefetch=0,
            grid=(N,),
            in_specs=[
                pl.BlockSpec((1, Mext, Kf), lambda n: (n, 0, 0)),
                pl.BlockSpec((Kf, Cp), lambda n: (0, 0)),        # resident weights
            ],
            out_specs=[
                pl.BlockSpec((1, Mext, Cp), lambda n: (n, 0, 0)),
                pl.BlockSpec((1, 1, Cp), lambda n: (n, 0, 0)),
                pl.BlockSpec((1, 1, Cp), lambda n: (n, 0, 0)),
            ],
        ),
        compiler_params=pltpu.CompilerParams(
            dimension_semantics=("parallel",)),
    )(x_folded, w_folded)


# ---------------------------------------------------------------------------
# Kernel 2: fused  BN(prev) + LeakyReLU + zero re-pad (VMEM only)  ->  3x3 conv
#           (9 shifted bf16 matmuls, local f32 accumulator)  +  BN stats
# ---------------------------------------------------------------------------

def bn_lrelu_conv3x3(y_prev, scale, shift, w_taps, *, H, W):
    """y_prev : (N, Mext, Cp) bf16  previous conv's extended output
       scale, shift : (1, Cp) f32   previous layer's BN scale / shift
       w_taps : (9, Cp, Cp) bf16    this conv's tap-major weights (kh*3+kw)

    Returns y_ext (N, Mext, Cp) bf16, psum (N,1,Cp) f32, psq (N,1,Cp) f32."""
    N, Mext, Cp = y_prev.shape
    Wp = W + 2
    Hp = H + 2
    assert Mext == H * Wp
    lead = (-(Wp + 1)) % 8             # make the interior store sublane-aligned
    start = lead + Wp + 1
    tail = start + Mext
    Lp = _round_up(lead + Hp * Wp + 2, 8)

    def kernel(y_ref, sc_ref, sh_ref, w_ref, o_ref, s_ref, q_ref, xpad_ref):
        # ---- prologue: BN + LeakyReLU + zero-padded re-layout, VMEM only ----
        xpad_ref[0:start, :] = jnp.zeros((start, Cp), xpad_ref.dtype)     # halo
        xpad_ref[tail:Lp, :] = jnp.zeros((Lp - tail, Cp), xpad_ref.dtype)  # halo+tail
        col = jax.lax.broadcasted_iota(jnp.int32, (Mext, 1), 0) % Wp
        a = y_ref[0].astype(jnp.float32) * sc_ref[...] + sh_ref[...]
        a = jnp.where(a > 0, a, NEG_SLOPE * a)
        a = jnp.where(col < W, a, 0.0)       # junk columns become the zero halo
        xpad_ref[start:tail, :] = a          # one aligned contiguous store

        # ---- 3x3 conv: 9 shifted matmuls into a local f32 accumulator -------
        acc = None
        for kh in range(3):
            for kw in range(3):
                off = lead + kh * Wp + kw
                lhs = xpad_ref[off:off + Mext, :].astype(jnp.bfloat16)
                d = jnp.dot(lhs, w_ref[kh * 3 + kw],
                            preferred_element_type=jnp.float32)
                acc = d if acc is None else acc + d

        # ---- BN stats of this conv (valid pixels only) via MXU --------------
        valid = (jax.lax.broadcasted_iota(jnp.int32, (8, Mext), 1) % Wp < W
                 ).astype(jnp.float32)
        s = jnp.dot(valid, acc, preferred_element_type=jnp.float32)
        q = jnp.dot(valid, acc * acc, preferred_element_type=jnp.float32)
        s_ref[0] = s[0:1, :]
        q_ref[0] = q[0:1, :]
        o_ref[0] = acc.astype(o_ref.dtype)   # single output store

    return pl.pallas_call(
        kernel,
        out_shape=(
            jax.ShapeDtypeStruct((N, Mext, Cp), jnp.bfloat16),
            jax.ShapeDtypeStruct((N, 1, Cp), jnp.float32),
            jax.ShapeDtypeStruct((N, 1, Cp), jnp.float32),
        ),
        grid_spec=pltpu.PrefetchScalarGridSpec(
            num_scalar_prefetch=0,
            grid=(N,),
            in_specs=[
                pl.BlockSpec((1, Mext, Cp), lambda n: (n, 0, 0)),
                pl.BlockSpec((1, Cp), lambda n: (0, 0)),
                pl.BlockSpec((1, Cp), lambda n: (0, 0)),
                pl.BlockSpec((9, Cp, Cp), lambda n: (0, 0, 0)),   # resident weights
            ],
            out_specs=[
                pl.BlockSpec((1, Mext, Cp), lambda n: (n, 0, 0)),
                pl.BlockSpec((1, 1, Cp), lambda n: (n, 0, 0)),
                pl.BlockSpec((1, 1, Cp), lambda n: (n, 0, 0)),
            ],
            scratch_shapes=[pltpu.VMEM((Lp, Cp), jnp.float32)],
        ),
        compiler_params=pltpu.CompilerParams(
            dimension_semantics=("parallel",)),
    )(y_prev, scale, shift, w_taps)


# ---------------------------------------------------------------------------
# XLA-side glue (cheap: O(channels) math or tiny layout ops)
# ---------------------------------------------------------------------------

def _prep_layer1_folded(x_nchw, cin_p):
    """im2col the (tiny) layer-1 input: fold 3x3 taps into K -> (N, Mext, 9*cin_p) bf16."""
    N, C, H, W = x_nchw.shape
    Hp, Wp = H + 2, W + 2
    Mext = H * Wp
    x = jnp.transpose(x_nchw, (0, 2, 3, 1)).astype(jnp.float32)      # NHWC
    x = jnp.pad(x, ((0, 0), (1, 1), (1, 1), (0, cin_p - C)))
    x = x.reshape(N, Hp * Wp, cin_p)
    x = jnp.pad(x, ((0, 0), (0, 2), (0, 0)))    # 2-row tail so all shifts are in range
    taps = [x[:, kh * Wp + kw: kh * Wp + kw + Mext, :]
            for kh in range(3) for kw in range(3)]
    return jnp.concatenate(taps, axis=-1).astype(jnp.bfloat16)


def _prep_w1_folded(w, cin_p, cout_p):
    Cout, Cin, KH, KW = w.shape
    wt = jnp.transpose(w, (2, 3, 1, 0)).reshape(KH * KW, Cin, Cout)
    wt = jnp.pad(wt.astype(jnp.float32),
                 ((0, 0), (0, cin_p - Cin), (0, cout_p - Cout)))
    return wt.reshape(KH * KW * cin_p, cout_p).astype(jnp.bfloat16)


def _prep_w_taps(w, cin_p, cout_p):
    Cout, Cin, KH, KW = w.shape
    wt = jnp.transpose(w, (2, 3, 1, 0)).reshape(KH * KW, Cin, Cout)
    wt = jnp.pad(wt.astype(jnp.float32),
                 ((0, 0), (0, cin_p - Cin), (0, cout_p - Cout)))
    return wt.astype(jnp.bfloat16)


def _bn_scale_shift(psum, psq, gamma, beta, count, cout_p, eps=BN_EPS):
    s = jnp.sum(psum[:, 0, :], axis=0)                # (Cp,)
    q = jnp.sum(psq[:, 0, :], axis=0)
    mean = s / count
    var = q / count - mean * mean                     # biased (train-mode BN)
    inv_std = jax.lax.rsqrt(var + eps)
    g = jnp.pad(gamma.astype(jnp.float32), (0, cout_p - gamma.shape[0]))
    b = jnp.pad(beta.astype(jnp.float32), (0, cout_p - beta.shape[0]))
    scale = g * inv_std
    shift = b - mean * scale
    return scale.reshape(1, cout_p), shift.reshape(1, cout_p)


def conv_block_forward(x_nchw, params):
    """Matches PyTorch conv_block.forward (training-mode BatchNorm)."""
    N, Cin, H, W = x_nchw.shape
    Cout = params["w1"].shape[0]
    cin_p = _round_up(max(Cin, 8), 8)
    cout_p = LANES
    Wp = W + 2
    count = float(N * H * W)

    # --- layer 1 conv (folded K) + stats ---
    # NOTE: a conv bias applied before training-mode BatchNorm cancels exactly
    # (the batch mean absorbs it), so params["b1"]/["b2"] are not applied.
    x1 = _prep_layer1_folded(x_nchw, cin_p)
    w1f = _prep_w1_folded(params["w1"], cin_p, cout_p)
    y1, s1, q1 = conv1_folded(x1, w1f, H=H, W=W)
    sc1, sh1 = _bn_scale_shift(s1, q1, params["gamma1"], params["beta1"],
                               count, cout_p)

    # --- layer 2: BN1+LeakyReLU+re-pad fused into the conv prologue ---
    w2 = _prep_w_taps(params["w2"], cout_p, cout_p)
    y2, s2, q2 = bn_lrelu_conv3x3(y1, sc1, sh1, w2, H=H, W=W)
    sc2, sh2 = _bn_scale_shift(s2, q2, params["gamma2"], params["beta2"],
                               count, cout_p)

    # --- final BN2 + LeakyReLU + layout extraction (tiny; left to XLA) ---
    out = y2.astype(jnp.float32) * sc2[:, None, :] + sh2[:, None, :]
    out = jnp.where(out > 0, out, NEG_SLOPE * out)
    out = out.reshape(N, H, Wp, cout_p)[:, :, :W, :Cout]
    return jnp.transpose(out, (0, 3, 1, 2))                 # -> NCHW


def init_params(key, ch_in, ch_out):
    """PyTorch-like init (uniform +-1/sqrt(fan_in); BN gamma=1, beta=0)."""
    k1, k2, k3, k4 = jax.random.split(key, 4)
    lim1 = 1.0 / jnp.sqrt(float(ch_in * 9))
    lim2 = 1.0 / jnp.sqrt(float(ch_out * 9))
    return {
        "w1": jax.random.uniform(k1, (ch_out, ch_in, 3, 3), jnp.float32, -lim1, lim1),
        "b1": jax.random.uniform(k2, (ch_out,), jnp.float32, -lim1, lim1),
        "gamma1": jnp.ones((ch_out,), jnp.float32),
        "beta1": jnp.zeros((ch_out,), jnp.float32),
        "w2": jax.random.uniform(k3, (ch_out, ch_out, 3, 3), jnp.float32, -lim2, lim2),
        "b2": jax.random.uniform(k4, (ch_out,), jnp.float32, -lim2, lim2),
        "gamma2": jnp.ones((ch_out,), jnp.float32),
        "beta2": jnp.zeros((ch_out,), jnp.float32),
    }


# ---------------------------------------------------------------------------
# Pure-JAX f32 reference (sanity check)
# ---------------------------------------------------------------------------

def _reference(x_nchw, params, eps=BN_EPS):
    def block(x, w, b, g, bt):
        y = jax.lax.conv_general_dilated(
            x, w, window_strides=(1, 1), padding=((1, 1), (1, 1)),
            dimension_numbers=("NCHW", "OIHW", "NCHW")) + b[None, :, None, None]
        mean = jnp.mean(y, axis=(0, 2, 3), keepdims=True)
        var = jnp.mean((y - mean) ** 2, axis=(0, 2, 3), keepdims=True)
        y = (y - mean) / jnp.sqrt(var + eps)
        y = y * g[None, :, None, None] + bt[None, :, None, None]
        return jnp.where(y > 0, y, NEG_SLOPE * y)

    x = block(x_nchw, params["w1"], params["b1"], params["gamma1"], params["beta1"])
    x = block(x, params["w2"], params["b2"], params["gamma2"], params["beta2"])
    return x


if __name__ == "__main__":
    ch_in, ch_out = 4, 8
    N, H, W = 2, 16, 16

    key = jax.random.PRNGKey(0)
    kx, kp = jax.random.split(key)
    x = jax.random.normal(kx, (N, ch_in, H, W), jnp.float32)
    params = init_params(kp, ch_in, ch_out)

    fwd = jax.jit(conv_block_forward)
    out = fwd(x, params)
    out = jax.block_until_ready(out)

    ref = _reference(x, params)
    assert out.shape == (N, ch_out, H, W)
    # bf16 activation/weight storage -> relaxed tolerance vs the f32 reference.
    err = float(jnp.max(jnp.abs(out - ref)))
    assert jnp.allclose(out, ref, atol=5e-2, rtol=5e-2), err

    print("KERNEL_OK")
</pallas_src>

<mosaic_0001>
module attributes {stable_mosaic.version = 11 : i64} {
  func.func @kernel(%arg0: i32, %arg1: memref<1x288x72xbf16, #tpu.memory_space<vmem>>, %arg2: memref<72x128xbf16, #tpu.memory_space<vmem>>, %arg3: memref<1x288x128xbf16, #tpu.memory_space<vmem>>, %arg4: memref<1x1x128xf32, #tpu.memory_space<vmem>>, %arg5: memref<1x1x128xf32, #tpu.memory_space<vmem>>) attributes {dimension_semantics = [#tpu.dimension_semantics<parallel>], iteration_bounds = array<i64: 2>, scalar_prefetch = 0 : i64, scratch_operands = 0 : i64, tpu.core_type = #tpu.core_type<tc>, window_params = [{transform_indices = @transform_0, window_bounds = array<i64: 1, 288, 72>}, {pipeline_mode = #tpu.pipeline_mode<synchronous>, transform_indices = @transform_1, window_bounds = array<i64: 72, 128>}, {transform_indices = @transform_2, window_bounds = array<i64: 1, 288, 128>}, {transform_indices = @transform_3, window_bounds = array<i64: 1, 1, 128>}, {transform_indices = @transform_4, window_bounds = array<i64: 1, 1, 128>}]} {
    %c0 = arith.constant 0 : index
    %c0_0 = arith.constant 0 : index
    %c0_1 = arith.constant 0 : index
    %0 = vector.load %arg1[%c0, %c0_0, %c0_1] : memref<1x288x72xbf16, #tpu.memory_space<vmem>>, vector<1x288x72xbf16>
    %1 = vector.shape_cast %0 : vector<1x288x72xbf16> to vector<288x72xbf16>
    %c0_2 = arith.constant 0 : index
    %c0_3 = arith.constant 0 : index
    %2 = vector.load %arg2[%c0_2, %c0_3] : memref<72x128xbf16, #tpu.memory_space<vmem>>, vector<72x128xbf16>
    %cst = arith.constant dense<0.000000e+00> : vector<288x128xf32>
    %3 = tpu.matmul %1, %2, %cst {dimension_numbers = #tpu.dot_dimension_numbers<[1], [0], [0], [1], [0, 0, 1, 1], [], []>} : vector<288x72xbf16>, vector<72x128xbf16>, vector<288x128xf32> -> vector<288x128xf32>
    %4 = tpu.iota {dimensions = array<i32: 1>} : vector<8x288xi32>
    %c18_i32 = arith.constant 18 : i32
    %c0_i32 = arith.constant 0 : i32
    %5 = arith.cmpi eq, %c18_i32, %c0_i32 : i32
    %c1_i32 = arith.constant 1 : i32
    %6 = arith.select %5, %c1_i32, %c18_i32 : i32
    %7 = vector.broadcast %6 : i32 to vector<8x288xi32>
    %8 = arith.remsi %4, %7 : vector<8x288xi32>
    %c0_i32_4 = arith.constant 0 : i32
    %9 = vector.broadcast %c0_i32_4 : i32 to vector<8x288xi32>
    %10 = arith.cmpi ne, %8, %9 : vector<8x288xi32>
    %c0_i32_5 = arith.constant 0 : i32
    %11 = vector.broadcast %c0_i32_5 : i32 to vector<8x288xi32>
    %12 = arith.cmpi slt, %8, %11 : vector<8x288xi32>
    %c0_i32_6 = arith.constant 0 : i32
    %13 = arith.cmpi slt, %6, %c0_i32_6 : i32
    %14 = vector.broadcast %13 : i1 to vector<8x288xi1>
    %15 = vector.broadcast %14 : vector<8x288xi1> to vector<8x288xi1>
    %16 = arith.xori %12, %15 : vector<8x288xi1>
    %17 = arith.andi %16, %10 : vector<8x288xi1>
    %18 = vector.broadcast %6 : i32 to vector<8x288xi32>
    %19 = arith.addi %8, %18 : vector<8x288xi32>
    %20 = arith.select %17, %19, %8 : vector<8x288xi1>, vector<8x288xi32>
    %c16_i32 = arith.constant 16 : i32
    %21 = vector.broadcast %c16_i32 : i32 to vector<8x288xi32>
    %22 = arith.cmpi slt, %20, %21 : vector<8x288xi32>
    %23 = arith.extui %22 : vector<8x288xi1> to vector<8x288xi32>
    %24 = arith.sitofp %23 : vector<8x288xi32> to vector<8x288xf32>
    %cst_7 = arith.constant dense<0.000000e+00> : vector<8x128xf32>
    %25 = tpu.matmul %24, %3, %cst_7 {dimension_numbers = #tpu.dot_dimension_numbers<[1], [0], [0], [1], [0, 0, 1, 1], [], []>} : vector<8x288xf32>, vector<288x128xf32>, vector<8x128xf32> -> vector<8x128xf32>
    %26 = arith.mulf %3, %3 : vector<288x128xf32>
    %cst_8 = arith.constant dense<0.000000e+00> : vector<8x128xf32>
    %27 = tpu.matmul %24, %26, %cst_8 {dimension_numbers = #tpu.dot_dimension_numbers<[1], [0], [0], [1], [0, 0, 1, 1], [], []>} : vector<8x288xf32>, vector<288x128xf32>, vector<8x128xf32> -> vector<8x128xf32>
    %28 = vector.extract_strided_slice %25 {offsets = [0, 0], sizes = [1, 128], strides = [1, 1]} : vector<8x128xf32> to vector<1x128xf32>
    %c0_9 = arith.constant 0 : index
    %c0_10 = arith.constant 0 : index
    %c0_11 = arith.constant 0 : index
    %29 = vector.load %arg4[%c0_9, %c0_10, %c0_11] : memref<1x1x128xf32, #tpu.memory_space<vmem>>, vector<1x1x128xf32>
    %30 = vector.shape_cast %29 : vector<1x1x128xf32> to vector<1x128xf32>
    %31 = vector.shape_cast %28 : vector<1x128xf32> to vector<1x1x128xf32>
    tpu.vector_store %arg4[%c0_9, %c0_10, %c0_11], %31 {strides = array<i32>} : memref<1x1x128xf32, #tpu.memory_space<vmem>>, vector<1x1x128xf32>,
    %32 = vector.extract_strided_slice %27 {offsets = [0, 0], sizes = [1, 128], strides = [1, 1]} : vector<8x128xf32> to vector<1x128xf32>
    %c0_12 = arith.constant 0 : index
    %c0_13 = arith.constant 0 : index
    %c0_14 = arith.constant 0 : index
    %33 = vector.load %arg5[%c0_12, %c0_13, %c0_14] : memref<1x1x128xf32, #tpu.memory_space<vmem>>, vector<1x1x128xf32>
    %34 = vector.shape_cast %33 : vector<1x1x128xf32> to vector<1x128xf32>
    %35 = vector.shape_cast %32 : vector<1x128xf32> to vector<1x1x128xf32>
    tpu.vector_store %arg5[%c0_12, %c0_13, %c0_14], %35 {strides = array<i32>} : memref<1x1x128xf32, #tpu.memory_space<vmem>>, vector<1x1x128xf32>,
    %36 = arith.truncf %3 : vector<288x128xf32> to vector<288x128xbf16>
    %c0_15 = arith.constant 0 : index
    %c0_16 = arith.constant 0 : index
    %c0_17 = arith.constant 0 : index
    %37 = vector.load %arg3[%c0_15, %c0_16, %c0_17] : memref<1x288x128xbf16, #tpu.memory_space<vmem>>, vector<1x288x128xbf16>
    %38 = vector.shape_cast %37 : vector<1x288x128xbf16> to vector<288x128xbf16>
    %39 = vector.shape_cast %36 : vector<288x128xbf16> to vector<1x288x128xbf16>
    tpu.vector_store %arg3[%c0_15, %c0_16, %c0_17], %39 {strides = array<i32>} : memref<1x288x128xbf16, #tpu.memory_space<vmem>>, vector<1x288x128xbf16>,
    return
  }
  func.func @transform_0(%arg0: i32) -> (i32, i32, i32) {
    %c0_i32 = arith.constant 0 : i32
    %c0_i32_0 = arith.constant 0 : i32
    %c0_i32_1 = arith.constant 0 : i32
    return %arg0, %c0_i32, %c0_i32_0 : i32, i32, i32
  }
  func.func @transform_1(%arg0: i32) -> (i32, i32) {
    %c0_i32 = arith.constant 0 : i32
    %c0_i32_0 = arith.constant 0 : i32
    %c0_i32_1 = arith.constant 0 : i32
    return %c0_i32, %c0_i32_0 : i32, i32
  }
  func.func @transform_2(%arg0: i32) -> (i32, i32, i32) {
    %c0_i32 = arith.constant 0 : i32
    %c0_i32_0 = arith.constant 0 : i32
    %c0_i32_1 = arith.constant 0 : i32
    return %arg0, %c0_i32, %c0_i32_0 : i32, i32, i32
  }
  func.func @transform_3(%arg0: i32) -> (i32, i32, i32) {
    %c0_i32 = arith.constant 0 : i32
    %c0_i32_0 = arith.constant 0 : i32
    %c0_i32_1 = arith.constant 0 : i32
    return %arg0, %c0_i32, %c0_i32_0 : i32, i32, i32
  }
  func.func @transform_4(%arg0: i32) -> (i32, i32, i32) {
    %c0_i32 = arith.constant 0 : i32
    %c0_i32_0 = arith.constant 0 : i32
    %c0_i32_1 = arith.constant 0 : i32
    return %arg0, %c0_i32, %c0_i32_0 : i32, i32, i32
  }
}

module attributes {stable_mosaic.version = 11 : i64} {
  func.func @kernel(%arg0: i32, %arg1: memref<1x288x128xbf16, #tpu.memory_space<vmem>>, %arg2: memref<1x128xf32, #tpu.memory_space<vmem>>, %arg3: memref<1x128xf32, #tpu.memory_space<vmem>>, %arg4: memref<9x128x128xbf16, #tpu.memory_space<vmem>>, %arg5: memref<1x288x128xbf16, #tpu.memory_space<vmem>>, %arg6: memref<1x1x128xf32, #tpu.memory_space<vmem>>, %arg7: memref<1x1x128xf32, #tpu.memory_space<vmem>>, %arg8: memref<336x128xf32, #tpu.memory_space<vmem>>) attributes {dimension_semantics = [#tpu.dimension_semantics<parallel>], iteration_bounds = array<i64: 2>, scalar_prefetch = 0 : i64, scratch_operands = 1 : i64, tpu.core_type = #tpu.core_type<tc>, window_params = [{transform_indices = @transform_0, window_bounds = array<i64: 1, 288, 128>}, {pipeline_mode = #tpu.pipeline_mode<synchronous>, transform_indices = @transform_1, window_bounds = array<i64: 1, 128>}, {pipeline_mode = #tpu.pipeline_mode<synchronous>, transform_indices = @transform_2, window_bounds = array<i64: 1, 128>}, {pipeline_mode = #tpu.pipeline_mode<synchronous>, transform_indices = @transform_3, window_bounds = array<i64: 9, 128, 128>}, {transform_indices = @transform_4, window_bounds = array<i64: 1, 288, 128>}, {transform_indices = @transform_5, window_bounds = array<i64: 1, 1, 128>}, {transform_indices = @transform_6, window_bounds = array<i64: 1, 1, 128>}]} {
    %cst = arith.constant 0.000000e+00 : f32
    %0 = vector.broadcast %cst : f32 to vector<24x128xf32>
    %c0 = arith.constant 0 : index
    %c0_0 = arith.constant 0 : index
    %1 = vector.load %arg8[%c0, %c0_0] : memref<336x128xf32, #tpu.memory_space<vmem>>, vector<24x128xf32>
    tpu.vector_store %arg8[%c0, %c0_0], %0 {strides = array<i32>} : memref<336x128xf32, #tpu.memory_space<vmem>>, vector<24x128xf32>,
    %cst_1 = arith.constant 0.000000e+00 : f32
    %2 = vector.broadcast %cst_1 : f32 to vector<24x128xf32>
    %c312 = arith.constant 312 : index
    %c0_2 = arith.constant 0 : index
    %3 = vector.load %arg8[%c312, %c0_2] : memref<336x128xf32, #tpu.memory_space<vmem>>, vector<24x128xf32>
    tpu.vector_store %arg8[%c312, %c0_2], %2 {strides = array<i32>} : memref<336x128xf32, #tpu.memory_space<vmem>>, vector<24x128xf32>,
    %4 = tpu.iota {dimensions = array<i32: 0>} : vector<288x1xi32>
    %c18_i32 = arith.constant 18 : i32
    %c0_i32 = arith.constant 0 : i32
    %5 = arith.cmpi eq, %c18_i32, %c0_i32 : i32
    %c1_i32 = arith.constant 1 : i32
    %6 = arith.select %5, %c1_i32, %c18_i32 : i32
    %7 = vector.broadcast %6 : i32 to vector<288x1xi32>
    %8 = arith.remsi %4, %7 : vector<288x1xi32>
    %c0_i32_3 = arith.constant 0 : i32
    %9 = vector.broadcast %c0_i32_3 : i32 to vector<288x1xi32>
    %10 = arith.cmpi ne, %8, %9 : vector<288x1xi32>
    %c0_i32_4 = arith.constant 0 : i32
    %11 = vector.broadcast %c0_i32_4 : i32 to vector<288x1xi32>
    %12 = arith.cmpi slt, %8, %11 : vector<288x1xi32>
    %c0_i32_5 = arith.constant 0 : i32
    %13 = arith.cmpi slt, %6, %c0_i32_5 : i32
    %14 = vector.broadcast %13 : i1 to vector<288x1xi1>
    %15 = vector.broadcast %14 : vector<288x1xi1> to vector<288x1xi1>
    %16 = arith.xori %12, %15 : vector<288x1xi1>
    %17 = arith.andi %16, %10 : vector<288x1xi1>
    %18 = vector.broadcast %6 : i32 to vector<288x1xi32>
    %19 = arith.addi %8, %18 : vector<288x1xi32>
    %20 = arith.select %17, %19, %8 : vector<288x1xi1>, vector<288x1xi32>
    %c0_6 = arith.constant 0 : index
    %c0_7 = arith.constant 0 : index
    %c0_8 = arith.constant 0 : index
    %21 = vector.load %arg1[%c0_6, %c0_7, %c0_8] : memref<1x288x128xbf16, #tpu.memory_space<vmem>>, vector<1x288x128xbf16>
    %22 = vector.shape_cast %21 : vector<1x288x128xbf16> to vector<288x128xbf16>
    %23 = arith.extf %22 : vector<288x128xbf16> to vector<288x128xf32>
    %c0_9 = arith.constant 0 : index
    %c0_10 = arith.constant 0 : index
    %24 = vector.load %arg2[%c0_9, %c0_10] : memref<1x128xf32, #tpu.memory_space<vmem>>, vector<1x128xf32>
    %25 = vector.broadcast %24 : vector<1x128xf32> to vector<288x128xf32>
    %26 = arith.mulf %23, %25 : vector<288x128xf32>
    %c0_11 = arith.constant 0 : index
    %c0_12 = arith.constant 0 : index
    %27 = vector.load %arg3[%c0_11, %c0_12] : memref<1x128xf32, #tpu.memory_space<vmem>>, vector<1x128xf32>
    %28 = vector.broadcast %27 : vector<1x128xf32> to vector<288x128xf32>
    %29 = arith.addf %26, %28 : vector<288x128xf32>
    %cst_13 = arith.constant 0.000000e+00 : f32
    %30 = vector.broadcast %cst_13 : f32 to vector<288x128xf32>
    %31 = arith.cmpf ogt, %29, %30 : vector<288x128xf32>
    %cst_14 = arith.constant 0.00999999977 : f32
    %32 = vector.broadcast %cst_14 : f32 to vector<288x128xf32>
    %33 = arith.mulf %32, %29 : vector<288x128xf32>
    %34 = arith.select %31, %29, %33 : vector<288x128xi1>, vector<288x128xf32>
    %c16_i32 = arith.constant 16 : i32
    %35 = vector.broadcast %c16_i32 : i32 to vector<288x1xi32>
    %36 = arith.cmpi slt, %20, %35 : vector<288x1xi32>
    %cst_15 = arith.constant 0.000000e+00 : f32
    %37 = vector.shape_cast %36 : vector<288x1xi1> to vector<288x1xi1>
    %38 = vector.broadcast %37 : vector<288x1xi1> to vector<288x128xi1>
    %39 = vector.broadcast %cst_15 : f32 to vector<288x128xf32>
    %40 = arith.select %38, %34, %39 : vector<288x128xi1>, vector<288x128xf32>
    %c24 = arith.constant 24 : index
    %c0_16 = arith.constant 0 : index
    %41 = vector.load %arg8[%c24, %c0_16] : memref<336x128xf32, #tpu.memory_space<vmem>>, vector<288x128xf32>
    tpu.vector_store %arg8[%c24, %c0_16], %40 {strides = array<i32>} : memref<336x128xf32, #tpu.memory_space<vmem>>, vector<288x128xf32>,
    %c5 = arith.constant 5 : index
    %c0_17 = arith.constant 0 : index
    %42 = vector.load %arg8[%c5, %c0_17] : memref<336x128xf32, #tpu.memory_space<vmem>>, vector<288x128xf32>
    %43 = arith.truncf %42 : vector<288x128xf32> to vector<288x128xbf16>
    %c0_18 = arith.constant 0 : index
    %c0_19 = arith.constant 0 : index
    %c0_20 = arith.constant 0 : index
    %44 = vector.load %arg4[%c0_18, %c0_19, %c0_20] : memref<9x128x128xbf16, #tpu.memory_space<vmem>>, vector<1x128x128xbf16>
    %45 = vector.shape_cast %44 : vector<1x128x128xbf16> to vector<128x128xbf16>
    %cst_21 = arith.constant dense<0.000000e+00> : vector<288x128xf32>
    %46 = tpu.matmul %43, %45, %cst_21 {dimension_numbers = #tpu.dot_dimension_numbers<[1], [0], [0], [1], [0, 0, 1, 1], [], []>} : vector<288x128xbf16>, vector<128x128xbf16>, vector<288x128xf32> -> vector<288x128xf32>
    %c6 = arith.constant 6 : index
    %c0_22 = arith.constant 0 : index
    %47 = vector.load %arg8[%c6, %c0_22] : memref<336x128xf32, #tpu.memory_space<vmem>>, vector<288x128xf32>
    %48 = arith.truncf %47 : vector<288x128xf32> to vector<288x128xbf16>
    %c1 = arith.constant 1 : index
    %c0_23 = arith.constant 0 : index
    %c0_24 = arith.constant 0 : index
    %49 = vector.load %arg4[%c1, %c0_23, %c0_24] : memref<9x128x128xbf16, #tpu.memory_space<vmem>>, vector<1x128x128xbf16>
    %50 = vector.shape_cast %49 : vector<1x128x128xbf16> to vector<128x128xbf16>
    %cst_25 = arith.constant dense<0.000000e+00> : vector<288x128xf32>
    %51 = tpu.matmul %48, %50, %cst_25 {dimension_numbers = #tpu.dot_dimension_numbers<[1], [0], [0], [1], [0, 0, 1, 1], [], []>} : vector<288x128xbf16>, vector<128x128xbf16>, vector<288x128xf32> -> vector<288x128xf32>
    %52 = arith.addf %46, %51 : vector<288x128xf32>
    %c7 = arith.constant 7 : index
    %c0_26 = arith.constant 0 : index
    %53 = vector.load %arg8[%c7, %c0_26] : memref<336x128xf32, #tpu.memory_space<vmem>>, vector<288x128xf32>
    %54 = arith.truncf %53 : vector<288x128xf32> to vector<288x128xbf16>
    %c2 = arith.constant 2 : index
    %c0_27 = arith.constant 0 : index
    %c0_28 = arith.constant 0 : index
    %55 = vector.load %arg4[%c2, %c0_27, %c0_28] : memref<9x128x128xbf16, #tpu.memory_space<vmem>>, vector<1x128x128xbf16>
    %56 = vector.shape_cast %55 : vector<1x128x128xbf16> to vector<128x128xbf16>
    %cst_29 = arith.constant dense<0.000000e+00> : vector<288x128xf32>
    %57 = tpu.matmul %54, %56, %cst_29 {dimension_numbers = #tpu.dot_dimension_numbers<[1], [0], [0], [1], [0, 0, 1, 1], [], []>} : vector<288x128xbf16>, vector<128x128xbf16>, vector<288x128xf32> -> vector<288x128xf32>
    %58 = arith.addf %52, %57 : vector<288x128xf32>
    %c23 = arith.constant 23 : index
    %c0_30 = arith.constant 0 : index
    %59 = vector.load %arg8[%c23, %c0_30] : memref<336x128xf32, #tpu.memory_space<vmem>>, vector<288x128xf32>
    %60 = arith.truncf %59 : vector<288x128xf32> to vector<288x128xbf16>
    %c3 = arith.constant 3 : index
    %c0_31 = arith.constant 0 : index
    %c0_32 = arith.constant 0 : index
    %61 = vector.load %arg4[%c3, %c0_31, %c0_32] : memref<9x128x128xbf16, #tpu.memory_space<vmem>>, vector<1x128x128xbf16>
    %62 = vector.shape_cast %61 : vector<1x128x128xbf16> to vector<128x128xbf16>
    %cst_33 = arith.constant dense<0.000000e+00> : vector<288x128xf32>
    %63 = tpu.matmul %60, %62, %cst_33 {dimension_numbers = #tpu.dot_dimension_numbers<[1], [0], [0], [1], [0, 0, 1, 1], [], []>} : vector<288x128xbf16>, vector<128x128xbf16>, vector<288x128xf32> -> vector<288x128xf32>
    %64 = arith.addf %58, %63 : vector<288x128xf32>
    %c24_34 = arith.constant 24 : index
    %c0_35 = arith.constant 0 : index
    %65 = vector.load %arg8[%c24_34, %c0_35] : memref<336x128xf32, #tpu.memory_space<vmem>>, vector<288x128xf32>
    %66 = arith.truncf %65 : vector<288x128xf32> to vector<288x128xbf16>
    %c4 = arith.constant 4 : index
    %c0_36 = arith.constant 0 : index
    %c0_37 = arith.constant 0 : index
    %67 = vector.load %arg4[%c4, %c0_36, %c0_37] : memref<9x128x128xbf16, #tpu.memory_space<vmem>>, vector<1x128x128xbf16>
    %68 = vector.shape_cast %67 : vector<1x128x128xbf16> to vector<128x128xbf16>
    %cst_38 = arith.constant dense<0.000000e+00> : vector<288x128xf32>
    %69 = tpu.matmul %66, %68, %cst_38 {dimension_numbers = #tpu.dot_dimension_numbers<[1], [0], [0], [1], [0, 0, 1, 1], [], []>} : vector<288x128xbf16>, vector<128x128xbf16>, vector<288x128xf32> -> vector<288x128xf32>
    %70 = arith.addf %64, %69 : vector<288x128xf32>
    %c25 = arith.constant 25 : index
    %c0_39 = arith.constant 0 : index
    %71 = vector.load %arg8[%c25, %c0_39] : memref<336x128xf32, #tpu.memory_space<vmem>>, vector<288x128xf32>
    %72 = arith.truncf %71 : vector<288x128xf32> to vector<288x128xbf16>
    %c5_40 = arith.constant 5 : index
    %c0_41 = arith.constant 0 : index
    %c0_42 = arith.constant 0 : index
    %73 = vector.load %arg4[%c5_40, %c0_41, %c0_42] : memref<9x128x128xbf16, #tpu.memory_space<vmem>>, vector<1x128x128xbf16>
    %74 = vector.shape_cast %73 : vector<1x128x128xbf16> to vector<128x128xbf16>
    %cst_43 = arith.constant dense<0.000000e+00> : vector<288x128xf32>
    %75 = tpu.matmul %72, %74, %cst_43 {dimension_numbers = #tpu.dot_dimension_numbers<[1], [0], [0], [1], [0, 0, 1, 1], [], []>} : vector<288x128xbf16>, vector<128x128xbf16>, vector<288x128xf32> -> vector<288x128xf32>
    %76 = arith.addf %70, %75 : vector<288x128xf32>
    %c41 = arith.constant 41 : index
    %c0_44 = arith.constant 0 : index
    %77 = vector.load %arg8[%c41, %c0_44] : memref<336x128xf32, #tpu.memory_space<vmem>>, vector<288x128xf32>
    %78 = arith.truncf %77 : vector<288x128xf32> to vector<288x128xbf16>
    %c6_45 = arith.constant 6 : index
    %c0_46 = arith.constant 0 : index
    %c0_47 = arith.constant 0 : index
    %79 = vector.load %arg4[%c6_45, %c0_46, %c0_47] : memref<9x128x128xbf16, #tpu.memory_space<vmem>>, vector<1x128x128xbf16>
    %80 = vector.shape_cast %79 : vector<1x128x128xbf16> to vector<128x128xbf16>
    %cst_48 = arith.constant dense<0.000000e+00> : vector<288x128xf32>
    %81 = tpu.matmul %78, %80, %cst_48 {dimension_numbers = #tpu.dot_dimension_numbers<[1], [0], [0], [1], [0, 0, 1, 1], [], []>} : vector<288x128xbf16>, vector<128x128xbf16>, vector<288x128xf32> -> vector<288x128xf32>
    %82 = arith.addf %76, %81 : vector<288x128xf32>
    %c42 = arith.constant 42 : index
    %c0_49 = arith.constant 0 : index
    %83 = vector.load %arg8[%c42, %c0_49] : memref<336x128xf32, #tpu.memory_space<vmem>>, vector<288x128xf32>
    %84 = arith.truncf %83 : vector<288x128xf32> to vector<288x128xbf16>
    %c7_50 = arith.constant 7 : index
    %c0_51 = arith.constant 0 : index
    %c0_52 = arith.constant 0 : index
    %85 = vector.load %arg4[%c7_50, %c0_51, %c0_52] : memref<9x128x128xbf16, #tpu.memory_space<vmem>>, vector<1x128x128xbf16>
    %86 = vector.shape_cast %85 : vector<1x128x128xbf16> to vector<128x128xbf16>
    %cst_53 = arith.constant dense<0.000000e+00> : vector<288x128xf32>
    %87 = tpu.matmul %84, %86, %cst_53 {dimension_numbers = #tpu.dot_dimension_numbers<[1], [0], [0], [1], [0, 0, 1, 1], [], []>} : vector<288x128xbf16>, vector<128x128xbf16>, vector<288x128xf32> -> vector<288x128xf32>
    %88 = arith.addf %82, %87 : vector<288x128xf32>
    %c43 = arith.constant 43 : index
    %c0_54 = arith.constant 0 : index
    %89 = vector.load %arg8[%c43, %c0_54] : memref<336x128xf32, #tpu.memory_space<vmem>>, vector<288x128xf32>
    %90 = arith.truncf %89 : vector<288x128xf32> to vector<288x128xbf16>
    %c8 = arith.constant 8 : index
    %c0_55 = arith.constant 0 : index
    %c0_56 = arith.constant 0 : index
    %91 = vector.load %arg4[%c8, %c0_55, %c0_56] : memref<9x128x128xbf16, #tpu.memory_space<vmem>>, vector<1x128x128xbf16>
    %92 = vector.shape_cast %91 : vector<1x128x128xbf16> to vector<128x128xbf16>
    %cst_57 = arith.constant dense<0.000000e+00> : vector<288x128xf32>
    %93 = tpu.matmul %90, %92, %cst_57 {dimension_numbers = #tpu.dot_dimension_numbers<[1], [0], [0], [1], [0, 0, 1, 1], [], []>} : vector<288x128xbf16>, vector<128x128xbf16>, vector<288x128xf32> -> vector<288x128xf32>
    %94 = arith.addf %88, %93 : vector<288x128xf32>
    %95 = tpu.iota {dimensions = array<i32: 1>} : vector<8x288xi32>
    %c18_i32_58 = arith.constant 18 : i32
    %c0_i32_59 = arith.constant 0 : i32
    %96 = arith.cmpi eq, %c18_i32_58, %c0_i32_59 : i32
    %c1_i32_60 = arith.constant 1 : i32
    %97 = arith.select %96, %c1_i32_60, %c18_i32_58 : i32
    %98 = vector.broadcast %97 : i32 to vector<8x288xi32>
    %99 = arith.remsi %95, %98 : vector<8x288xi32>
    %c0_i32_61 = arith.constant 0 : i32
    %100 = vector.broadcast %c0_i32_61 : i32 to vector<8x288xi32>
    %101 = arith.cmpi ne, %99, %100 : vector<8x288xi32>
    %c0_i32_62 = arith.constant 0 : i32
    %102 = vector.broadcast %c0_i32_62 : i32 to vector<8x288xi32>
    %103 = arith.cmpi slt, %99, %102 : vector<8x288xi32>
    %c0_i32_63 = arith.constant 0 : i32
    %104 = arith.cmpi slt, %97, %c0_i32_63 : i32
    %105 = vector.broadcast %104 : i1 to vector<8x288xi1>
    %106 = vector.broadcast %105 : vector<8x288xi1> to vector<8x288xi1>
    %107 = arith.xori %103, %106 : vector<8x288xi1>
    %108 = arith.andi %107, %101 : vector<8x288xi1>
    %109 = vector.broadcast %97 : i32 to vector<8x288xi32>
    %110 = arith.addi %99, %109 : vector<8x288xi32>
    %111 = arith.select %108, %110, %99 : vector<8x288xi1>, vector<8x288xi32>
    %c16_i32_64 = arith.constant 16 : i32
    %112 = vector.broadcast %c16_i32_64 : i32 to vector<8x288xi32>
    %113 = arith.cmpi slt, %111, %112 : vector<8x288xi32>
    %114 = arith.extui %113 : vector<8x288xi1> to vector<8x288xi32>
    %115 = arith.sitofp %114 : vector<8x288xi32> to vector<8x288xf32>
    %cst_65 = arith.constant dense<0.000000e+00> : vector<8x128xf32>
    %116 = tpu.matmul %115, %94, %cst_65 {dimension_numbers = #tpu.dot_dimension_numbers<[1], [0], [0], [1], [0, 0, 1, 1], [], []>} : vector<8x288xf32>, vector<288x128xf32>, vector<8x128xf32> -> vector<8x128xf32>
    %117 = arith.mulf %94, %94 : vector<288x128xf32>
    %cst_66 = arith.constant dense<0.000000e+00> : vector<8x128xf32>
    %118 = tpu.matmul %115, %117, %cst_66 {dimension_numbers = #tpu.dot_dimension_numbers<[1], [0], [0], [1], [0, 0, 1, 1], [], []>} : vector<8x288xf32>, vector<288x128xf32>, vector<8x128xf32> -> vector<8x128xf32>
    %119 = vector.extract_strided_slice %116 {offsets = [0, 0], sizes = [1, 128], strides = [1, 1]} : vector<8x128xf32> to vector<1x128xf32>
    %c0_67 = arith.constant 0 : index
    %c0_68 = arith.constant 0 : index
    %c0_69 = arith.constant 0 : index
    %120 = vector.load %arg6[%c0_67, %c0_68, %c0_69] : memref<1x1x128xf32, #tpu.memory_space<vmem>>, vector<1x1x128xf32>
    %121 = vector.shape_cast %120 : vector<1x1x128xf32> to vector<1x128xf32>
    %122 = vector.shape_cast %119 : vector<1x128xf32> to vector<1x1x128xf32>
    tpu.vector_store %arg6[%c0_67, %c0_68, %c0_69], %122 {strides = array<i32>} : memref<1x1x128xf32, #tpu.memory_space<vmem>>, vector<1x1x128xf32>,
    %123 = vector.extract_strided_slice %118 {offsets = [0, 0], sizes = [1, 128], strides = [1, 1]} : vector<8x128xf32> to vector<1x128xf32>
    %c0_70 = arith.constant 0 : index
    %c0_71 = arith.constant 0 : index
    %c0_72 = arith.constant 0 : index
    %124 = vector.load %arg7[%c0_70, %c0_71, %c0_72] : memref<1x1x128xf32, #tpu.memory_space<vmem>>, vector<1x1x128xf32>
    %125 = vector.shape_cast %124 : vector<1x1x128xf32> to vector<1x128xf32>
    %126 = vector.shape_cast %123 : vector<1x128xf32> to vector<1x1x128xf32>
    tpu.vector_store %arg7[%c0_70, %c0_71, %c0_72], %126 {strides = array<i32>} : memref<1x1x128xf32, #tpu.memory_space<vmem>>, vector<1x1x128xf32>,
    %127 = arith.truncf %94 : vector<288x128xf32> to vector<288x128xbf16>
    %c0_73 = arith.constant 0 : index
    %c0_74 = arith.constant 0 : index
    %c0_75 = arith.constant 0 : index
    %128 = vector.load %arg5[%c0_73, %c0_74, %c0_75] : memref<1x288x128xbf16, #tpu.memory_space<vmem>>, vector<1x288x128xbf16>
    %129 = vector.shape_cast %128 : vector<1x288x128xbf16> to vector<288x128xbf16>
    %130 = vector.shape_cast %127 : vector<288x128xbf16> to vector<1x288x128xbf16>
    tpu.vector_store %arg5[%c0_73, %c0_74, %c0_75], %130 {strides = array<i32>} : memref<1x288x128xbf16, #tpu.memory_space<vmem>>, vector<1x288x128xbf16>,
    return
  }
  func.func @transform_0(%arg0: i32) -> (i32, i32, i32) {
    %c0_i32 = arith.constant 0 : i32
    %c0_i32_0 = arith.constant 0 : i32
    %c0_i32_1 = arith.constant 0 : i32
    return %arg0, %c0_i32, %c0_i32_0 : i32, i32, i32
  }
  func.func @transform_1(%arg0: i32) -> (i32, i32) {
    %c0_i32 = arith.constant 0 : i32
    %c0_i32_0 = arith.constant 0 : i32
    %c0_i32_1 = arith.constant 0 : i32
    return %c0_i32, %c0_i32_0 : i32, i32
  }
  func.func @transform_2(%arg0: i32) -> (i32, i32) {
    %c0_i32 = arith.constant 0 : i32
    %c0_i32_0 = arith.constant 0 : i32
    %c0_i32_1 = arith.constant 0 : i32
    return %c0_i32, %c0_i32_0 : i32, i32
  }
  func.func @transform_3(%arg0: i32) -> (i32, i32, i32) {
    %c0_i32 = arith.constant 0 : i32
    %c0_i32_0 = arith.constant 0 : i32
    %c0_i32_1 = arith.constant 0 : i32
    %c0_i32_2 = arith.constant 0 : i32
    return %c0_i32, %c0_i32_0, %c0_i32_1 : i32, i32, i32
  }
  func.func @transform_4(%arg0: i32) -> (i32, i32, i32) {
    %c0_i32 = arith.constant 0 : i32
    %c0_i32_0 = arith.constant 0 : i32
    %c0_i32_1 = arith.constant 0 : i32
    return %arg0, %c0_i32, %c0_i32_0 : i32, i32, i32
  }
  func.func @transform_5(%arg0: i32) -> (i32, i32, i32) {
    %c0_i32 = arith.constant 0 : i32
    %c0_i32_0 = arith.constant 0 : i32
    %c0_i32_1 = arith.constant 0 : i32
    return %arg0, %c0_i32, %c0_i32_0 : i32, i32, i32
  }
  func.func @transform_6(%arg0: i32) -> (i32, i32, i32) {
    %c0_i32 = arith.constant 0 : i32
    %c0_i32_0 = arith.constant 0 : i32
    %c0_i32_1 = arith.constant 0 : i32
    return %arg0, %c0_i32, %c0_i32_0 : i32, i32, i32
  }
}

</mosaic_0001>

<llo_original>
// kernel: conv_block_forward.2
$region0: #{conv_block_forward.2}
  #allocation0 [shape = 'u32[]', space=smem, size = 0x4, offset = 0x4, fixed_abs, tag = 'smem constant byte address 0x4 - core index']
  #allocation1 [shape = 'u32[72,128]{1,0:T(1,128)}', space=vmem, size = 0x9000, scoped, tag = 'internal scratch']
  %s0 = inlined_call_operand.vmem [shape: bf16[2,288,72], index: 0, kind: input, shape index: {}]
  %s1 = inlined_call_operand.vmem [shape: bf16[72,128], index: 1, kind: input, shape index: {}]
  %s2 = inlined_call_operand.vmem [shape: bf16[2,288,128], index: 2, kind: output, shape index: {0}]
  %s3 = inlined_call_operand.vmem [shape: f32[2,1,128], index: 3, kind: output, shape index: {1}]
  %s4 = inlined_call_operand.vmem [shape: f32[2,1,128], index: 4, kind: output, shape index: {2}]
  %5 = xla_tuple %s2, %s3, %s4
  %s6 = sld [smem:[#allocation0]]
  $region57: #{conv_block_forward.2} parent=0
    _
  %s8 = ssub.s32 1, %s6
  %s9 = scalar_select 0, %s8, %s6
  loop: start=0, step=1, limit=4
  $region2: #{conv_block_forward.2} parent=0 // loop_pre_header
    _
  $region3: #{conv_block_forward.2} parent=0 // loop_header
    %s11 = sphi 0, %s15
    %p12 = scmp.ge.s32.totalorder %s11, 4
    %s21 = sphi 0, %s23
    %s24 = sphi 0, %s21
    %s25 = sphi 0, %s24
    %s41 = sphi 0, %s25
    %s45 = sphi 0, %s45
    %s47 = sphi 0, %s45
    %s48 = sphi 0, %s47
    %s62 = sphi 0, %s48
    %s68 = sphi 0, %s70
    %s71 = sphi 0, %s68
    %s72 = sphi 0, %s71
    %s88 = sphi 0, %s72
    %s94 = sphi 0, %s96
    %s97 = sphi 0, %s94
    %s98 = sphi 0, %s97
    %s114 = sphi 0, %s98
    %s120 = sphi 0, %s122
    %s123 = sphi 0, %s120
    %s124 = sphi 0, %s123
    %s140 = sphi 0, %s124
  $region4: #{conv_block_forward.2} parent=0 // loop_header_branch
    %14 = sbr.rel (%p12) target = $region8
  $region5: #{conv_block_forward.2} parent=0 // loop_body
    %s16 = ssub.s32 %s11, 1
    %s17 = ssub.s32 %s11, 2
    %s18 = sadd.s32 %s11, 1
    %s19 = ssub.s32 %s11, %s18
    %p20 = scmp.eq.s32.totalorder %s19, 0
    %s22 = sadd.s32 %s21, 1
    %s23 = scalar_select %p20, %s21, %s22
    %p26 = pneg %p20
    %p27 = scmp.eq.s32.totalorder %s11, 1
    %p28 = por %p26, %p27
    %p29 = scmp.ne.s32.totalorder %s21, %s24
    %p30 = scmp.eq.s32.totalorder %s11, 0
    %p31 = por %p29, %p30
    %p32 = scmp.ne.s32.totalorder %s21, %s24
    %p33 = scmp.eq.s32.totalorder %s16, 1
    %p34 = por %p32, %p33
    %p35 = scmp.ne.s32.totalorder %s24, %s25
    %p36 = scmp.eq.s32.totalorder %s16, 0
    %p37 = por %p35, %p36
    %p38 = scmp.ne.s32.totalorder %s24, %s25
    %p39 = scmp.eq.s32.totalorder %s17, 1
    %p40 = por %p38, %p39
    %p42 = scmp.ne.s32.totalorder %s25, %s41
    %p43 = scmp.eq.s32.totalorder %s17, 0
    %p44 = por %p42, %p43
    %s46 = sadd.s32 %s45, 1
    %p49 = scmp.eq.s32.totalorder %s11, 1
    %p50 = scmp.ne.s32.totalorder %s45, %s47
    %p51 = scmp.eq.s32.totalorder %s11, 0
    %p52 = por %p50, %p51
    %p53 = scmp.ne.s32.totalorder %s45, %s47
    %p54 = scmp.eq.s32.totalorder %s16, 1
    %p55 = por %p53, %p54
    %p56 = scmp.ne.s32.totalorder %s47, %s48
    %p57 = scmp.eq.s32.totalorder %s16, 0
    %p58 = por %p56, %p57
    %p59 = scmp.ne.s32.totalorder %s47, %s48
    %p60 = scmp.eq.s32.totalorder %s17, 1
    %p61 = por %p59, %p60
    %p63 = scmp.ne.s32.totalorder %s48, %s62
    %p64 = scmp.eq.s32.totalorder %s17, 0
    %p65 = por %p63, %p64
    %s66 = ssub.s32 %s11, %s18
    %p67 = scmp.eq.s32.totalorder %s66, 0
    %s69 = sadd.s32 %s68, 1
    %s70 = scalar_select %p67, %s68, %s69
    %p73 = pneg %p67
    %p74 = scmp.eq.s32.totalorder %s11, 1
    %p75 = por %p73, %p74
    %p76 = scmp.ne.s32.totalorder %s68, %s71
    %p77 = scmp.eq.s32.totalorder %s11, 0
    %p78 = por %p76, %p77
    %p79 = scmp.ne.s32.totalorder %s68, %s71
    %p80 = scmp.eq.s32.totalorder %s16, 1
    %p81 = por %p79, %p80
    %p82 = scmp.ne.s32.totalorder %s71, %s72
    %p83 = scmp.eq.s32.totalorder %s16, 0
    %p84 = por %p82, %p83
    %p85 = scmp.ne.s32.totalorder %s71, %s72
    %p86 = scmp.eq.s32.totalorder %s17, 1
    %p87 = por %p85, %p86
    %p89 = scmp.ne.s32.totalorder %s72, %s88
    %p90 = scmp.eq.s32.totalorder %s17, 0
    %p91 = por %p89, %p90
    %s92 = ssub.s32 %s11, %s18
    %p93 = scmp.eq.s32.totalorder %s92, 0
    %s95 = sadd.s32 %s94, 1
    %s96 = scalar_select %p93, %s94, %s95
    %p99 = pneg %p93
    %p100 = scmp.eq.s32.totalorder %s11, 1
    %p101 = por %p99, %p100
    %p102 = scmp.ne.s32.totalorder %s94, %s97
    %p103 = scmp.eq.s32.totalorder %s11, 0
    %p104 = por %p102, %p103
    %p105 = scmp.ne.s32.totalorder %s94, %s97
    %p106 = scmp.eq.s32.totalorder %s16, 1
    %p107 = por %p105, %p106
    %p108 = scmp.ne.s32.totalorder %s97, %s98
    %p109 = scmp.eq.s32.totalorder %s16, 0
    %p110 = por %p108, %p109
    %p111 = scmp.ne.s32.totalorder %s97, %s98
    %p112 = scmp.eq.s32.totalorder %s17, 1
    %p113 = por %p111, %p112
    %p115 = scmp.ne.s32.totalorder %s98, %s114
    %p116 = scmp.eq.s32.totalorder %s17, 0
    %p117 = por %p115, %p116
    %s118 = ssub.s32 %s11, %s18
    %p119 = scmp.eq.s32.totalorder %s118, 0
    %s121 = sadd.s32 %s120, 1
    %s122 = scalar_select %p119, %s120, %s121
    %p125 = pneg %p119
    %p126 = scmp.eq.s32.totalorder %s11, 1
    %p127 = por %p125, %p126
    %p128 = scmp.ne.s32.totalorder %s120, %s123
    %p129 = scmp.eq.s32.totalorder %s11, 0
    %p130 = por %p128, %p129
    %p131 = scmp.ne.s32.totalorder %s120, %s123
    %p132 = scmp.eq.s32.totalorder %s16, 1
    %p133 = por %p131, %p132
    %p134 = scmp.ne.s32.totalorder %s123, %s124
    %p135 = scmp.eq.s32.totalorder %s16, 0
    %p136 = por %p134, %p135
    %p137 = scmp.ne.s32.totalorder %s123, %s124
    %p138 = scmp.eq.s32.totalorder %s17, 1
    %p139 = por %p137, %p138
    %p141 = scmp.ne.s32.totalorder %s124, %s140
    %p142 = scmp.eq.s32.totalorder %s17, 0
    %p143 = por %p141, %p142
    %p144 = scmp.le.s32.totalorder 1, %s11
    %p145 = scmp.lt.s32.totalorder %s11, 3
    %p146 = pnand %p144, %p145
    %p147 = pneg %p146
    // Predicated region
    $region9: #{conv_block_forward.2} parent=5 // pred_check
      _
    $region10: #{conv_block_forward.2} parent=5 // pred_check_branch
      %149 = sbr.rel (%p146) target = $region12
    $region11: #{conv_block_forward.2} parent=5 // pred_region
      %s150 = ssub.s32 %s11, 1
      // Predicated region
      $region13: #{conv_block_forward.2} parent=11 // pred_check
        %p151 = pneg %p58
      $region14: #{conv_block_forward.2} parent=11 // pred_check_branch
        %153 = sbr.rel (%p151) target = $region16
      $region15: #{conv_block_forward.2} parent=11 // pred_region
        _
      $region16: #{conv_block_forward.2} parent=11 // pred_fallthru
        _
    $region12: #{conv_block_forward.2} parent=5 // pred_fallthru
      _
    %p154 = scmp.lt.s32.totalorder %s11, 2
    // Predicated region
    $region17: #{conv_block_forward.2} parent=5 // pred_check
      %p155 = pneg %p154
    $region18: #{conv_block_forward.2} parent=5 // pred_check_branch
      %157 = sbr.rel (%p155) target = $region20
    $region19: #{conv_block_forward.2} parent=5 // pred_region
      // Predicated region
      $region21: #{conv_block_forward.2} parent=19 // pred_check
        %p158 = pneg %p31
      $region22: #{conv_block_forward.2} parent=19 // pred_check_branch
        %160 = sbr.rel (%p158) target = $region24
      $region23: #{conv_block_forward.2} parent=19 // pred_region
        %p161 = scmp.lt.s32.totalorder %s11, 1
        %s162 = scalar_select %p161, %s11, 1
        %s163 = smul.addr %s162, 36
        %s164 = smul.addr %s163, 4
        %s165 = scalar_lea.vmem %s0, %s164
      $region24: #{conv_block_forward.2} parent=19 // pred_fallthru
        _
    $region20: #{conv_block_forward.2} parent=5 // pred_fallthru
      _
    %p166 = scmp.le.s32.totalorder 1, %s11
    %p167 = scmp.lt.s32.totalorder %s11, 3
    %p168 = pnand %p166, %p167
    %p169 = pneg %p168
    // Predicated region
    $region25: #{conv_block_forward.2} parent=5 // pred_check
      _
    $region26: #{conv_block_forward.2} parent=5 // pred_check_branch
      %171 = sbr.rel (%p168) target = $region28
    $region27: #{conv_block_forward.2} parent=5 // pred_region
      %s172 = ssub.s32 %s11, 1
      %p173 = scmp.lt.s32.totalorder %s16, 1
      %s174 = scalar_select %p173, %s16, 1
      %s175 = smul.addr %s174, 36
      %s176 = smul.addr %s175, 4
      %s177 = scalar_lea.vmem %s0, %s176
      %p178 = pneg %p37
      %p179 = pneg %p34
      %p180 = pneg %p58
      %p181 = pneg %p55
      %p182 = pneg %p84
      %p183 = pneg %p81
      %p184 = scmp.lt.s32.totalorder %s16, 1
      %s185 = scalar_select %p184, %s16, 1
      %s186 = smul.addr %s185, 36
      %s187 = smul.addr %s186, 4
      %s188 = scalar_lea.vmem %s2, %s187
      %p189 = pneg %p110
      %p190 = pneg %p107
      %p191 = scmp.lt.s32.totalorder %s16, 1
      %s192 = scalar_select %p191, %s16, 1
      %s193 = scalar_lea.vmem %s3, %s192
      %p194 = pneg %p136
      %p195 = pneg %p133
      %p196 = scmp.lt.s32.totalorder %s16, 1
      %s197 = scalar_select %p196, %s16, 1
      %s198 = scalar_lea.vmem %s4, %s197
      %p199 = scmp.lt.s32.totalorder %s16, 1
      %s200 = scalar_select %p199, %s16, 1
      %s201 = smul.addr %s200, 36
      %s202 = smul.addr %s201, 4
      %s203 = scalar_lea.vmem %s0, %s202
      %p204 = scmp.lt.s32.totalorder %s16, 1
      %s205 = scalar_select %p204, %s16, 1
      %s206 = smul.addr %s205, 36
      %s207 = smul.addr %s206, 4
      %s208 = scalar_lea.vmem %s2, %s207
      %p209 = scmp.lt.s32.totalorder %s16, 1
      %s210 = scalar_select %p209, %s16, 1
      %s211 = scalar_lea.vmem %s3, %s210
      %p212 = scmp.lt.s32.totalorder %s16, 1
      %s213 = scalar_select %p212, %s16, 1
      %s214 = scalar_lea.vmem %s4, %s213
      %v216 = vld [vmem:[%s203] sm:$0xf]
      %v217 = vld [vmem:[%s203 + $0x4] sm:$0xf]
      %v218 = vld [vmem:[%s203 + $0x8] sm:$0xf]
      %v219 = vld [vmem:[%s203 + $0xc] sm:$0xf]
      %v220 = vld [vmem:[%s203 + $0x10] sm:$0xf]
      %v221 = vld [vmem:[%s203 + $0x14] sm:$0xf]
      %v222 = vld [vmem:[%s203 + $0x18] sm:$0xf]
      %v223 = vld [vmem:[%s203 + $0x1c] sm:$0xf]
      %v224 = vld [vmem:[%s203 + $0x20] sm:$0xf]
      %v225 = vld [vmem:[%s203 + $0x24] sm:$0xf]
      %v226 = vld [vmem:[%s203 + $0x28] sm:$0xf]
      %v227 = vld [vmem:[%s203 + $0x2c] sm:$0xf]
      %v228 = vld [vmem:[%s203 + $0x30] sm:$0xf]
      %v229 = vld [vmem:[%s203 + $0x34] sm:$0xf]
      %v230 = vld [vmem:[%s203 + $0x38] sm:$0xf]
      %v231 = vld [vmem:[%s203 + $0x3c] sm:$0xf]
      %v232 = vld [vmem:[%s203 + $0x40] sm:$0xf]
      %v233 = vld [vmem:[%s203 + $0x44] sm:$0xf]
      %v234 = vld [vmem:[%s203 + $0x48] sm:$0xf]
      %v235 = vld [vmem:[%s203 + $0x4c] sm:$0xf]
      %v236 = vld [vmem:[%s203 + $0x50] sm:$0xf]
      %v237 = vld [vmem:[%s203 + $0x54] sm:$0xf]
      %v238 = vld [vmem:[%s203 + $0x58] sm:$0xf]
      %v239 = vld [vmem:[%s203 + $0x5c] sm:$0xf]
      %v240 = vld [vmem:[%s203 + $0x60] sm:$0xf]
      %v241 = vld [vmem:[%s203 + $0x64] sm:$0xf]
      %v242 = vld [vmem:[%s203 + $0x68] sm:$0xf]
      %v243 = vld [vmem:[%s203 + $0x6c] sm:$0xf]
      %v244 = vld [vmem:[%s203 + $0x70] sm:$0xf]
      %v245 = vld [vmem:[%s203 + $0x74] sm:$0xf]
      %v246 = vld [vmem:[%s203 + $0x78] sm:$0xf]
      %v247 = vld [vmem:[%s203 + $0x7c] sm:$0xf]
      %v248 = vld [vmem:[%s203 + $0x80] sm:$0xf]
      %v249 = vld [vmem:[%s203 + $0x84] sm:$0xf]
      %v250 = vld [vmem:[%s203 + $0x88] sm:$0xf]
      %v251 = vld [vmem:[%s203 + $0x8c] sm:$0xf]
      %v252 = vld [vmem:[%s1] sm:$0xf]
      %v253 = vld [vmem:[%s1 + $0x4] sm:$0xf]
      %v254 = vld [vmem:[%s1 + $0x8] sm:$0xf]
      %v255 = vld [vmem:[%s1 + $0xc] sm:$0xf]
      %v256 = vld [vmem:[%s1 + $0x10] sm:$0xf]
      %v257 = vld [vmem:[%s1 + $0x14] sm:$0xf]
      %v258 = vld [vmem:[%s1 + $0x18] sm:$0xf]
      %v259 = vld [vmem:[%s1 + $0x1c] sm:$0xf]
      %v260 = vld [vmem:[%s1 + $0x20] sm:$0xf]
      %v297 = vunpack.c.l.b16 %v216
      %v298 = vunpack.c.l.b16 %v217
      %v299 = vunpack.c.l.b16 %v218
      %v300 = vunpack.c.l.b16 %v219
      %v301 = vunpack.c.l.b16 %v220
      %v302 = vunpack.c.l.b16 %v221
      %v303 = vunpack.c.l.b16 %v222
      %v304 = vunpack.c.l.b16 %v223
      %v305 = vunpack.c.l.b16 %v224
      %v306 = vunpack.c.l.b16 %v225
      %v307 = vunpack.c.l.b16 %v226
      %v308 = vunpack.c.l.b16 %v227
      %v309 = vunpack.c.l.b16 %v228
      %v310 = vunpack.c.l.b16 %v229
      %v311 = vunpack.c.l.b16 %v230
      %v312 = vunpack.c.l.b16 %v231
      %v313 = vunpack.c.l.b16 %v232
      %v314 = vunpack.c.l.b16 %v233
      %v315 = vunpack.c.l.b16 %v234
      %v316 = vunpack.c.l.b16 %v235
      %v317 = vunpack.c.l.b16 %v236
      %v318 = vunpack.c.l.b16 %v237
      %v319 = vunpack.c.l.b16 %v238
      %v320 = vunpack.c.l.b16 %v239
      %v321 = vunpack.c.l.b16 %v240
      %v322 = vunpack.c.l.b16 %v241
      %v323 = vunpack.c.l.b16 %v242
      %v324 = vunpack.c.l.b16 %v243
      %v325 = vunpack.c.l.b16 %v244
      %v326 = vunpack.c.l.b16 %v245
      %v327 = vunpack.c.l.b16 %v246
      %v328 = vunpack.c.l.b16 %v247
      %v329 = vunpack.c.l.b16 %v248
      %v330 = vunpack.c.l.b16 %v249
      %v331 = vunpack.c.l.b16 %v250
      %v332 = vunpack.c.l.b16 %v251
      %v333 = vpack.c.b16 %v298, %v297
      %v334 = vpack.c.b16 %v300, %v299
      %v335 = vpack.c.b16 %v302, %v301
      %v336 = vpack.c.b16 %v304, %v303
      %v337 = vpack.c.b16 %v306, %v305
      %v338 = vpack.c.b16 %v308, %v307
      %v339 = vpack.c.b16 %v310, %v309
      %v340 = vpack.c.b16 %v312, %v311
      %v341 = vpack.c.b16 %v314, %v313
      %v342 = vpack.c.b16 %v316, %v315
      %v343 = vpack.c.b16 %v318, %v317
      %v344 = vpack.c.b16 %v320, %v319
      %v345 = vpack.c.b16 %v322, %v321
      %v346 = vpack.c.b16 %v324, %v323
      %v347 = vpack.c.b16 %v326, %v325
      %v348 = vpack.c.b16 %v328, %v327
      %v349 = vpack.c.b16 %v330, %v329
      %v350 = vpack.c.b16 %v332, %v331
      %v360 = vunpack.c.l.b16 %v252
      %v361 = vunpack.c.l.b16 %v253
      %v362 = vunpack.c.l.b16 %v254
      %v363 = vunpack.c.l.b16 %v255
      %v364 = vunpack.c.l.b16 %v256
      %v365 = vunpack.c.l.b16 %v257
      %v366 = vunpack.c.l.b16 %v258
      %v367 = vunpack.c.l.b16 %v259
      %v368 = vunpack.c.l.b16 %v260
      %v369 = vpack.c.b16 %v361, %v360
      %v370 = vpack.c.b16 %v363, %v362
      %v371 = vpack.c.b16 %v365, %v364
      %v372 = vpack.c.b16 %v367, %v366
      %v373 = vpack.c.b16 %v368, %v368
      %vm378 = vcmask 588800
      %v380 = vsel %vm378, %v333, 0
      %v383 = vsel %vm378, %v334, 0
      %v386 = vsel %vm378, %v335, 0
      %v389 = vsel %vm378, %v336, 0
      %v392 = vsel %vm378, %v337, 0
      %v395 = vsel %vm378, %v338, 0
      %v398 = vsel %vm378, %v339, 0
      %v401 = vsel %vm378, %v340, 0
      %v404 = vsel %vm378, %v341, 0
      %v407 = vsel %vm378, %v342, 0
      %v410 = vsel %vm378, %v343, 0
      %v413 = vsel %vm378, %v344, 0
      %v416 = vsel %vm378, %v345, 0
      %v419 = vsel %vm378, %v346, 0
      %v422 = vsel %vm378, %v347, 0
      %v425 = vsel %vm378, %v348, 0
      %v428 = vsel %vm378, %v349, 0
      %v431 = vsel %vm378, %v350, 0
      %vm433 = vcmask 1043456
      %v435 = vsel %vm433, %v373, 0
      %437 = vmatpush.bf16.msra.mxu0 0
      %438 = vmatpush.bf16.msra.mxu0 0
      %439 = vmatpush.bf16.msra.mxu0 0
      %440 = vmatpush.bf16.msra.mxu0 %v435
      %441 = vmatpush.bf16.msra.mxu0 %v372
      %442 = vmatpush.bf16.msra.mxu0 %v371
      %443 = vmatpush.bf16.msra.mxu0 %v370
      %444 = vmatpush.bf16.msra.mxu0 %v369
      %445 = vmatmul.bf16.gmra.mxu0 %v380
      %v446 = vpop.f32.mrf.mxu0
      %v447 = vadd.f32 0.0, %v446
      %v448 = vpop.f32.mrf.mxu0
      %v449 = vadd.f32 0.0, %v448
      %450 = vmatmul.bf16.gmra.mxu0 %v383
      %v451 = vpop.f32.mrf.mxu0
      %v452 = vadd.f32 0.0, %v451
      %v453 = vpop.f32.mrf.mxu0
      %v454 = vadd.f32 0.0, %v453
      %455 = vmatmul.bf16.gmra.mxu0 %v386
      %v456 = vpop.f32.mrf.mxu0
      %v457 = vadd.f32 0.0, %v456
      %v458 = vpop.f32.mrf.mxu0
      %v459 = vadd.f32 0.0, %v458
      %460 = vmatmul.bf16.gmra.mxu0 %v389
      %v461 = vpop.f32.mrf.mxu0
      %v462 = vadd.f32 0.0, %v461
      %v463 = vpop.f32.mrf.mxu0
      %v464 = vadd.f32 0.0, %v463
      %465 = vmatmul.bf16.gmra.mxu0 %v392
      %v466 = vpop.f32.mrf.mxu0
      %v467 = vadd.f32 0.0, %v466
      %v468 = vpop.f32.mrf.mxu0
      %v469 = vadd.f32 0.0, %v468
      %470 = vmatmul.bf16.gmra.mxu0 %v395
      %v471 = vpop.f32.mrf.mxu0
      %v472 = vadd.f32 0.0, %v471
      %v473 = vpop.f32.mrf.mxu0
      %v474 = vadd.f32 0.0, %v473
      %475 = vmatmul.bf16.gmra.mxu0 %v398
      %v476 = vpop.f32.mrf.mxu0
      %v477 = vadd.f32 0.0, %v476
      %v478 = vpop.f32.mrf.mxu0
      %v479 = vadd.f32 0.0, %v478
      %480 = vmatmul.bf16.gmra.mxu0 %v401
      %v481 = vpop.f32.mrf.mxu0
      %v482 = vadd.f32 0.0, %v481
      %v483 = vpop.f32.mrf.mxu0
      %v484 = vadd.f32 0.0, %v483
      %485 = vmatmul.bf16.gmra.mxu0 %v404
      %v486 = vpop.f32.mrf.mxu0
      %v487 = vadd.f32 0.0, %v486
      %v488 = vpop.f32.mrf.mxu0
      %v489 = vadd.f32 0.0, %v488
      %490 = vmatmul.bf16.gmra.mxu0 %v407
      %v491 = vpop.f32.mrf.mxu0
      %v492 = vadd.f32 0.0, %v491
      %v493 = vpop.f32.mrf.mxu0
      %v494 = vadd.f32 0.0, %v493
      %495 = vmatmul.bf16.gmra.mxu0 %v410
      %v496 = vpop.f32.mrf.mxu0
      %v497 = vadd.f32 0.0, %v496
      %v498 = vpop.f32.mrf.mxu0
      %v499 = vadd.f32 0.0, %v498
      %500 = vmatmul.bf16.gmra.mxu0 %v413
      %v501 = vpop.f32.mrf.mxu0
      %v502 = vadd.f32 0.0, %v501
      %v503 = vpop.f32.mrf.mxu0
      %v504 = vadd.f32 0.0, %v503
      %505 = vmatmul.bf16.gmra.mxu0 %v416
      %v506 = vpop.f32.mrf.mxu0
      %v507 = vadd.f32 0.0, %v506
      %v508 = vpop.f32.mrf.mxu0
      %v509 = vadd.f32 0.0, %v508
      %510 = vmatmul.bf16.gmra.mxu0 %v419
      %v511 = vpop.f32.mrf.mxu0
      %v512 = vadd.f32 0.0, %v511
      %v513 = vpop.f32.mrf.mxu0
      %v514 = vadd.f32 0.0, %v513
      %515 = vmatmul.bf16.gmra.mxu0 %v422
      %v516 = vpop.f32.mrf.mxu0
      %v517 = vadd.f32 0.0, %v516
      %v518 = vpop.f32.mrf.mxu0
      %v519 = vadd.f32 0.0, %v518
      %520 = vmatmul.bf16.gmra.mxu0 %v425
      %v521 = vpop.f32.mrf.mxu0
      %v522 = vadd.f32 0.0, %v521
      %v523 = vpop.f32.mrf.mxu0
      %v524 = vadd.f32 0.0, %v523
      %525 = vmatmul.bf16.gmra.mxu0 %v428
      %v526 = vpop.f32.mrf.mxu0
      %v527 = vadd.f32 0.0, %v526
      %v528 = vpop.f32.mrf.mxu0
      %v529 = vadd.f32 0.0, %v528
      %530 = vmatmul.bf16.gmra.mxu0 %v431
      %v531 = vpop.f32.mrf.mxu0
      %v532 = vadd.f32 0.0, %v531
      %v533 = vpop.f32.mrf.mxu0
      %v534 = vadd.f32 0.0, %v533
      %535 = vdwg.mxu0
      %v536 = vlaneseq
      %v537 = vand.u32 %v536, 127
      %v538 = vadd.s32 %v537, 128
      %v539 = vadd.s32 %v537, 256
      %vm540 = vcmp.lt.s32.totalorder %v537, 0
      %v541 = vsub.s32 0, %v537
      %v542 = vsel %vm540, %v541, %v537
      %v543 = vand.u32 %v542, 65535
      %v544 = vshrl.u32 %v542, 16
      %v546 = vmul.u32 %v543, 14564
      %v547 = vmul.u32 %v543, 58254
      %v548 = vmul.u32 %v544, 14564
      %v549 = vmul.u32 %v544, 58254
      %v550 = vshll.u32 %v547, 16
      %v551 = vshrl.u32 %v547, 16
      %v552 = vshll.u32 %v548, 16
      %v553 = vshrl.u32 %v548, 16
      %vm554 = vc.u32 %v546, %v550
      %v555 = vsel %vm554, 1, 0
      %v556 = vadd.s32 %v546, %v550
      %v557 = vadd.s32 %v549, %v555
      %vm558 = vc.u32 %v556, %v552
      %v559 = vsel %vm558, 1, 0
      %v560 = vadd.s32 %v556, %v552
      %v561 = vadd.s32 %v557, %v559
      %v562 = vadd.s32 %v561, %v551
      %v563 = vadd.s32 %v562, %v553
      %v564 = vshrl.u32 %v563, 4
      %v565 = vmul.u32 %v564, 18
      %v566 = vsub.s32 %v542, %v565
      %v567 = vsub.s32 0, %v566
      %v568 = vsel %vm540, %v567, %v566
      %vm569 = vcmp.lt.s32.totalorder %v538, 0
      %v570 = vsub.s32 0, %v538
      %v571 = vsel %vm569, %v570, %v538
      %v572 = vand.u32 %v571, 65535
      %v573 = vshrl.u32 %v571, 16
      %v575 = vmul.u32 %v572, 14564
      %v576 = vmul.u32 %v572, 58254
      %v577 = vmul.u32 %v573, 14564
      %v578 = vmul.u32 %v573, 58254
      %v579 = vshll.u32 %v576, 16
      %v580 = vshrl.u32 %v576, 16
      %v581 = vshll.u32 %v577, 16
      %v582 = vshrl.u32 %v577, 16
      %vm583 = vc.u32 %v575, %v579
      %v584 = vsel %vm583, 1, 0
      %v585 = vadd.s32 %v575, %v579
      %v586 = vadd.s32 %v578, %v584
      %vm587 = vc.u32 %v585, %v581
      %v588 = vsel %vm587, 1, 0
      %v589 = vadd.s32 %v585, %v581
      %v590 = vadd.s32 %v586, %v588
      %v591 = vadd.s32 %v590, %v580
      %v592 = vadd.s32 %v591, %v582
      %v593 = vshrl.u32 %v592, 4
      %v594 = vmul.u32 %v593, 18
      %v595 = vsub.s32 %v571, %v594
      %v596 = vsub.s32 0, %v595
      %v597 = vsel %vm569, %v596, %v595
      %vm598 = vcmp.lt.s32.totalorder %v539, 0
      %v599 = vsub.s32 0, %v539
      %v600 = vsel %vm598, %v599, %v539
      %v601 = vand.u32 %v600, 65535
      %v602 = vshrl.u32 %v600, 16
      %v604 = vmul.u32 %v601, 14564
      %v605 = vmul.u32 %v601, 58254
      %v606 = vmul.u32 %v602, 14564
      %v607 = vmul.u32 %v602, 58254
      %v608 = vshll.u32 %v605, 16
      %v609 = vshrl.u32 %v605, 16
      %v610 = vshll.u32 %v606, 16
      %v611 = vshrl.u32 %v606, 16
      %vm612 = vc.u32 %v604, %v608
      %v613 = vsel %vm612, 1, 0
      %v614 = vadd.s32 %v604, %v608
      %v615 = vadd.s32 %v607, %v613
      %vm616 = vc.u32 %v614, %v610
      %v617 = vsel %vm616, 1, 0
      %v618 = vadd.s32 %v614, %v610
      %v619 = vadd.s32 %v615, %v617
      %v620 = vadd.s32 %v619, %v609
      %v621 = vadd.s32 %v620, %v611
      %v622 = vshrl.u32 %v621, 4
      %v623 = vmul.u32 %v622, 18
      %v624 = vsub.s32 %v600, %v623
      %v625 = vsub.s32 0, %v624
      %v626 = vsel %vm598, %v625, %v624
      %vm627 = vcmp.ne.s32.totalorder %v568, 0
      %vm628 = vcmp.ne.s32.totalorder %v597, 0
      %vm629 = vcmp.ne.s32.totalorder %v626, 0
      %vm630 = vcmp.lt.s32.totalorder %v568, 0
      %vm631 = vcmp.lt.s32.totalorder %v597, 0
      %vm632 = vcmp.lt.s32.totalorder %v626, 0
      %vm633 = vmand %vm630, %vm627
      %vm634 = vmand %vm631, %vm628
      %vm635 = vmand %vm632, %vm629
      %v636 = vadd.s32 %v568, 18
      %v637 = vadd.s32 %v597, 18
      %v638 = vadd.s32 %v626, 18
      %v639 = vsel %vm633, %v636, %v568
      %v640 = vsel %vm634, %v637, %v597
      %v641 = vsel %vm635, %v638, %v626
      %vm642 = vcmp.lt.s32.totalorder %v639, 16
      %vm643 = vcmp.lt.s32.totalorder %v640, 16
      %vm644 = vcmp.lt.s32.totalorder %v641, 16
      %v645 = vsel %vm642, 1, 0
      %v646 = vsel %vm643, 1, 0
      %v647 = vsel %vm644, 1, 0
      %v648 = vcvt.s32.f32 %v645
      %v649 = vcvt.s32.f32 %v646
      %v650 = vcvt.s32.f32 %v647
      %vm651 = vcmask 261120
      %v653 = vsel %vm651, %v650, 0
      %655 = vmatpush.msra.mxu0 %v484
      %656 = vmatpush.msra.mxu0 %v482
      %657 = vmatpush.msra.mxu0 %v479
      %658 = vmatpush.msra.mxu0 %v477
      %659 = vmatpush.msra.mxu0 %v474
      %660 = vmatpush.msra.mxu0 %v472
      %661 = vmatpush.msra.mxu0 %v469
      %662 = vmatpush.msra.mxu0 %v467
      %663 = vmatpush.msra.mxu0 %v464
      %664 = vmatpush.msra.mxu0 %v462
      %665 = vmatpush.msra.mxu0 %v459
      %666 = vmatpush.msra.mxu0 %v457
      %667 = vmatpush.msra.mxu0 %v454
      %668 = vmatpush.msra.mxu0 %v452
      %669 = vmatpush.msra.mxu0 %v449
      %670 = vmatpush.msra.mxu0 %v447
      %671 = vmatmul.f32.gmra.mxu0 %v648
      %v672 = vpop.f32.mrf.mxu0
      %v673 = vadd.f32 0.0, %v672
      %674 = vdwg.mxu0
      %675 = vmatpush.msra.mxu0 %v524
      %676 = vmatpush.msra.mxu0 %v522
      %677 = vmatpush.msra.mxu0 %v519
      %678 = vmatpush.msra.mxu0 %v517
      %679 = vmatpush.msra.mxu0 %v514
      %680 = vmatpush.msra.mxu0 %v512
      %681 = vmatpush.msra.mxu0 %v509
      %682 = vmatpush.msra.mxu0 %v507
      %683 = vmatpush.msra.mxu0 %v504
      %684 = vmatpush.msra.mxu0 %v502
      %685 = vmatpush.msra.mxu0 %v499
      %686 = vmatpush.msra.mxu0 %v497
      %687 = vmatpush.msra.mxu0 %v494
      %688 = vmatpush.msra.mxu0 %v492
      %689 = vmatpush.msra.mxu0 %v489
      %690 = vmatpush.msra.mxu0 %v487
      %691 = vmatmul.f32.gmra.mxu0 %v649
      %v692 = vpop.f32.mrf.mxu0
      %v693 = vadd.f32 %v673, %v692
      %694 = vdwg.mxu0
      %695 = vmatpush.msra.mxu0 0.0
      %696 = vmatpush.msra.mxu0 0.0
      %697 = vmatpush.msra.mxu0 0.0
      %698 = vmatpush.msra.mxu0 0.0
      %699 = vmatpush.msra.mxu0 0.0
      %700 = vmatpush.msra.mxu0 0.0
      %701 = vmatpush.msra.mxu0 0.0
      %702 = vmatpush.msra.mxu0 0.0
      %703 = vmatpush.msra.mxu0 0.0
      %704 = vmatpush.msra.mxu0 0.0
      %705 = vmatpush.msra.mxu0 0.0
      %706 = vmatpush.msra.mxu0 0.0
      %707 = vmatpush.msra.mxu0 %v534
      %708 = vmatpush.msra.mxu0 %v532
      %709 = vmatpush.msra.mxu0 %v529
      %710 = vmatpush.msra.mxu0 %v527
      %711 = vmatmul.f32.gmra.mxu0 %v653
      %v712 = vpop.f32.mrf.mxu0
      %v713 = vadd.f32 %v693, %v712
      %714 = vdwg.mxu0
      %v715 = vmul.f32 %v447, %v447
      %v716 = vmul.f32 %v449, %v449
      %v717 = vmul.f32 %v452, %v452
      %v718 = vmul.f32 %v454, %v454
      %v719 = vmul.f32 %v457, %v457
      %v720 = vmul.f32 %v459, %v459
      %v721 = vmul.f32 %v462, %v462
      %v722 = vmul.f32 %v464, %v464
      %v723 = vmul.f32 %v467, %v467
      %v724 = vmul.f32 %v469, %v469
      %v725 = vmul.f32 %v472, %v472
      %v726 = vmul.f32 %v474, %v474
      %v727 = vmul.f32 %v477, %v477
      %v728 = vmul.f32 %v479, %v479
      %v729 = vmul.f32 %v482, %v482
      %v730 = vmul.f32 %v484, %v484
      %v731 = vmul.f32 %v487, %v487
      %v732 = vmul.f32 %v489, %v489
      %v733 = vmul.f32 %v492, %v492
      %v734 = vmul.f32 %v494, %v494
      %v735 = vmul.f32 %v497, %v497
      %v736 = vmul.f32 %v499, %v499
      %v737 = vmul.f32 %v502, %v502
      %v738 = vmul.f32 %v504, %v504
      %v739 = vmul.f32 %v507, %v507
      %v740 = vmul.f32 %v509, %v509
      %v741 = vmul.f32 %v512, %v512
      %v742 = vmul.f32 %v514, %v514
      %v743 = vmul.f32 %v517, %v517
      %v744 = vmul.f32 %v519, %v519
      %v745 = vmul.f32 %v522, %v522
      %v746 = vmul.f32 %v524, %v524
      %v747 = vmul.f32 %v527, %v527
      %v748 = vmul.f32 %v529, %v529
      %v749 = vmul.f32 %v532, %v532
      %v750 = vmul.f32 %v534, %v534
      %751 = vmatpush.msra.mxu0 %v730
      %752 = vmatpush.msra.mxu0 %v729
      %753 = vmatpush.msra.mxu0 %v728
      %754 = vmatpush.msra.mxu0 %v727
      %755 = vmatpush.msra.mxu0 %v726
      %756 = vmatpush.msra.mxu0 %v725
      %757 = vmatpush.msra.mxu0 %v724
      %758 = vmatpush.msra.mxu0 %v723
      %759 = vmatpush.msra.mxu0 %v722
      %760 = vmatpush.msra.mxu0 %v721
      %761 = vmatpush.msra.mxu0 %v720
      %762 = vmatpush.msra.mxu0 %v719
      %763 = vmatpush.msra.mxu0 %v718
      %764 = vmatpush.msra.mxu0 %v717
      %765 = vmatpush.msra.mxu0 %v716
      %766 = vmatpush.msra.mxu0 %v715
      %767 = vmatmul.f32.gmra.mxu0 %v648
      %v768 = vpop.f32.mrf.mxu0
      %v769 = vadd.f32 0.0, %v768
      %770 = vdwg.mxu0
      %771 = vmatpush.msra.mxu0 %v746
      %772 = vmatpush.msra.mxu0 %v745
      %773 = vmatpush.msra.mxu0 %v744
      %774 = vmatpush.msra.mxu0 %v743
      %775 = vmatpush.msra.mxu0 %v742
      %776 = vmatpush.msra.mxu0 %v741
      %777 = vmatpush.msra.mxu0 %v740
      %778 = vmatpush.msra.mxu0 %v739
      %779 = vmatpush.msra.mxu0 %v738
      %780 = vmatpush.msra.mxu0 %v737
      %781 = vmatpush.msra.mxu0 %v736
      %782 = vmatpush.msra.mxu0 %v735
      %783 = vmatpush.msra.mxu0 %v734
      %784 = vmatpush.msra.mxu0 %v733
      %785 = vmatpush.msra.mxu0 %v732
      %786 = vmatpush.msra.mxu0 %v731
      %787 = vmatmul.f32.gmra.mxu0 %v649
      %v788 = vpop.f32.mrf.mxu0
      %v789 = vadd.f32 %v769, %v788
      %790 = vdwg.mxu0
      %791 = vmatpush.msra.mxu0 0.0
      %792 = vmatpush.msra.mxu0 0.0
      %793 = vmatpush.msra.mxu0 0.0
      %794 = vmatpush.msra.mxu0 0.0
      %795 = vmatpush.msra.mxu0 0.0
      %796 = vmatpush.msra.mxu0 0.0
      %797 = vmatpush.msra.mxu0 0.0
      %798 = vmatpush.msra.mxu0 0.0
      %799 = vmatpush.msra.mxu0 0.0
      %800 = vmatpush.msra.mxu0 0.0
      %801 = vmatpush.msra.mxu0 0.0
      %802 = vmatpush.msra.mxu0 0.0
      %803 = vmatpush.msra.mxu0 %v750
      %804 = vmatpush.msra.mxu0 %v749
      %805 = vmatpush.msra.mxu0 %v748
      %806 = vmatpush.msra.mxu0 %v747
      %807 = vmatmul.f32.gmra.mxu0 %v653
      %v808 = vpop.f32.mrf.mxu0
      %v809 = vadd.f32 %v789, %v808
      %810 = vdwg.mxu0
      %811 = vst [vmem:[%s211] sm:$0x1] %v713
      %812 = vst [vmem:[%s214] sm:$0x1] %v809
      %v813 = vpack.c.bf16 %v447, %v447
      %v814 = vpack.c.bf16 %v449, %v449
      %v815 = vpack.c.bf16 %v452, %v452
      %v816 = vpack.c.bf16 %v454, %v454
      %v817 = vpack.c.bf16 %v457, %v457
      %v818 = vpack.c.bf16 %v459, %v459
      %v819 = vpack.c.bf16 %v462, %v462
      %v820 = vpack.c.bf16 %v464, %v464
      %v821 = vpack.c.bf16 %v467, %v467
      %v822 = vpack.c.bf16 %v469, %v469
      %v823 = vpack.c.bf16 %v472, %v472
      %v824 = vpack.c.bf16 %v474, %v474
      %v825 = vpack.c.bf16 %v477, %v477
      %v826 = vpack.c.bf16 %v479, %v479
      %v827 = vpack.c.bf16 %v482, %v482
      %v828 = vpack.c.bf16 %v484, %v484
      %v829 = vpack.c.bf16 %v487, %v487
      %v830 = vpack.c.bf16 %v489, %v489
      %v831 = vpack.c.bf16 %v492, %v492
      %v832 = vpack.c.bf16 %v494, %v494
      %v833 = vpack.c.bf16 %v497, %v497
      %v834 = vpack.c.bf16 %v499, %v499
      %v835 = vpack.c.bf16 %v502, %v502
      %v836 = vpack.c.bf16 %v504, %v504
      %v837 = vpack.c.bf16 %v507, %v507
      %v838 = vpack.c.bf16 %v509, %v509
      %v839 = vpack.c.bf16 %v512, %v512
      %v840 = vpack.c.bf16 %v514, %v514
      %v841 = vpack.c.bf16 %v517, %v517
      %v842 = vpack.c.bf16 %v519, %v519
      %v843 = vpack.c.bf16 %v522, %v522
      %v844 = vpack.c.bf16 %v524, %v524
      %v845 = vpack.c.bf16 %v527, %v527
      %v846 = vpack.c.bf16 %v529, %v529
      %v847 = vpack.c.bf16 %v532, %v532
      %v848 = vpack.c.bf16 %v534, %v534
      %849 = vst [vmem:[%s208] sm:$0xf] %v813
      %850 = vst [vmem:[%s208 + $0x4] sm:$0xf] %v814
      %851 = vst [vmem:[%s208 + $0x8] sm:$0xf] %v815
      %852 = vst [vmem:[%s208 + $0xc] sm:$0xf] %v816
      %853 = vst [vmem:[%s208 + $0x10] sm:$0xf] %v817
      %854 = vst [vmem:[%s208 + $0x14] sm:$0xf] %v818
      %855 = vst [vmem:[%s208 + $0x18] sm:$0xf] %v819
      %856 = vst [vmem:[%s208 + $0x1c] sm:$0xf] %v820
      %857 = vst [vmem:[%s208 + $0x20] sm:$0xf] %v821
      %858 = vst [vmem:[%s208 + $0x24] sm:$0xf] %v822
      %859 = vst [vmem:[%s208 + $0x28] sm:$0xf] %v823
      %860 = vst [vmem:[%s208 + $0x2c] sm:$0xf] %v824
      %861 = vst [vmem:[%s208 + $0x30] sm:$0xf] %v825
      %862 = vst [vmem:[%s208 + $0x34] sm:$0xf] %v826
      %863 = vst [vmem:[%s208 + $0x38] sm:$0xf] %v827
      %864 = vst [vmem:[%s208 + $0x3c] sm:$0xf] %v828
      %865 = vst [vmem:[%s208 + $0x40] sm:$0xf] %v829
      %866 = vst [vmem:[%s208 + $0x44] sm:$0xf] %v830
      %867 = vst [vmem:[%s208 + $0x48] sm:$0xf] %v831
      %868 = vst [vmem:[%s208 + $0x4c] sm:$0xf] %v832
      %869 = vst [vmem:[%s208 + $0x50] sm:$0xf] %v833
      %870 = vst [vmem:[%s208 + $0x54] sm:$0xf] %v834
      %871 = vst [vmem:[%s208 + $0x58] sm:$0xf] %v835
      %872 = vst [vmem:[%s208 + $0x5c] sm:$0xf] %v836
      %873 = vst [vmem:[%s208 + $0x60] sm:$0xf] %v837
      %874 = vst [vmem:[%s208 + $0x64] sm:$0xf] %v838
      %875 = vst [vmem:[%s208 + $0x68] sm:$0xf] %v839
      %876 = vst [vmem:[%s208 + $0x6c] sm:$0xf] %v840
      %877 = vst [vmem:[%s208 + $0x70] sm:$0xf] %v841
      %878 = vst [vmem:[%s208 + $0x74] sm:$0xf] %v842
      %879 = vst [vmem:[%s208 + $0x78] sm:$0xf] %v843
      %880 = vst [vmem:[%s208 + $0x7c] sm:$0xf] %v844
      %881 = vst [vmem:[%s208 + $0x80] sm:$0xf] %v845
      %882 = vst [vmem:[%s208 + $0x84] sm:$0xf] %v846
      %883 = vst [vmem:[%s208 + $0x88] sm:$0xf] %v847
      %884 = vst [vmem:[%s208 + $0x8c] sm:$0xf] %v848
      %p885 = scmp.lt.s32.totalorder %s16, 1
      %s886 = scalar_select %p885, %s16, 1
      %s887 = smul.addr %s886, 36
      %s888 = smul.addr %s887, 4
      %s889 = scalar_lea.vmem %s2, %s888
      %p890 = scmp.lt.s32.totalorder %s16, 1
      %s891 = scalar_select %p890, %s16, 1
      %s892 = scalar_lea.vmem %s3, %s891
      %p893 = scmp.lt.s32.totalorder %s16, 1
      %s894 = scalar_select %p893, %s16, 1
      %s895 = scalar_lea.vmem %s4, %s894
      // Predicated region
      $region29: #{conv_block_forward.2} parent=27 // pred_check
        %p896 = pneg %p81
      $region30: #{conv_block_forward.2} parent=27 // pred_check_branch
        %898 = sbr.rel (%p896) target = $region32
      $region31: #{conv_block_forward.2} parent=27 // pred_region
        _
      $region32: #{conv_block_forward.2} parent=27 // pred_fallthru
        _
      // Predicated region
      $region33: #{conv_block_forward.2} parent=27 // pred_check
        %p899 = pneg %p107
      $region34: #{conv_block_forward.2} parent=27 // pred_check_branch
        %901 = sbr.rel (%p899) target = $region36
      $region35: #{conv_block_forward.2} parent=27 // pred_region
        _
      $region36: #{conv_block_forward.2} parent=27 // pred_fallthru
        _
      // Predicated region
      $region37: #{conv_block_forward.2} parent=27 // pred_check
        %p902 = pneg %p133
      $region38: #{conv_block_forward.2} parent=27 // pred_check_branch
        %904 = sbr.rel (%p902) target = $region40
      $region39: #{conv_block_forward.2} parent=27 // pred_region
        _
      $region40: #{conv_block_forward.2} parent=27 // pred_fallthru
        _
    $region28: #{conv_block_forward.2} parent=5 // pred_fallthru
      _
    %p905 = scmp.le.s32.totalorder 2, %s11
    // Predicated region
    $region41: #{conv_block_forward.2} parent=5 // pred_check
      %p906 = pneg %p905
    $region42: #{conv_block_forward.2} parent=5 // pred_check_branch
      %908 = sbr.rel (%p906) target = $region44
    $region43: #{conv_block_forward.2} parent=5 // pred_region
      %s909 = ssub.s32 %s11, 2
      // Predicated region
      $region45: #{conv_block_forward.2} parent=43 // pred_check
        %p910 = pneg %p87
      $region46: #{conv_block_forward.2} parent=43 // pred_check_branch
        %912 = sbr.rel (%p910) target = $region48
      $region47: #{conv_block_forward.2} parent=43 // pred_region
        %p913 = scmp.lt.s32.totalorder %s17, 1
        %s914 = scalar_select %p913, %s17, 1
        %s915 = smul.addr %s914, 36
        %s916 = smul.addr %s915, 4
        %s917 = scalar_lea.vmem %s2, %s916
      $region48: #{conv_block_forward.2} parent=43 // pred_fallthru
        _
      // Predicated region
      $region49: #{conv_block_forward.2} parent=43 // pred_check
        %p918 = pneg %p113
      $region50: #{conv_block_forward.2} parent=43 // pred_check_branch
        %920 = sbr.rel (%p918) target = $region52
      $region51: #{conv_block_forward.2} parent=43 // pred_region
        %p921 = scmp.lt.s32.totalorder %s17, 1
        %s922 = scalar_select %p921, %s17, 1
        %s923 = scalar_lea.vmem %s3, %s922
      $region52: #{conv_block_forward.2} parent=43 // pred_fallthru
        _
      // Predicated region
      $region53: #{conv_block_forward.2} parent=43 // pred_check
        %p924 = pneg %p139
      $region54: #{conv_block_forward.2} parent=43 // pred_check_branch
        %926 = sbr.rel (%p924) target = $region56
      $region55: #{conv_block_forward.2} parent=43 // pred_region
        %p927 = scmp.lt.s32.totalorder %s17, 1
        %s928 = scalar_select %p927, %s17, 1
        %s929 = scalar_lea.vmem %s4, %s928
      $region56: #{conv_block_forward.2} parent=43 // pred_fallthru
        _
    $region44: #{conv_block_forward.2} parent=5 // pred_fallthru
      _
  $region6: #{conv_block_forward.2} parent=0 // loop_footer
    %s15 = sadd.s32 1, %s11
  $region7: #{conv_block_forward.2} parent=0 // loop_footer_branch
    %10 = sbr.rel target = $region3
  $region8: #{conv_block_forward.2} parent=0 // loop_exit
    _

// kernel: conv_block_forward.3
$region0: #{conv_block_forward.3}
  #allocation0 [shape = 'u32[]', space=smem, size = 0x4, offset = 0x4, fixed_abs, tag = 'smem constant byte address 0x4 - core index']
  #allocation1 [shape = 'u32[72,128]{1,0:T(1,128)}', space=vmem, size = 0x9000, scoped, tag = 'internal scratch']
  #allocation2 [shape = 'f32[336,128]{1,0:T(8,128)}', space=vmem, size = 0x2a000, scoped, tag = 'scratch operand']
  %s0 = inlined_call_operand.vmem [shape: bf16[2,288,128], index: 0, kind: input, shape index: {}]
  %s1 = inlined_call_operand.vmem [shape: f32[1,128], index: 1, kind: input, shape index: {}]
  %s2 = inlined_call_operand.vmem [shape: f32[1,128], index: 2, kind: input, shape index: {}]
  %s3 = inlined_call_operand.vmem [shape: bf16[9,128,128], index: 3, kind: input, shape index: {}]
  %s4 = inlined_call_operand.vmem [shape: bf16[2,288,128], index: 4, kind: output, shape index: {0}]
  %s5 = inlined_call_operand.vmem [shape: f32[2,1,128], index: 5, kind: output, shape index: {1}]
  %s6 = inlined_call_operand.vmem [shape: f32[2,1,128], index: 6, kind: output, shape index: {2}]
  %7 = xla_tuple %s4, %s5, %s6
  %s8 = sld [smem:[#allocation0]]
  $region65: #{conv_block_forward.3} parent=0
    _
  %s10 = ssub.s32 1, %s8
  %s11 = scalar_select 0, %s10, %s8
  loop: start=0, step=1, limit=4
  $region2: #{conv_block_forward.3} parent=0 // loop_pre_header
    _
  $region3: #{conv_block_forward.3} parent=0 // loop_header
    %s13 = sphi 0, %s17
    %p14 = scmp.ge.s32.totalorder %s13, 4
    %s23 = sphi 0, %s25
    %s26 = sphi 0, %s23
    %s27 = sphi 0, %s26
    %s43 = sphi 0, %s27
    %s47 = sphi 0, %s47
    %s49 = sphi 0, %s47
    %s50 = sphi 0, %s49
    %s64 = sphi 0, %s50
    %s68 = sphi 0, %s68
    %s70 = sphi 0, %s68
    %s71 = sphi 0, %s70
    %s85 = sphi 0, %s71
    %s89 = sphi 0, %s89
    %s91 = sphi 0, %s89
    %s92 = sphi 0, %s91
    %s106 = sphi 0, %s92
    %s112 = sphi 0, %s114
    %s115 = sphi 0, %s112
    %s116 = sphi 0, %s115
    %s132 = sphi 0, %s116
    %s138 = sphi 0, %s140
    %s141 = sphi 0, %s138
    %s142 = sphi 0, %s141
    %s158 = sphi 0, %s142
    %s164 = sphi 0, %s166
    %s167 = sphi 0, %s164
    %s168 = sphi 0, %s167
    %s184 = sphi 0, %s168
  $region4: #{conv_block_forward.3} parent=0 // loop_header_branch
    %16 = sbr.rel (%p14) target = $region8
  $region5: #{conv_block_forward.3} parent=0 // loop_body
    %s18 = ssub.s32 %s13, 1
    %s19 = ssub.s32 %s13, 2
    %s20 = sadd.s32 %s13, 1
    %s21 = ssub.s32 %s13, %s20
    %p22 = scmp.eq.s32.totalorder %s21, 0
    %s24 = sadd.s32 %s23, 1
    %s25 = scalar_select %p22, %s23, %s24
    %p28 = pneg %p22
    %p29 = scmp.eq.s32.totalorder %s13, 1
    %p30 = por %p28, %p29
    %p31 = scmp.ne.s32.totalorder %s23, %s26
    %p32 = scmp.eq.s32.totalorder %s13, 0
    %p33 = por %p31, %p32
    %p34 = scmp.ne.s32.totalorder %s23, %s26
    %p35 = scmp.eq.s32.totalorder %s18, 1
    %p36 = por %p34, %p35
    %p37 = scmp.ne.s32.totalorder %s26, %s27
    %p38 = scmp.eq.s32.totalorder %s18, 0
    %p39 = por %p37, %p38
    %p40 = scmp.ne.s32.totalorder %s26, %s27
    %p41 = scmp.eq.s32.totalorder %s19, 1
    %p42 = por %p40, %p41
    %p44 = scmp.ne.s32.totalorder %s27, %s43
    %p45 = scmp.eq.s32.totalorder %s19, 0
    %p46 = por %p44, %p45
    %s48 = sadd.s32 %s47, 1
    %p51 = scmp.eq.s32.totalorder %s13, 1
    %p52 = scmp.ne.s32.totalorder %s47, %s49
    %p53 = scmp.eq.s32.totalorder %s13, 0
    %p54 = por %p52, %p53
    %p55 = scmp.ne.s32.totalorder %s47, %s49
    %p56 = scmp.eq.s32.totalorder %s18, 1
    %p57 = por %p55, %p56
    %p58 = scmp.ne.s32.totalorder %s49, %s50
    %p59 = scmp.eq.s32.totalorder %s18, 0
    %p60 = por %p58, %p59
    %p61 = scmp.ne.s32.totalorder %s49, %s50
    %p62 = scmp.eq.s32.totalorder %s19, 1
    %p63 = por %p61, %p62
    %p65 = scmp.ne.s32.totalorder %s50, %s64
    %p66 = scmp.eq.s32.totalorder %s19, 0
    %p67 = por %p65, %p66
    %s69 = sadd.s32 %s68, 1
    %p72 = scmp.eq.s32.totalorder %s13, 1
    %p73 = scmp.ne.s32.totalorder %s68, %s70
    %p74 = scmp.eq.s32.totalorder %s13, 0
    %p75 = por %p73, %p74
    %p76 = scmp.ne.s32.totalorder %s68, %s70
    %p77 = scmp.eq.s32.totalorder %s18, 1
    %p78 = por %p76, %p77
    %p79 = scmp.ne.s32.totalorder %s70, %s71
    %p80 = scmp.eq.s32.totalorder %s18, 0
    %p81 = por %p79, %p80
    %p82 = scmp.ne.s32.totalorder %s70, %s71
    %p83 = scmp.eq.s32.totalorder %s19, 1
    %p84 = por %p82, %p83
    %p86 = scmp.ne.s32.totalorder %s71, %s85
    %p87 = scmp.eq.s32.totalorder %s19, 0
    %p88 = por %p86, %p87
    %s90 = sadd.s32 %s89, 1
    %p93 = scmp.eq.s32.totalorder %s13, 1
    %p94 = scmp.ne.s32.totalorder %s89, %s91
    %p95 = scmp.eq.s32.totalorder %s13, 0
    %p96 = por %p94, %p95
    %p97 = scmp.ne.s32.totalorder %s89, %s91
    %p98 = scmp.eq.s32.totalorder %s18, 1
    %p99 = por %p97, %p98
    %p100 = scmp.ne.s32.totalorder %s91, %s92
    %p101 = scmp.eq.s32.totalorder %s18, 0
    %p102 = por %p100, %p101
    %p103 = scmp.ne.s32.totalorder %s91, %s92
    %p104 = scmp.eq.s32.totalorder %s19, 1
    %p105 = por %p103, %p104
    %p107 = scmp.ne.s32.totalorder %s92, %s106
    %p108 = scmp.eq.s32.totalorder %s19, 0
    %p109 = por %p107, %p108
    %s110 = ssub.s32 %s13, %s20
    %p111 = scmp.eq.s32.totalorder %s110, 0
    %s113 = sadd.s32 %s112, 1
    %s114 = scalar_select %p111, %s112, %s113
    %p117 = pneg %p111
    %p118 = scmp.eq.s32.totalorder %s13, 1
    %p119 = por %p117, %p118
    %p120 = scmp.ne.s32.totalorder %s112, %s115
    %p121 = scmp.eq.s32.totalorder %s13, 0
    %p122 = por %p120, %p121
    %p123 = scmp.ne.s32.totalorder %s112, %s115
    %p124 = scmp.eq.s32.totalorder %s18, 1
    %p125 = por %p123, %p124
    %p126 = scmp.ne.s32.totalorder %s115, %s116
    %p127 = scmp.eq.s32.totalorder %s18, 0
    %p128 = por %p126, %p127
    %p129 = scmp.ne.s32.totalorder %s115, %s116
    %p130 = scmp.eq.s32.totalorder %s19, 1
    %p131 = por %p129, %p130
    %p133 = scmp.ne.s32.totalorder %s116, %s132
    %p134 = scmp.eq.s32.totalorder %s19, 0
    %p135 = por %p133, %p134
    %s136 = ssub.s32 %s13, %s20
    %p137 = scmp.eq.s32.totalorder %s136, 0
    %s139 = sadd.s32 %s138, 1
    %s140 = scalar_select %p137, %s138, %s139
    %p143 = pneg %p137
    %p144 = scmp.eq.s32.totalorder %s13, 1
    %p145 = por %p143, %p144
    %p146 = scmp.ne.s32.totalorder %s138, %s141
    %p147 = scmp.eq.s32.totalorder %s13, 0
    %p148 = por %p146, %p147
    %p149 = scmp.ne.s32.totalorder %s138, %s141
    %p150 = scmp.eq.s32.totalorder %s18, 1
    %p151 = por %p149, %p150
    %p152 = scmp.ne.s32.totalorder %s141, %s142
    %p153 = scmp.eq.s32.totalorder %s18, 0
    %p154 = por %p152, %p153
    %p155 = scmp.ne.s32.totalorder %s141, %s142
    %p156 = scmp.eq.s32.totalorder %s19, 1
    %p157 = por %p155, %p156
    %p159 = scmp.ne.s32.totalorder %s142, %s158
    %p160 = scmp.eq.s32.totalorder %s19, 0
    %p161 = por %p159, %p160
    %s162 = ssub.s32 %s13, %s20
    %p163 = scmp.eq.s32.totalorder %s162, 0
    %s165 = sadd.s32 %s164, 1
    %s166 = scalar_select %p163, %s164, %s165
    %p169 = pneg %p163
    %p170 = scmp.eq.s32.totalorder %s13, 1
    %p171 = por %p169, %p170
    %p172 = scmp.ne.s32.totalorder %s164, %s167
    %p173 = scmp.eq.s32.totalorder %s13, 0
    %p174 = por %p172, %p173
    %p175 = scmp.ne.s32.totalorder %s164, %s167
    %p176 = scmp.eq.s32.totalorder %s18, 1
    %p177 = por %p175, %p176
    %p178 = scmp.ne.s32.totalorder %s167, %s168
    %p179 = scmp.eq.s32.totalorder %s18, 0
    %p180 = por %p178, %p179
    %p181 = scmp.ne.s32.totalorder %s167, %s168
    %p182 = scmp.eq.s32.totalorder %s19, 1
    %p183 = por %p181, %p182
    %p185 = scmp.ne.s32.totalorder %s168, %s184
    %p186 = scmp.eq.s32.totalorder %s19, 0
    %p187 = por %p185, %p186
    %p188 = scmp.le.s32.totalorder 1, %s13
    %p189 = scmp.lt.s32.totalorder %s13, 3
    %p190 = pnand %p188, %p189
    %p191 = pneg %p190
    // Predicated region
    $region9: #{conv_block_forward.3} parent=5 // pred_check
      _
    $region10: #{conv_block_forward.3} parent=5 // pred_check_branch
      %193 = sbr.rel (%p190) target = $region12
    $region11: #{conv_block_forward.3} parent=5 // pred_region
      %s194 = ssub.s32 %s13, 1
      // Predicated region
      $region13: #{conv_block_forward.3} parent=11 // pred_check
        %p195 = pneg %p60
      $region14: #{conv_block_forward.3} parent=11 // pred_check_branch
        %197 = sbr.rel (%p195) target = $region16
      $region15: #{conv_block_forward.3} parent=11 // pred_region
        _
      $region16: #{conv_block_forward.3} parent=11 // pred_fallthru
        _
      // Predicated region
      $region17: #{conv_block_forward.3} parent=11 // pred_check
        %p198 = pneg %p81
      $region18: #{conv_block_forward.3} parent=11 // pred_check_branch
        %200 = sbr.rel (%p198) target = $region20
      $region19: #{conv_block_forward.3} parent=11 // pred_region
        _
      $region20: #{conv_block_forward.3} parent=11 // pred_fallthru
        _
      // Predicated region
      $region21: #{conv_block_forward.3} parent=11 // pred_check
        %p201 = pneg %p102
      $region22: #{conv_block_forward.3} parent=11 // pred_check_branch
        %203 = sbr.rel (%p201) target = $region24
      $region23: #{conv_block_forward.3} parent=11 // pred_region
        _
      $region24: #{conv_block_forward.3} parent=11 // pred_fallthru
        _
    $region12: #{conv_block_forward.3} parent=5 // pred_fallthru
      _
    %p204 = scmp.lt.s32.totalorder %s13, 2
    // Predicated region
    $region25: #{conv_block_forward.3} parent=5 // pred_check
      %p205 = pneg %p204
    $region26: #{conv_block_forward.3} parent=5 // pred_check_branch
      %207 = sbr.rel (%p205) target = $region28
    $region27: #{conv_block_forward.3} parent=5 // pred_region
      // Predicated region
      $region29: #{conv_block_forward.3} parent=27 // pred_check
        %p208 = pneg %p33
      $region30: #{conv_block_forward.3} parent=27 // pred_check_branch
        %210 = sbr.rel (%p208) target = $region32
      $region31: #{conv_block_forward.3} parent=27 // pred_region
        %p211 = scmp.lt.s32.totalorder %s13, 1
        %s212 = scalar_select %p211, %s13, 1
        %s213 = smul.addr %s212, 36
        %s214 = smul.addr %s213, 4
        %s215 = scalar_lea.vmem %s0, %s214
      $region32: #{conv_block_forward.3} parent=27 // pred_fallthru
        _
    $region28: #{conv_block_forward.3} parent=5 // pred_fallthru
      _
    %p216 = scmp.le.s32.totalorder 1, %s13
    %p217 = scmp.lt.s32.totalorder %s13, 3
    %p218 = pnand %p216, %p217
    %p219 = pneg %p218
    // Predicated region
    $region33: #{conv_block_forward.3} parent=5 // pred_check
      _
    $region34: #{conv_block_forward.3} parent=5 // pred_check_branch
      %221 = sbr.rel (%p218) target = $region36
    $region35: #{conv_block_forward.3} parent=5 // pred_region
      %s222 = ssub.s32 %s13, 1
      %p223 = scmp.lt.s32.totalorder %s18, 1
      %s224 = scalar_select %p223, %s18, 1
      %s225 = smul.addr %s224, 36
      %s226 = smul.addr %s225, 4
      %s227 = scalar_lea.vmem %s0, %s226
      %p228 = pneg %p39
      %p229 = pneg %p36
      %p230 = pneg %p60
      %p231 = pneg %p57
      %p232 = pneg %p81
      %p233 = pneg %p78
      %p234 = pneg %p102
      %p235 = pneg %p99
      %p236 = pneg %p128
      %p237 = pneg %p125
      %p238 = scmp.lt.s32.totalorder %s18, 1
      %s239 = scalar_select %p238, %s18, 1
      %s240 = smul.addr %s239, 36
      %s241 = smul.addr %s240, 4
      %s242 = scalar_lea.vmem %s4, %s241
      %p243 = pneg %p154
      %p244 = pneg %p151
      %p245 = scmp.lt.s32.totalorder %s18, 1
      %s246 = scalar_select %p245, %s18, 1
      %s247 = scalar_lea.vmem %s5, %s246
      %p248 = pneg %p180
      %p249 = pneg %p177
      %p250 = scmp.lt.s32.totalorder %s18, 1
      %s251 = scalar_select %p250, %s18, 1
      %s252 = scalar_lea.vmem %s6, %s251
      %p253 = scmp.lt.s32.totalorder %s18, 1
      %s254 = scalar_select %p253, %s18, 1
      %s255 = smul.addr %s254, 36
      %s256 = smul.addr %s255, 4
      %s257 = scalar_lea.vmem %s0, %s256
      %p258 = scmp.lt.s32.totalorder %s18, 1
      %s259 = scalar_select %p258, %s18, 1
      %s260 = smul.addr %s259, 36
      %s261 = smul.addr %s260, 4
      %s262 = scalar_lea.vmem %s4, %s261
      %p263 = scmp.lt.s32.totalorder %s18, 1
      %s264 = scalar_select %p263, %s18, 1
      %s265 = scalar_lea.vmem %s5, %s264
      %p266 = scmp.lt.s32.totalorder %s18, 1
      %s267 = scalar_select %p266, %s18, 1
      %s268 = scalar_lea.vmem %s6, %s267
      %269 = vst [vmem:[#allocation2] sm:$0xff] 0.0
      %270 = vst [vmem:[#allocation2 + $0x8] sm:$0xff] 0.0
      %271 = vst [vmem:[#allocation2 + $0x10] sm:$0xff] 0.0
      %272 = vst [vmem:[#allocation2 + $0x138] sm:$0xff] 0.0
      %273 = vst [vmem:[#allocation2 + $0x140] sm:$0xff] 0.0
      %274 = vst [vmem:[#allocation2 + $0x148] sm:$0xff] 0.0
      %v275 = vlaneseq
      %v276 = vshrl.u32 %v275, 7
      %v277 = vadd.s32 %v276, 8
      %v278 = vadd.s32 %v276, 16
      %v279 = vadd.s32 %v276, 24
      %v280 = vadd.s32 %v276, 32
      %v281 = vadd.s32 %v276, 40
      %v282 = vadd.s32 %v276, 48
      %v283 = vadd.s32 %v276, 56
      %v284 = vadd.s32 %v276, 64
      %v285 = vadd.s32 %v276, 72
      %v286 = vadd.s32 %v276, 80
      %v287 = vadd.s32 %v276, 88
      %v288 = vadd.s32 %v276, 96
      %v289 = vadd.s32 %v276, 104
      %v290 = vadd.s32 %v276, 112
      %v291 = vadd.s32 %v276, 120
      %v292 = vadd.s32 %v276, 128
      %v293 = vadd.s32 %v276, 136
      %v294 = vadd.s32 %v276, 144
      %v295 = vadd.s32 %v276, 152
      %v296 = vadd.s32 %v276, 160
      %v297 = vadd.s32 %v276, 168
      %v298 = vadd.s32 %v276, 176
      %v299 = vadd.s32 %v276, 184
      %v300 = vadd.s32 %v276, 192
      %v301 = vadd.s32 %v276, 200
      %v302 = vadd.s32 %v276, 208
      %v303 = vadd.s32 %v276, 216
      %v304 = vadd.s32 %v276, 224
      %v305 = vadd.s32 %v276, 232
      %v306 = vadd.s32 %v276, 240
      %v307 = vadd.s32 %v276, 248
      %v308 = vadd.s32 %v276, 256
      %v309 = vadd.s32 %v276, 264
      %v310 = vadd.s32 %v276, 272
      %v311 = vadd.s32 %v276, 280
      %vm312 = vcmp.lt.s32.totalorder %v276, 0
      %v313 = vsub.s32 0, %v276
      %v314 = vsel %vm312, %v313, %v276
      %v315 = vand.u32 %v314, 65535
      %v316 = vshrl.u32 %v314, 16
      %v318 = vmul.u32 %v315, 14564
      %v319 = vmul.u32 %v315, 58254
      %v320 = vmul.u32 %v316, 14564
      %v321 = vmul.u32 %v316, 58254
      %v322 = vshll.u32 %v319, 16
      %v323 = vshrl.u32 %v319, 16
      %v324 = vshll.u32 %v320, 16
      %v325 = vshrl.u32 %v320, 16
      %vm326 = vc.u32 %v318, %v322
      %v327 = vsel %vm326, 1, 0
      %v328 = vadd.s32 %v318, %v322
      %v329 = vadd.s32 %v321, %v327
      %vm330 = vc.u32 %v328, %v324
      %v331 = vsel %vm330, 1, 0
      %v332 = vadd.s32 %v328, %v324
      %v333 = vadd.s32 %v329, %v331
      %v334 = vadd.s32 %v333, %v323
      %v335 = vadd.s32 %v334, %v325
      %v336 = vshrl.u32 %v335, 4
      %v337 = vmul.u32 %v336, 18
      %v338 = vsub.s32 %v314, %v337
      %v339 = vsub.s32 0, %v338
      %v340 = vsel %vm312, %v339, %v338
      %vm341 = vcmp.lt.s32.totalorder %v277, 0
      %v342 = vsub.s32 0, %v277
      %v343 = vsel %vm341, %v342, %v277
      %v344 = vand.u32 %v343, 65535
      %v345 = vshrl.u32 %v343, 16
      %v347 = vmul.u32 %v344, 14564
      %v348 = vmul.u32 %v344, 58254
      %v349 = vmul.u32 %v345, 14564
      %v350 = vmul.u32 %v345, 58254
      %v351 = vshll.u32 %v348, 16
      %v352 = vshrl.u32 %v348, 16
      %v353 = vshll.u32 %v349, 16
      %v354 = vshrl.u32 %v349, 16
      %vm355 = vc.u32 %v347, %v351
      %v356 = vsel %vm355, 1, 0
      %v357 = vadd.s32 %v347, %v351
      %v358 = vadd.s32 %v350, %v356
      %vm359 = vc.u32 %v357, %v353
      %v360 = vsel %vm359, 1, 0
      %v361 = vadd.s32 %v357, %v353
      %v362 = vadd.s32 %v358, %v360
      %v363 = vadd.s32 %v362, %v352
      %v364 = vadd.s32 %v363, %v354
      %v365 = vshrl.u32 %v364, 4
      %v366 = vmul.u32 %v365, 18
      %v367 = vsub.s32 %v343, %v366
      %v368 = vsub.s32 0, %v367
      %v369 = vsel %vm341, %v368, %v367
      %vm370 = vcmp.lt.s32.totalorder %v278, 0
      %v371 = vsub.s32 0, %v278
      %v372 = vsel %vm370, %v371, %v278
      %v373 = vand.u32 %v372, 65535
      %v374 = vshrl.u32 %v372, 16
      %v376 = vmul.u32 %v373, 14564
      %v377 = vmul.u32 %v373, 58254
      %v378 = vmul.u32 %v374, 14564
      %v379 = vmul.u32 %v374, 58254
      %v380 = vshll.u32 %v377, 16
      %v381 = vshrl.u32 %v377, 16
      %v382 = vshll.u32 %v378, 16
      %v383 = vshrl.u32 %v378, 16
      %vm384 = vc.u32 %v376, %v380
      %v385 = vsel %vm384, 1, 0
      %v386 = vadd.s32 %v376, %v380
      %v387 = vadd.s32 %v379, %v385
      %vm388 = vc.u32 %v386, %v382
      %v389 = vsel %vm388, 1, 0
      %v390 = vadd.s32 %v386, %v382
      %v391 = vadd.s32 %v387, %v389
      %v392 = vadd.s32 %v391, %v381
      %v393 = vadd.s32 %v392, %v383
      %v394 = vshrl.u32 %v393, 4
      %v395 = vmul.u32 %v394, 18
      %v396 = vsub.s32 %v372, %v395
      %v397 = vsub.s32 0, %v396
      %v398 = vsel %vm370, %v397, %v396
      %vm399 = vcmp.lt.s32.totalorder %v279, 0
      %v400 = vsub.s32 0, %v279
      %v401 = vsel %vm399, %v400, %v279
      %v402 = vand.u32 %v401, 65535
      %v403 = vshrl.u32 %v401, 16
      %v405 = vmul.u32 %v402, 14564
      %v406 = vmul.u32 %v402, 58254
      %v407 = vmul.u32 %v403, 14564
      %v408 = vmul.u32 %v403, 58254
      %v409 = vshll.u32 %v406, 16
      %v410 = vshrl.u32 %v406, 16
      %v411 = vshll.u32 %v407, 16
      %v412 = vshrl.u32 %v407, 16
      %vm413 = vc.u32 %v405, %v409
      %v414 = vsel %vm413, 1, 0
      %v415 = vadd.s32 %v405, %v409
      %v416 = vadd.s32 %v408, %v414
      %vm417 = vc.u32 %v415, %v411
      %v418 = vsel %vm417, 1, 0
      %v419 = vadd.s32 %v415, %v411
      %v420 = vadd.s32 %v416, %v418
      %v421 = vadd.s32 %v420, %v410
      %v422 = vadd.s32 %v421, %v412
      %v423 = vshrl.u32 %v422, 4
      %v424 = vmul.u32 %v423, 18
      %v425 = vsub.s32 %v401, %v424
      %v426 = vsub.s32 0, %v425
      %v427 = vsel %vm399, %v426, %v425
      %vm428 = vcmp.lt.s32.totalorder %v280, 0
      %v429 = vsub.s32 0, %v280
      %v430 = vsel %vm428, %v429, %v280
      %v431 = vand.u32 %v430, 65535
      %v432 = vshrl.u32 %v430, 16
      %v434 = vmul.u32 %v431, 14564
      %v435 = vmul.u32 %v431, 58254
      %v436 = vmul.u32 %v432, 14564
      %v437 = vmul.u32 %v432, 58254
      %v438 = vshll.u32 %v435, 16
      %v439 = vshrl.u32 %v435, 16
      %v440 = vshll.u32 %v436, 16
      %v441 = vshrl.u32 %v436, 16
      %vm442 = vc.u32 %v434, %v438
      %v443 = vsel %vm442, 1, 0
      %v444 = vadd.s32 %v434, %v438
      %v445 = vadd.s32 %v437, %v443
      %vm446 = vc.u32 %v444, %v440
      %v447 = vsel %vm446, 1, 0
      %v448 = vadd.s32 %v444, %v440
      %v449 = vadd.s32 %v445, %v447
      %v450 = vadd.s32 %v449, %v439
      %v451 = vadd.s32 %v450, %v441
      %v452 = vshrl.u32 %v451, 4
      %v453 = vmul.u32 %v452, 18
      %v454 = vsub.s32 %v430, %v453
      %v455 = vsub.s32 0, %v454
      %v456 = vsel %vm428, %v455, %v454
      %vm457 = vcmp.lt.s32.totalorder %v281, 0
      %v458 = vsub.s32 0, %v281
      %v459 = vsel %vm457, %v458, %v281
      %v460 = vand.u32 %v459, 65535
      %v461 = vshrl.u32 %v459, 16
      %v463 = vmul.u32 %v460, 14564
      %v464 = vmul.u32 %v460, 58254
      %v465 = vmul.u32 %v461, 14564
      %v466 = vmul.u32 %v461, 58254
      %v467 = vshll.u32 %v464, 16
      %v468 = vshrl.u32 %v464, 16
      %v469 = vshll.u32 %v465, 16
      %v470 = vshrl.u32 %v465, 16
      %vm471 = vc.u32 %v463, %v467
      %v472 = vsel %vm471, 1, 0
      %v473 = vadd.s32 %v463, %v467
      %v474 = vadd.s32 %v466, %v472
      %vm475 = vc.u32 %v473, %v469
      %v476 = vsel %vm475, 1, 0
      %v477 = vadd.s32 %v473, %v469
      %v478 = vadd.s32 %v474, %v476
      %v479 = vadd.s32 %v478, %v468
      %v480 = vadd.s32 %v479, %v470
      %v481 = vshrl.u32 %v480, 4
      %v482 = vmul.u32 %v481, 18
      %v483 = vsub.s32 %v459, %v482
      %v484 = vsub.s32 0, %v483
      %v485 = vsel %vm457, %v484, %v483
      %vm486 = vcmp.lt.s32.totalorder %v282, 0
      %v487 = vsub.s32 0, %v282
      %v488 = vsel %vm486, %v487, %v282
      %v489 = vand.u32 %v488, 65535
      %v490 = vshrl.u32 %v488, 16
      %v492 = vmul.u32 %v489, 14564
      %v493 = vmul.u32 %v489, 58254
      %v494 = vmul.u32 %v490, 14564
      %v495 = vmul.u32 %v490, 58254
      %v496 = vshll.u32 %v493, 16
      %v497 = vshrl.u32 %v493, 16
      %v498 = vshll.u32 %v494, 16
      %v499 = vshrl.u32 %v494, 16
      %vm500 = vc.u32 %v492, %v496
      %v501 = vsel %vm500, 1, 0
      %v502 = vadd.s32 %v492, %v496
      %v503 = vadd.s32 %v495, %v501
      %vm504 = vc.u32 %v502, %v498
      %v505 = vsel %vm504, 1, 0
      %v506 = vadd.s32 %v502, %v498
      %v507 = vadd.s32 %v503, %v505
      %v508 = vadd.s32 %v507, %v497
      %v509 = vadd.s32 %v508, %v499
      %v510 = vshrl.u32 %v509, 4
      %v511 = vmul.u32 %v510, 18
      %v512 = vsub.s32 %v488, %v511
      %v513 = vsub.s32 0, %v512
      %v514 = vsel %vm486, %v513, %v512
      %vm515 = vcmp.lt.s32.totalorder %v283, 0
      %v516 = vsub.s32 0, %v283
      %v517 = vsel %vm515, %v516, %v283
      %v518 = vand.u32 %v517, 65535
      %v519 = vshrl.u32 %v517, 16
      %v521 = vmul.u32 %v518, 14564
      %v522 = vmul.u32 %v518, 58254
      %v523 = vmul.u32 %v519, 14564
      %v524 = vmul.u32 %v519, 58254
      %v525 = vshll.u32 %v522, 16
      %v526 = vshrl.u32 %v522, 16
      %v527 = vshll.u32 %v523, 16
      %v528 = vshrl.u32 %v523, 16
      %vm529 = vc.u32 %v521, %v525
      %v530 = vsel %vm529, 1, 0
      %v531 = vadd.s32 %v521, %v525
      %v532 = vadd.s32 %v524, %v530
      %vm533 = vc.u32 %v531, %v527
      %v534 = vsel %vm533, 1, 0
      %v535 = vadd.s32 %v531, %v527
      %v536 = vadd.s32 %v532, %v534
      %v537 = vadd.s32 %v536, %v526
      %v538 = vadd.s32 %v537, %v528
      %v539 = vshrl.u32 %v538, 4
      %v540 = vmul.u32 %v539, 18
      %v541 = vsub.s32 %v517, %v540
      %v542 = vsub.s32 0, %v541
      %v543 = vsel %vm515, %v542, %v541
      %vm544 = vcmp.lt.s32.totalorder %v284, 0
      %v545 = vsub.s32 0, %v284
      %v546 = vsel %vm544, %v545, %v284
      %v547 = vand.u32 %v546, 65535
      %v548 = vshrl.u32 %v546, 16
      %v550 = vmul.u32 %v547, 14564
      %v551 = vmul.u32 %v547, 58254
      %v552 = vmul.u32 %v548, 14564
      %v553 = vmul.u32 %v548, 58254
      %v554 = vshll.u32 %v551, 16
      %v555 = vshrl.u32 %v551, 16
      %v556 = vshll.u32 %v552, 16
      %v557 = vshrl.u32 %v552, 16
      %vm558 = vc.u32 %v550, %v554
      %v559 = vsel %vm558, 1, 0
      %v560 = vadd.s32 %v550, %v554
      %v561 = vadd.s32 %v553, %v559
      %vm562 = vc.u32 %v560, %v556
      %v563 = vsel %vm562, 1, 0
      %v564 = vadd.s32 %v560, %v556
      %v565 = vadd.s32 %v561, %v563
      %v566 = vadd.s32 %v565, %v555
      %v567 = vadd.s32 %v566, %v557
      %v568 = vshrl.u32 %v567, 4
      %v569 = vmul.u32 %v568, 18
      %v570 = vsub.s32 %v546, %v569
      %v571 = vsub.s32 0, %v570
      %v572 = vsel %vm544, %v571, %v570
      %vm573 = vcmp.lt.s32.totalorder %v285, 0
      %v574 = vsub.s32 0, %v285
      %v575 = vsel %vm573, %v574, %v285
      %v576 = vand.u32 %v575, 65535
      %v577 = vshrl.u32 %v575, 16
      %v579 = vmul.u32 %v576, 14564
      %v580 = vmul.u32 %v576, 58254
      %v581 = vmul.u32 %v577, 14564
      %v582 = vmul.u32 %v577, 58254
      %v583 = vshll.u32 %v580, 16
      %v584 = vshrl.u32 %v580, 16
      %v585 = vshll.u32 %v581, 16
      %v586 = vshrl.u32 %v581, 16
      %vm587 = vc.u32 %v579, %v583
      %v588 = vsel %vm587, 1, 0
      %v589 = vadd.s32 %v579, %v583
      %v590 = vadd.s32 %v582, %v588
      %vm591 = vc.u32 %v589, %v585
      %v592 = vsel %vm591, 1, 0
      %v593 = vadd.s32 %v589, %v585
      %v594 = vadd.s32 %v590, %v592
      %v595 = vadd.s32 %v594, %v584
      %v596 = vadd.s32 %v595, %v586
      %v597 = vshrl.u32 %v596, 4
      %v598 = vmul.u32 %v597, 18
      %v599 = vsub.s32 %v575, %v598
      %v600 = vsub.s32 0, %v599
      %v601 = vsel %vm573, %v600, %v599
      %vm602 = vcmp.lt.s32.totalorder %v286, 0
      %v603 = vsub.s32 0, %v286
      %v604 = vsel %vm602, %v603, %v286
      %v605 = vand.u32 %v604, 65535
      %v606 = vshrl.u32 %v604, 16
      %v608 = vmul.u32 %v605, 14564
      %v609 = vmul.u32 %v605, 58254
      %v610 = vmul.u32 %v606, 14564
      %v611 = vmul.u32 %v606, 58254
      %v612 = vshll.u32 %v609, 16
      %v613 = vshrl.u32 %v609, 16
      %v614 = vshll.u32 %v610, 16
      %v615 = vshrl.u32 %v610, 16
      %vm616 = vc.u32 %v608, %v612
      %v617 = vsel %vm616, 1, 0
      %v618 = vadd.s32 %v608, %v612
      %v619 = vadd.s32 %v611, %v617
      %vm620 = vc.u32 %v618, %v614
      %v621 = vsel %vm620, 1, 0
      %v622 = vadd.s32 %v618, %v614
      %v623 = vadd.s32 %v619, %v621
      %v624 = vadd.s32 %v623, %v613
      %v625 = vadd.s32 %v624, %v615
      %v626 = vshrl.u32 %v625, 4
      %v627 = vmul.u32 %v626, 18
      %v628 = vsub.s32 %v604, %v627
      %v629 = vsub.s32 0, %v628
      %v630 = vsel %vm602, %v629, %v628
      %vm631 = vcmp.lt.s32.totalorder %v287, 0
      %v632 = vsub.s32 0, %v287
      %v633 = vsel %vm631, %v632, %v287
      %v634 = vand.u32 %v633, 65535
      %v635 = vshrl.u32 %v633, 16
      %v637 = vmul.u32 %v634, 14564
      %v638 = vmul.u32 %v634, 58254
      %v639 = vmul.u32 %v635, 14564
      %v640 = vmul.u32 %v635, 58254
      %v641 = vshll.u32 %v638, 16
      %v642 = vshrl.u32 %v638, 16
      %v643 = vshll.u32 %v639, 16
      %v644 = vshrl.u32 %v639, 16
      %vm645 = vc.u32 %v637, %v641
      %v646 = vsel %vm645, 1, 0
      %v647 = vadd.s32 %v637, %v641
      %v648 = vadd.s32 %v640, %v646
      %vm649 = vc.u32 %v647, %v643
      %v650 = vsel %vm649, 1, 0
      %v651 = vadd.s32 %v647, %v643
      %v652 = vadd.s32 %v648, %v650
      %v653 = vadd.s32 %v652, %v642
      %v654 = vadd.s32 %v653, %v644
      %v655 = vshrl.u32 %v654, 4
      %v656 = vmul.u32 %v655, 18
      %v657 = vsub.s32 %v633, %v656
      %v658 = vsub.s32 0, %v657
      %v659 = vsel %vm631, %v658, %v657
      %vm660 = vcmp.lt.s32.totalorder %v288, 0
      %v661 = vsub.s32 0, %v288
      %v662 = vsel %vm660, %v661, %v288
      %v663 = vand.u32 %v662, 65535
      %v664 = vshrl.u32 %v662, 16
      %v666 = vmul.u32 %v663, 14564
      %v667 = vmul.u32 %v663, 58254
      %v668 = vmul.u32 %v664, 14564
      %v669 = vmul.u32 %v664, 58254
      %v670 = vshll.u32 %v667, 16
      %v671 = vshrl.u32 %v667, 16
      %v672 = vshll.u32 %v668, 16
      %v673 = vshrl.u32 %v668, 16
      %vm674 = vc.u32 %v666, %v670
      %v675 = vsel %vm674, 1, 0
      %v676 = vadd.s32 %v666, %v670
      %v677 = vadd.s32 %v669, %v675
      %vm678 = vc.u32 %v676, %v672
      %v679 = vsel %vm678, 1, 0
      %v680 = vadd.s32 %v676, %v672
      %v681 = vadd.s32 %v677, %v679
      %v682 = vadd.s32 %v681, %v671
      %v683 = vadd.s32 %v682, %v673
      %v684 = vshrl.u32 %v683, 4
      %v685 = vmul.u32 %v684, 18
      %v686 = vsub.s32 %v662, %v685
      %v687 = vsub.s32 0, %v686
      %v688 = vsel %vm660, %v687, %v686
      %vm689 = vcmp.lt.s32.totalorder %v289, 0
      %v690 = vsub.s32 0, %v289
      %v691 = vsel %vm689, %v690, %v289
      %v692 = vand.u32 %v691, 65535
      %v693 = vshrl.u32 %v691, 16
      %v695 = vmul.u32 %v692, 14564
      %v696 = vmul.u32 %v692, 58254
      %v697 = vmul.u32 %v693, 14564
      %v698 = vmul.u32 %v693, 58254
      %v699 = vshll.u32 %v696, 16
      %v700 = vshrl.u32 %v696, 16
      %v701 = vshll.u32 %v697, 16
      %v702 = vshrl.u32 %v697, 16
      %vm703 = vc.u32 %v695, %v699
      %v704 = vsel %vm703, 1, 0
      %v705 = vadd.s32 %v695, %v699
      %v706 = vadd.s32 %v698, %v704
      %vm707 = vc.u32 %v705, %v701
      %v708 = vsel %vm707, 1, 0
      %v709 = vadd.s32 %v705, %v701
      %v710 = vadd.s32 %v706, %v708
      %v711 = vadd.s32 %v710, %v700
      %v712 = vadd.s32 %v711, %v702
      %v713 = vshrl.u32 %v712, 4
      %v714 = vmul.u32 %v713, 18
      %v715 = vsub.s32 %v691, %v714
      %v716 = vsub.s32 0, %v715
      %v717 = vsel %vm689, %v716, %v715
      %vm718 = vcmp.lt.s32.totalorder %v290, 0
      %v719 = vsub.s32 0, %v290
      %v720 = vsel %vm718, %v719, %v290
      %v721 = vand.u32 %v720, 65535
      %v722 = vshrl.u32 %v720, 16
      %v724 = vmul.u32 %v721, 14564
      %v725 = vmul.u32 %v721, 58254
      %v726 = vmul.u32 %v722, 14564
      %v727 = vmul.u32 %v722, 58254
      %v728 = vshll.u32 %v725, 16
      %v729 = vshrl.u32 %v725, 16
      %v730 = vshll.u32 %v726, 16
      %v731 = vshrl.u32 %v726, 16
      %vm732 = vc.u32 %v724, %v728
      %v733 = vsel %vm732, 1, 0
      %v734 = vadd.s32 %v724, %v728
      %v735 = vadd.s32 %v727, %v733
      %vm736 = vc.u32 %v734, %v730
      %v737 = vsel %vm736, 1, 0
      %v738 = vadd.s32 %v734, %v730
      %v739 = vadd.s32 %v735, %v737
      %v740 = vadd.s32 %v739, %v729
      %v741 = vadd.s32 %v740, %v731
      %v742 = vshrl.u32 %v741, 4
      %v743 = vmul.u32 %v742, 18
      %v744 = vsub.s32 %v720, %v743
      %v745 = vsub.s32 0, %v744
      %v746 = vsel %vm718, %v745, %v744
      %vm747 = vcmp.lt.s32.totalorder %v291, 0
      %v748 = vsub.s32 0, %v291
      %v749 = vsel %vm747, %v748, %v291
      %v750 = vand.u32 %v749, 65535
      %v751 = vshrl.u32 %v749, 16
      %v753 = vmul.u32 %v750, 14564
      %v754 = vmul.u32 %v750, 58254
      %v755 = vmul.u32 %v751, 14564
      %v756 = vmul.u32 %v751, 58254
      %v757 = vshll.u32 %v754, 16
      %v758 = vshrl.u32 %v754, 16
      %v759 = vshll.u32 %v755, 16
      %v760 = vshrl.u32 %v755, 16
      %vm761 = vc.u32 %v753, %v757
      %v762 = vsel %vm761, 1, 0
      %v763 = vadd.s32 %v753, %v757
      %v764 = vadd.s32 %v756, %v762
      %vm765 = vc.u32 %v763, %v759
      %v766 = vsel %vm765, 1, 0
      %v767 = vadd.s32 %v763, %v759
      %v768 = vadd.s32 %v764, %v766
      %v769 = vadd.s32 %v768, %v758
      %v770 = vadd.s32 %v769, %v760
      %v771 = vshrl.u32 %v770, 4
      %v772 = vmul.u32 %v771, 18
      %v773 = vsub.s32 %v749, %v772
      %v774 = vsub.s32 0, %v773
      %v775 = vsel %vm747, %v774, %v773
      %vm776 = vcmp.lt.s32.totalorder %v292, 0
      %v777 = vsub.s32 0, %v292
      %v778 = vsel %vm776, %v777, %v292
      %v779 = vand.u32 %v778, 65535
      %v780 = vshrl.u32 %v778, 16
      %v782 = vmul.u32 %v779, 14564
      %v783 = vmul.u32 %v779, 58254
      %v784 = vmul.u32 %v780, 14564
      %v785 = vmul.u32 %v780, 58254
      %v786 = vshll.u32 %v783, 16
      %v787 = vshrl.u32 %v783, 16
      %v788 = vshll.u32 %v784, 16
      %v789 = vshrl.u32 %v784, 16
      %vm790 = vc.u32 %v782, %v786
      %v791 = vsel %vm790, 1, 0
      %v792 = vadd.s32 %v782, %v786
      %v793 = vadd.s32 %v785, %v791
      %vm794 = vc.u32 %v792, %v788
      %v795 = vsel %vm794, 1, 0
      %v796 = vadd.s32 %v792, %v788
      %v797 = vadd.s32 %v793, %v795
      %v798 = vadd.s32 %v797, %v787
      %v799 = vadd.s32 %v798, %v789
      %v800 = vshrl.u32 %v799, 4
      %v801 = vmul.u32 %v800, 18
      %v802 = vsub.s32 %v778, %v801
      %v803 = vsub.s32 0, %v802
      %v804 = vsel %vm776, %v803, %v802
      %vm805 = vcmp.lt.s32.totalorder %v293, 0
      %v806 = vsub.s32 0, %v293
      %v807 = vsel %vm805, %v806, %v293
      %v808 = vand.u32 %v807, 65535
      %v809 = vshrl.u32 %v807, 16
      %v811 = vmul.u32 %v808, 14564
      %v812 = vmul.u32 %v808, 58254
      %v813 = vmul.u32 %v809, 14564
      %v814 = vmul.u32 %v809, 58254
      %v815 = vshll.u32 %v812, 16
      %v816 = vshrl.u32 %v812, 16
      %v817 = vshll.u32 %v813, 16
      %v818 = vshrl.u32 %v813, 16
      %vm819 = vc.u32 %v811, %v815
      %v820 = vsel %vm819, 1, 0
      %v821 = vadd.s32 %v811, %v815
      %v822 = vadd.s32 %v814, %v820
      %vm823 = vc.u32 %v821, %v817
      %v824 = vsel %vm823, 1, 0
      %v825 = vadd.s32 %v821, %v817
      %v826 = vadd.s32 %v822, %v824
      %v827 = vadd.s32 %v826, %v816
      %v828 = vadd.s32 %v827, %v818
      %v829 = vshrl.u32 %v828, 4
      %v830 = vmul.u32 %v829, 18
      %v831 = vsub.s32 %v807, %v830
      %v832 = vsub.s32 0, %v831
      %v833 = vsel %vm805, %v832, %v831
      %vm834 = vcmp.lt.s32.totalorder %v294, 0
      %v835 = vsub.s32 0, %v294
      %v836 = vsel %vm834, %v835, %v294
      %v837 = vand.u32 %v836, 65535
      %v838 = vshrl.u32 %v836, 16
      %v840 = vmul.u32 %v837, 14564
      %v841 = vmul.u32 %v837, 58254
      %v842 = vmul.u32 %v838, 14564
      %v843 = vmul.u32 %v838, 58254
      %v844 = vshll.u32 %v841, 16
      %v845 = vshrl.u32 %v841, 16
      %v846 = vshll.u32 %v842, 16
      %v847 = vshrl.u32 %v842, 16
      %vm848 = vc.u32 %v840, %v844
      %v849 = vsel %vm848, 1, 0
      %v850 = vadd.s32 %v840, %v844
      %v851 = vadd.s32 %v843, %v849
      %vm852 = vc.u32 %v850, %v846
      %v853 = vsel %vm852, 1, 0
      %v854 = vadd.s32 %v850, %v846
      %v855 = vadd.s32 %v851, %v853
      %v856 = vadd.s32 %v855, %v845
      %v857 = vadd.s32 %v856, %v847
      %v858 = vshrl.u32 %v857, 4
      %v859 = vmul.u32 %v858, 18
      %v860 = vsub.s32 %v836, %v859
      %v861 = vsub.s32 0, %v860
      %v862 = vsel %vm834, %v861, %v860
      %vm863 = vcmp.lt.s32.totalorder %v295, 0
      %v864 = vsub.s32 0, %v295
      %v865 = vsel %vm863, %v864, %v295
      %v866 = vand.u32 %v865, 65535
      %v867 = vshrl.u32 %v865, 16
      %v869 = vmul.u32 %v866, 14564
      %v870 = vmul.u32 %v866, 58254
      %v871 = vmul.u32 %v867, 14564
      %v872 = vmul.u32 %v867, 58254
      %v873 = vshll.u32 %v870, 16
      %v874 = vshrl.u32 %v870, 16
      %v875 = vshll.u32 %v871, 16
      %v876 = vshrl.u32 %v871, 16
      %vm877 = vc.u32 %v869, %v873
      %v878 = vsel %vm877, 1, 0
      %v879 = vadd.s32 %v869, %v873
      %v880 = vadd.s32 %v872, %v878
      %vm881 = vc.u32 %v879, %v875
      %v882 = vsel %vm881, 1, 0
      %v883 = vadd.s32 %v879, %v875
      %v884 = vadd.s32 %v880, %v882
      %v885 = vadd.s32 %v884, %v874
      %v886 = vadd.s32 %v885, %v876
      %v887 = vshrl.u32 %v886, 4
      %v888 = vmul.u32 %v887, 18
      %v889 = vsub.s32 %v865, %v888
      %v890 = vsub.s32 0, %v889
      %v891 = vsel %vm863, %v890, %v889
      %vm892 = vcmp.lt.s32.totalorder %v296, 0
      %v893 = vsub.s32 0, %v296
      %v894 = vsel %vm892, %v893, %v296
      %v895 = vand.u32 %v894, 65535
      %v896 = vshrl.u32 %v894, 16
      %v898 = vmul.u32 %v895, 14564
      %v899 = vmul.u32 %v895, 58254
      %v900 = vmul.u32 %v896, 14564
      %v901 = vmul.u32 %v896, 58254
      %v902 = vshll.u32 %v899, 16
      %v903 = vshrl.u32 %v899, 16
      %v904 = vshll.u32 %v900, 16
      %v905 = vshrl.u32 %v900, 16
      %vm906 = vc.u32 %v898, %v902
      %v907 = vsel %vm906, 1, 0
      %v908 = vadd.s32 %v898, %v902
      %v909 = vadd.s32 %v901, %v907
      %vm910 = vc.u32 %v908, %v904
      %v911 = vsel %vm910, 1, 0
      %v912 = vadd.s32 %v908, %v904
      %v913 = vadd.s32 %v909, %v911
      %v914 = vadd.s32 %v913, %v903
      %v915 = vadd.s32 %v914, %v905
      %v916 = vshrl.u32 %v915, 4
      %v917 = vmul.u32 %v916, 18
      %v918 = vsub.s32 %v894, %v917
      %v919 = vsub.s32 0, %v918
      %v920 = vsel %vm892, %v919, %v918
      %vm921 = vcmp.lt.s32.totalorder %v297, 0
      %v922 = vsub.s32 0, %v297
      %v923 = vsel %vm921, %v922, %v297
      %v924 = vand.u32 %v923, 65535
      %v925 = vshrl.u32 %v923, 16
      %v927 = vmul.u32 %v924, 14564
      %v928 = vmul.u32 %v924, 58254
      %v929 = vmul.u32 %v925, 14564
      %v930 = vmul.u32 %v925, 58254
      %v931 = vshll.u32 %v928, 16
      %v932 = vshrl.u32 %v928, 16
      %v933 = vshll.u32 %v929, 16
      %v934 = vshrl.u32 %v929, 16
      %vm935 = vc.u32 %v927, %v931
      %v936 = vsel %vm935, 1, 0
      %v937 = vadd.s32 %v927, %v931
      %v938 = vadd.s32 %v930, %v936
      %vm939 = vc.u32 %v937, %v933
      %v940 = vsel %vm939, 1, 0
      %v941 = vadd.s32 %v937, %v933
      %v942 = vadd.s32 %v938, %v940
      %v943 = vadd.s32 %v942, %v932
      %v944 = vadd.s32 %v943, %v934
      %v945 = vshrl.u32 %v944, 4
      %v946 = vmul.u32 %v945, 18
      %v947 = vsub.s32 %v923, %v946
      %v948 = vsub.s32 0, %v947
      %v949 = vsel %vm921, %v948, %v947
      %vm950 = vcmp.lt.s32.totalorder %v298, 0
      %v951 = vsub.s32 0, %v298
      %v952 = vsel %vm950, %v951, %v298
      %v953 = vand.u32 %v952, 65535
      %v954 = vshrl.u32 %v952, 16
      %v956 = vmul.u32 %v953, 14564
      %v957 = vmul.u32 %v953, 58254
      %v958 = vmul.u32 %v954, 14564
      %v959 = vmul.u32 %v954, 58254
      %v960 = vshll.u32 %v957, 16
      %v961 = vshrl.u32 %v957, 16
      %v962 = vshll.u32 %v958, 16
      %v963 = vshrl.u32 %v958, 16
      %vm964 = vc.u32 %v956, %v960
      %v965 = vsel %vm964, 1, 0
      %v966 = vadd.s32 %v956, %v960
      %v967 = vadd.s32 %v959, %v965
      %vm968 = vc.u32 %v966, %v962
      %v969 = vsel %vm968, 1, 0
      %v970 = vadd.s32 %v966, %v962
      %v971 = vadd.s32 %v967, %v969
      %v972 = vadd.s32 %v971, %v961
      %v973 = vadd.s32 %v972, %v963
      %v974 = vshrl.u32 %v973, 4
      %v975 = vmul.u32 %v974, 18
      %v976 = vsub.s32 %v952, %v975
      %v977 = vsub.s32 0, %v976
      %v978 = vsel %vm950, %v977, %v976
      %vm979 = vcmp.lt.s32.totalorder %v299, 0
      %v980 = vsub.s32 0, %v299
      %v981 = vsel %vm979, %v980, %v299
      %v982 = vand.u32 %v981, 65535
      %v983 = vshrl.u32 %v981, 16
      %v985 = vmul.u32 %v982, 14564
      %v986 = vmul.u32 %v982, 58254
      %v987 = vmul.u32 %v983, 14564
      %v988 = vmul.u32 %v983, 58254
      %v989 = vshll.u32 %v986, 16
      %v990 = vshrl.u32 %v986, 16
      %v991 = vshll.u32 %v987, 16
      %v992 = vshrl.u32 %v987, 16
      %vm993 = vc.u32 %v985, %v989
      %v994 = vsel %vm993, 1, 0
      %v995 = vadd.s32 %v985, %v989
      %v996 = vadd.s32 %v988, %v994
      %vm997 = vc.u32 %v995, %v991
      %v998 = vsel %vm997, 1, 0
      %v999 = vadd.s32 %v995, %v991
      %v1000 = vadd.s32 %v996, %v998
      %v1001 = vadd.s32 %v1000, %v990
      %v1002 = vadd.s32 %v1001, %v992
      %v1003 = vshrl.u32 %v1002, 4
      %v1004 = vmul.u32 %v1003, 18
      %v1005 = vsub.s32 %v981, %v1004
      %v1006 = vsub.s32 0, %v1005
      %v1007 = vsel %vm979, %v1006, %v1005
      %vm1008 = vcmp.lt.s32.totalorder %v300, 0
      %v1009 = vsub.s32 0, %v300
      %v1010 = vsel %vm1008, %v1009, %v300
      %v1011 = vand.u32 %v1010, 65535
      %v1012 = vshrl.u32 %v1010, 16
      %v1014 = vmul.u32 %v1011, 14564
      %v1015 = vmul.u32 %v1011, 58254
      %v1016 = vmul.u32 %v1012, 14564
      %v1017 = vmul.u32 %v1012, 58254
      %v1018 = vshll.u32 %v1015, 16
      %v1019 = vshrl.u32 %v1015, 16
      %v1020 = vshll.u32 %v1016, 16
      %v1021 = vshrl.u32 %v1016, 16
      %vm1022 = vc.u32 %v1014, %v1018
      %v1023 = vsel %vm1022, 1, 0
      %v1024 = vadd.s32 %v1014, %v1018
      %v1025 = vadd.s32 %v1017, %v1023
      %vm1026 = vc.u32 %v1024, %v1020
      %v1027 = vsel %vm1026, 1, 0
      %v1028 = vadd.s32 %v1024, %v1020
      %v1029 = vadd.s32 %v1025, %v1027
      %v1030 = vadd.s32 %v1029, %v1019
      %v1031 = vadd.s32 %v1030, %v1021
      %v1032 = vshrl.u32 %v1031, 4
      %v1033 = vmul.u32 %v1032, 18
      %v1034 = vsub.s32 %v1010, %v1033
      %v1035 = vsub.s32 0, %v1034
      %v1036 = vsel %vm1008, %v1035, %v1034
      %vm1037 = vcmp.lt.s32.totalorder %v301, 0
      %v1038 = vsub.s32 0, %v301
      %v1039 = vsel %vm1037, %v1038, %v301
      %v1040 = vand.u32 %v1039, 65535
      %v1041 = vshrl.u32 %v1039, 16
      %v1043 = vmul.u32 %v1040, 14564
      %v1044 = vmul.u32 %v1040, 58254
      %v1045 = vmul.u32 %v1041, 14564
      %v1046 = vmul.u32 %v1041, 58254
      %v1047 = vshll.u32 %v1044, 16
      %v1048 = vshrl.u32 %v1044, 16
      %v1049 = vshll.u32 %v1045, 16
      %v1050 = vshrl.u32 %v1045, 16
      %vm1051 = vc.u32 %v1043, %v1047
      %v1052 = vsel %vm1051, 1, 0
      %v1053 = vadd.s32 %v1043, %v1047
      %v1054 = vadd.s32 %v1046, %v1052
      %vm1055 = vc.u32 %v1053, %v1049
      %v1056 = vsel %vm1055, 1, 0
      %v1057 = vadd.s32 %v1053, %v1049
      %v1058 = vadd.s32 %v1054, %v1056
      %v1059 = vadd.s32 %v1058, %v1048
      %v1060 = vadd.s32 %v1059, %v1050
      %v1061 = vshrl.u32 %v1060, 4
      %v1062 = vmul.u32 %v1061, 18
      %v1063 = vsub.s32 %v1039, %v1062
      %v1064 = vsub.s32 0, %v1063
      %v1065 = vsel %vm1037, %v1064, %v1063
      %vm1066 = vcmp.lt.s32.totalorder %v302, 0
      %v1067 = vsub.s32 0, %v302
      %v1068 = vsel %vm1066, %v1067, %v302
      %v1069 = vand.u32 %v1068, 65535
      %v1070 = vshrl.u32 %v1068, 16
      %v1072 = vmul.u32 %v1069, 14564
      %v1073 = vmul.u32 %v1069, 58254
      %v1074 = vmul.u32 %v1070, 14564
      %v1075 = vmul.u32 %v1070, 58254
      %v1076 = vshll.u32 %v1073, 16
      %v1077 = vshrl.u32 %v1073, 16
      %v1078 = vshll.u32 %v1074, 16
      %v1079 = vshrl.u32 %v1074, 16
      %vm1080 = vc.u32 %v1072, %v1076
      %v1081 = vsel %vm1080, 1, 0
      %v1082 = vadd.s32 %v1072, %v1076
      %v1083 = vadd.s32 %v1075, %v1081
      %vm1084 = vc.u32 %v1082, %v1078
      %v1085 = vsel %vm1084, 1, 0
      %v1086 = vadd.s32 %v1082, %v1078
      %v1087 = vadd.s32 %v1083, %v1085
      %v1088 = vadd.s32 %v1087, %v1077
      %v1089 = vadd.s32 %v1088, %v1079
      %v1090 = vshrl.u32 %v1089, 4
      %v1091 = vmul.u32 %v1090, 18
      %v1092 = vsub.s32 %v1068, %v1091
      %v1093 = vsub.s32 0, %v1092
      %v1094 = vsel %vm1066, %v1093, %v1092
      %vm1095 = vcmp.lt.s32.totalorder %v303, 0
      %v1096 = vsub.s32 0, %v303
      %v1097 = vsel %vm1095, %v1096, %v303
      %v1098 = vand.u32 %v1097, 65535
      %v1099 = vshrl.u32 %v1097, 16
      %v1101 = vmul.u32 %v1098, 14564
      %v1102 = vmul.u32 %v1098, 58254
      %v1103 = vmul.u32 %v1099, 14564
      %v1104 = vmul.u32 %v1099, 58254
      %v1105 = vshll.u32 %v1102, 16
      %v1106 = vshrl.u32 %v1102, 16
      %v1107 = vshll.u32 %v1103, 16
      %v1108 = vshrl.u32 %v1103, 16
      %vm1109 = vc.u32 %v1101, %v1105
      %v1110 = vsel %vm1109, 1, 0
      %v1111 = vadd.s32 %v1101, %v1105
      %v1112 = vadd.s32 %v1104, %v1110
      %vm1113 = vc.u32 %v1111, %v1107
      %v1114 = vsel %vm1113, 1, 0
      %v1115 = vadd.s32 %v1111, %v1107
      %v1116 = vadd.s32 %v1112, %v1114
      %v1117 = vadd.s32 %v1116, %v1106
      %v1118 = vadd.s32 %v1117, %v1108
      %v1119 = vshrl.u32 %v1118, 4
      %v1120 = vmul.u32 %v1119, 18
      %v1121 = vsub.s32 %v1097, %v1120
      %v1122 = vsub.s32 0, %v1121
      %v1123 = vsel %vm1095, %v1122, %v1121
      %vm1124 = vcmp.lt.s32.totalorder %v304, 0
      %v1125 = vsub.s32 0, %v304
      %v1126 = vsel %vm1124, %v1125, %v304
      %v1127 = vand.u32 %v1126, 65535
      %v1128 = vshrl.u32 %v1126, 16
      %v1130 = vmul.u32 %v1127, 14564
      %v1131 = vmul.u32 %v1127, 58254
      %v1132 = vmul.u32 %v1128, 14564
      %v1133 = vmul.u32 %v1128, 58254
      %v1134 = vshll.u32 %v1131, 16
      %v1135 = vshrl.u32 %v1131, 16
      %v1136 = vshll.u32 %v1132, 16
      %v1137 = vshrl.u32 %v1132, 16
      %vm1138 = vc.u32 %v1130, %v1134
      %v1139 = vsel %vm1138, 1, 0
      %v1140 = vadd.s32 %v1130, %v1134
      %v1141 = vadd.s32 %v1133, %v1139
      %vm1142 = vc.u32 %v1140, %v1136
      %v1143 = vsel %vm1142, 1, 0
      %v1144 = vadd.s32 %v1140, %v1136
      %v1145 = vadd.s32 %v1141, %v1143
      %v1146 = vadd.s32 %v1145, %v1135
      %v1147 = vadd.s32 %v1146, %v1137
      %v1148 = vshrl.u32 %v1147, 4
      %v1149 = vmul.u32 %v1148, 18
      %v1150 = vsub.s32 %v1126, %v1149
      %v1151 = vsub.s32 0, %v1150
      %v1152 = vsel %vm1124, %v1151, %v1150
      %vm1153 = vcmp.lt.s32.totalorder %v305, 0
      %v1154 = vsub.s32 0, %v305
      %v1155 = vsel %vm1153, %v1154, %v305
      %v1156 = vand.u32 %v1155, 65535
      %v1157 = vshrl.u32 %v1155, 16
      %v1159 = vmul.u32 %v1156, 14564
      %v1160 = vmul.u32 %v1156, 58254
      %v1161 = vmul.u32 %v1157, 14564
      %v1162 = vmul.u32 %v1157, 58254
      %v1163 = vshll.u32 %v1160, 16
      %v1164 = vshrl.u32 %v1160, 16
      %v1165 = vshll.u32 %v1161, 16
      %v1166 = vshrl.u32 %v1161, 16
      %vm1167 = vc.u32 %v1159, %v1163
      %v1168 = vsel %vm1167, 1, 0
      %v1169 = vadd.s32 %v1159, %v1163
      %v1170 = vadd.s32 %v1162, %v1168
      %vm1171 = vc.u32 %v1169, %v1165
      %v1172 = vsel %vm1171, 1, 0
      %v1173 = vadd.s32 %v1169, %v1165
      %v1174 = vadd.s32 %v1170, %v1172
      %v1175 = vadd.s32 %v1174, %v1164
      %v1176 = vadd.s32 %v1175, %v1166
      %v1177 = vshrl.u32 %v1176, 4
      %v1178 = vmul.u32 %v1177, 18
      %v1179 = vsub.s32 %v1155, %v1178
      %v1180 = vsub.s32 0, %v1179
      %v1181 = vsel %vm1153, %v1180, %v1179
      %vm1182 = vcmp.lt.s32.totalorder %v306, 0
      %v1183 = vsub.s32 0, %v306
      %v1184 = vsel %vm1182, %v1183, %v306
      %v1185 = vand.u32 %v1184, 65535
      %v1186 = vshrl.u32 %v1184, 16
      %v1188 = vmul.u32 %v1185, 14564
      %v1189 = vmul.u32 %v1185, 58254
      %v1190 = vmul.u32 %v1186, 14564
      %v1191 = vmul.u32 %v1186, 58254
      %v1192 = vshll.u32 %v1189, 16
      %v1193 = vshrl.u32 %v1189, 16
      %v1194 = vshll.u32 %v1190, 16
      %v1195 = vshrl.u32 %v1190, 16
      %vm1196 = vc.u32 %v1188, %v1192
      %v1197 = vsel %vm1196, 1, 0
      %v1198 = vadd.s32 %v1188, %v1192
      %v1199 = vadd.s32 %v1191, %v1197
      %vm1200 = vc.u32 %v1198, %v1194
      %v1201 = vsel %vm1200, 1, 0
      %v1202 = vadd.s32 %v1198, %v1194
      %v1203 = vadd.s32 %v1199, %v1201
      %v1204 = vadd.s32 %v1203, %v1193
      %v1205 = vadd.s32 %v1204, %v1195
      %v1206 = vshrl.u32 %v1205, 4
      %v1207 = vmul.u32 %v1206, 18
      %v1208 = vsub.s32 %v1184, %v1207
      %v1209 = vsub.s32 0, %v1208
      %v1210 = vsel %vm1182, %v1209, %v1208
      %vm1211 = vcmp.lt.s32.totalorder %v307, 0
      %v1212 = vsub.s32 0, %v307
      %v1213 = vsel %vm1211, %v1212, %v307
      %v1214 = vand.u32 %v1213, 65535
      %v1215 = vshrl.u32 %v1213, 16
      %v1217 = vmul.u32 %v1214, 14564
      %v1218 = vmul.u32 %v1214, 58254
      %v1219 = vmul.u32 %v1215, 14564
      %v1220 = vmul.u32 %v1215, 58254
      %v1221 = vshll.u32 %v1218, 16
      %v1222 = vshrl.u32 %v1218, 16
      %v1223 = vshll.u32 %v1219, 16
      %v1224 = vshrl.u32 %v1219, 16
      %vm1225 = vc.u32 %v1217, %v1221
      %v1226 = vsel %vm1225, 1, 0
      %v1227 = vadd.s32 %v1217, %v1221
      %v1228 = vadd.s32 %v1220, %v1226
      %vm1229 = vc.u32 %v1227, %v1223
      %v1230 = vsel %vm1229, 1, 0
      %v1231 = vadd.s32 %v1227, %v1223
      %v1232 = vadd.s32 %v1228, %v1230
      %v1233 = vadd.s32 %v1232, %v1222
      %v1234 = vadd.s32 %v1233, %v1224
      %v1235 = vshrl.u32 %v1234, 4
      %v1236 = vmul.u32 %v1235, 18
      %v1237 = vsub.s32 %v1213, %v1236
      %v1238 = vsub.s32 0, %v1237
      %v1239 = vsel %vm1211, %v1238, %v1237
      %vm1240 = vcmp.lt.s32.totalorder %v308, 0
      %v1241 = vsub.s32 0, %v308
      %v1242 = vsel %vm1240, %v1241, %v308
      %v1243 = vand.u32 %v1242, 65535
      %v1244 = vshrl.u32 %v1242, 16
      %v1246 = vmul.u32 %v1243, 14564
      %v1247 = vmul.u32 %v1243, 58254
      %v1248 = vmul.u32 %v1244, 14564
      %v1249 = vmul.u32 %v1244, 58254
      %v1250 = vshll.u32 %v1247, 16
      %v1251 = vshrl.u32 %v1247, 16
      %v1252 = vshll.u32 %v1248, 16
      %v1253 = vshrl.u32 %v1248, 16
      %vm1254 = vc.u32 %v1246, %v1250
      %v1255 = vsel %vm1254, 1, 0
      %v1256 = vadd.s32 %v1246, %v1250
      %v1257 = vadd.s32 %v1249, %v1255
      %vm1258 = vc.u32 %v1256, %v1252
      %v1259 = vsel %vm1258, 1, 0
      %v1260 = vadd.s32 %v1256, %v1252
      %v1261 = vadd.s32 %v1257, %v1259
      %v1262 = vadd.s32 %v1261, %v1251
      %v1263 = vadd.s32 %v1262, %v1253
      %v1264 = vshrl.u32 %v1263, 4
      %v1265 = vmul.u32 %v1264, 18
      %v1266 = vsub.s32 %v1242, %v1265
      %v1267 = vsub.s32 0, %v1266
      %v1268 = vsel %vm1240, %v1267, %v1266
      %vm1269 = vcmp.lt.s32.totalorder %v309, 0
      %v1270 = vsub.s32 0, %v309
      %v1271 = vsel %vm1269, %v1270, %v309
      %v1272 = vand.u32 %v1271, 65535
      %v1273 = vshrl.u32 %v1271, 16
      %v1275 = vmul.u32 %v1272, 14564
      %v1276 = vmul.u32 %v1272, 58254
      %v1277 = vmul.u32 %v1273, 14564
      %v1278 = vmul.u32 %v1273, 58254
      %v1279 = vshll.u32 %v1276, 16
      %v1280 = vshrl.u32 %v1276, 16
      %v1281 = vshll.u32 %v1277, 16
      %v1282 = vshrl.u32 %v1277, 16
      %vm1283 = vc.u32 %v1275, %v1279
      %v1284 = vsel %vm1283, 1, 0
      %v1285 = vadd.s32 %v1275, %v1279
      %v1286 = vadd.s32 %v1278, %v1284
      %vm1287 = vc.u32 %v1285, %v1281
      %v1288 = vsel %vm1287, 1, 0
      %v1289 = vadd.s32 %v1285, %v1281
      %v1290 = vadd.s32 %v1286, %v1288
      %v1291 = vadd.s32 %v1290, %v1280
      %v1292 = vadd.s32 %v1291, %v1282
      %v1293 = vshrl.u32 %v1292, 4
      %v1294 = vmul.u32 %v1293, 18
      %v1295 = vsub.s32 %v1271, %v1294
      %v1296 = vsub.s32 0, %v1295
      %v1297 = vsel %vm1269, %v1296, %v1295
      %vm1298 = vcmp.lt.s32.totalorder %v310, 0
      %v1299 = vsub.s32 0, %v310
      %v1300 = vsel %vm1298, %v1299, %v310
      %v1301 = vand.u32 %v1300, 65535
      %v1302 = vshrl.u32 %v1300, 16
      %v1304 = vmul.u32 %v1301, 14564
      %v1305 = vmul.u32 %v1301, 58254
      %v1306 = vmul.u32 %v1302, 14564
      %v1307 = vmul.u32 %v1302, 58254
      %v1308 = vshll.u32 %v1305, 16
      %v1309 = vshrl.u32 %v1305, 16
      %v1310 = vshll.u32 %v1306, 16
      %v1311 = vshrl.u32 %v1306, 16
      %vm1312 = vc.u32 %v1304, %v1308
      %v1313 = vsel %vm1312, 1, 0
      %v1314 = vadd.s32 %v1304, %v1308
      %v1315 = vadd.s32 %v1307, %v1313
      %vm1316 = vc.u32 %v1314, %v1310
      %v1317 = vsel %vm1316, 1, 0
      %v1318 = vadd.s32 %v1314, %v1310
      %v1319 = vadd.s32 %v1315, %v1317
      %v1320 = vadd.s32 %v1319, %v1309
      %v1321 = vadd.s32 %v1320, %v1311
      %v1322 = vshrl.u32 %v1321, 4
      %v1323 = vmul.u32 %v1322, 18
      %v1324 = vsub.s32 %v1300, %v1323
      %v1325 = vsub.s32 0, %v1324
      %v1326 = vsel %vm1298, %v1325, %v1324
      %vm1327 = vcmp.lt.s32.totalorder %v311, 0
      %v1328 = vsub.s32 0, %v311
      %v1329 = vsel %vm1327, %v1328, %v311
      %v1330 = vand.u32 %v1329, 65535
      %v1331 = vshrl.u32 %v1329, 16
      %v1333 = vmul.u32 %v1330, 14564
      %v1334 = vmul.u32 %v1330, 58254
      %v1335 = vmul.u32 %v1331, 14564
      %v1336 = vmul.u32 %v1331, 58254
      %v1337 = vshll.u32 %v1334, 16
      %v1338 = vshrl.u32 %v1334, 16
      %v1339 = vshll.u32 %v1335, 16
      %v1340 = vshrl.u32 %v1335, 16
      %vm1341 = vc.u32 %v1333, %v1337
      %v1342 = vsel %vm1341, 1, 0
      %v1343 = vadd.s32 %v1333, %v1337
      %v1344 = vadd.s32 %v1336, %v1342
      %vm1345 = vc.u32 %v1343, %v1339
      %v1346 = vsel %vm1345, 1, 0
      %v1347 = vadd.s32 %v1343, %v1339
      %v1348 = vadd.s32 %v1344, %v1346
      %v1349 = vadd.s32 %v1348, %v1338
      %v1350 = vadd.s32 %v1349, %v1340
      %v1351 = vshrl.u32 %v1350, 4
      %v1352 = vmul.u32 %v1351, 18
      %v1353 = vsub.s32 %v1329, %v1352
      %v1354 = vsub.s32 0, %v1353
      %v1355 = vsel %vm1327, %v1354, %v1353
      %vm1356 = vcmp.ne.s32.totalorder %v340, 0
      %vm1357 = vcmp.ne.s32.totalorder %v369, 0
      %vm1358 = vcmp.ne.s32.totalorder %v398, 0
      %vm1359 = vcmp.ne.s32.totalorder %v427, 0
      %vm1360 = vcmp.ne.s32.totalorder %v456, 0
      %vm1361 = vcmp.ne.s32.totalorder %v485, 0
      %vm1362 = vcmp.ne.s32.totalorder %v514, 0
      %vm1363 = vcmp.ne.s32.totalorder %v543, 0
      %vm1364 = vcmp.ne.s32.totalorder %v572, 0
      %vm1365 = vcmp.ne.s32.totalorder %v601, 0
      %vm1366 = vcmp.ne.s32.totalorder %v630, 0
      %vm1367 = vcmp.ne.s32.totalorder %v659, 0
      %vm1368 = vcmp.ne.s32.totalorder %v688, 0
      %vm1369 = vcmp.ne.s32.totalorder %v717, 0
      %vm1370 = vcmp.ne.s32.totalorder %v746, 0
      %vm1371 = vcmp.ne.s32.totalorder %v775, 0
      %vm1372 = vcmp.ne.s32.totalorder %v804, 0
      %vm1373 = vcmp.ne.s32.totalorder %v833, 0
      %vm1374 = vcmp.ne.s32.totalorder %v862, 0
      %vm1375 = vcmp.ne.s32.totalorder %v891, 0
      %vm1376 = vcmp.ne.s32.totalorder %v920, 0
      %vm1377 = vcmp.ne.s32.totalorder %v949, 0
      %vm1378 = vcmp.ne.s32.totalorder %v978, 0
      %vm1379 = vcmp.ne.s32.totalorder %v1007, 0
      %vm1380 = vcmp.ne.s32.totalorder %v1036, 0
      %vm1381 = vcmp.ne.s32.totalorder %v1065, 0
      %vm1382 = vcmp.ne.s32.totalorder %v1094, 0
      %vm1383 = vcmp.ne.s32.totalorder %v1123, 0
      %vm1384 = vcmp.ne.s32.totalorder %v1152, 0
      %vm1385 = vcmp.ne.s32.totalorder %v1181, 0
      %vm1386 = vcmp.ne.s32.totalorder %v1210, 0
      %vm1387 = vcmp.ne.s32.totalorder %v1239, 0
      %vm1388 = vcmp.ne.s32.totalorder %v1268, 0
      %vm1389 = vcmp.ne.s32.totalorder %v1297, 0
      %vm1390 = vcmp.ne.s32.totalorder %v1326, 0
      %vm1391 = vcmp.ne.s32.totalorder %v1355, 0
      %vm1392 = vcmp.lt.s32.totalorder %v340, 0
      %vm1393 = vcmp.lt.s32.totalorder %v369, 0
      %vm1394 = vcmp.lt.s32.totalorder %v398, 0
      %vm1395 = vcmp.lt.s32.totalorder %v427, 0
      %vm1396 = vcmp.lt.s32.totalorder %v456, 0
      %vm1397 = vcmp.lt.s32.totalorder %v485, 0
      %vm1398 = vcmp.lt.s32.totalorder %v514, 0
      %vm1399 = vcmp.lt.s32.totalorder %v543, 0
      %vm1400 = vcmp.lt.s32.totalorder %v572, 0
      %vm1401 = vcmp.lt.s32.totalorder %v601, 0
      %vm1402 = vcmp.lt.s32.totalorder %v630, 0
      %vm1403 = vcmp.lt.s32.totalorder %v659, 0
      %vm1404 = vcmp.lt.s32.totalorder %v688, 0
      %vm1405 = vcmp.lt.s32.totalorder %v717, 0
      %vm1406 = vcmp.lt.s32.totalorder %v746, 0
      %vm1407 = vcmp.lt.s32.totalorder %v775, 0
      %vm1408 = vcmp.lt.s32.totalorder %v804, 0
      %vm1409 = vcmp.lt.s32.totalorder %v833, 0
      %vm1410 = vcmp.lt.s32.totalorder %v862, 0
      %vm1411 = vcmp.lt.s32.totalorder %v891, 0
      %vm1412 = vcmp.lt.s32.totalorder %v920, 0
      %vm1413 = vcmp.lt.s32.totalorder %v949, 0
      %vm1414 = vcmp.lt.s32.totalorder %v978, 0
      %vm1415 = vcmp.lt.s32.totalorder %v1007, 0
      %vm1416 = vcmp.lt.s32.totalorder %v1036, 0
      %vm1417 = vcmp.lt.s32.totalorder %v1065, 0
      %vm1418 = vcmp.lt.s32.totalorder %v1094, 0
      %vm1419 = vcmp.lt.s32.totalorder %v1123, 0
      %vm1420 = vcmp.lt.s32.totalorder %v1152, 0
      %vm1421 = vcmp.lt.s32.totalorder %v1181, 0
      %vm1422 = vcmp.lt.s32.totalorder %v1210, 0
      %vm1423 = vcmp.lt.s32.totalorder %v1239, 0
      %vm1424 = vcmp.lt.s32.totalorder %v1268, 0
      %vm1425 = vcmp.lt.s32.totalorder %v1297, 0
      %vm1426 = vcmp.lt.s32.totalorder %v1326, 0
      %vm1427 = vcmp.lt.s32.totalorder %v1355, 0
      %vm1428 = vmand %vm1392, %vm1356
      %vm1429 = vmand %vm1393, %vm1357
      %vm1430 = vmand %vm1394, %vm1358
      %vm1431 = vmand %vm1395, %vm1359
      %vm1432 = vmand %vm1396, %vm1360
      %vm1433 = vmand %vm1397, %vm1361
      %vm1434 = vmand %vm1398, %vm1362
      %vm1435 = vmand %vm1399, %vm1363
      %vm1436 = vmand %vm1400, %vm1364
      %vm1437 = vmand %vm1401, %vm1365
      %vm1438 = vmand %vm1402, %vm1366
      %vm1439 = vmand %vm1403, %vm1367
      %vm1440 = vmand %vm1404, %vm1368
      %vm1441 = vmand %vm1405, %vm1369
      %vm1442 = vmand %vm1406, %vm1370
      %vm1443 = vmand %vm1407, %vm1371
      %vm1444 = vmand %vm1408, %vm1372
      %vm1445 = vmand %vm1409, %vm1373
      %vm1446 = vmand %vm1410, %vm1374
      %vm1447 = vmand %vm1411, %vm1375
      %vm1448 = vmand %vm1412, %vm1376
      %vm1449 = vmand %vm1413, %vm1377
      %vm1450 = vmand %vm1414, %vm1378
      %vm1451 = vmand %vm1415, %vm1379
      %vm1452 = vmand %vm1416, %vm1380
      %vm1453 = vmand %vm1417, %vm1381
      %vm1454 = vmand %vm1418, %vm1382
      %vm1455 = vmand %vm1419, %vm1383
      %vm1456 = vmand %vm1420, %vm1384
      %vm1457 = vmand %vm1421, %vm1385
      %vm1458 = vmand %vm1422, %vm1386
      %vm1459 = vmand %vm1423, %vm1387
      %vm1460 = vmand %vm1424, %vm1388
      %vm1461 = vmand %vm1425, %vm1389
      %vm1462 = vmand %vm1426, %vm1390
      %vm1463 = vmand %vm1427, %vm1391
      %v1464 = vadd.s32 %v340, 18
      %v1465 = vadd.s32 %v369, 18
      %v1466 = vadd.s32 %v398, 18
      %v1467 = vadd.s32 %v427, 18
      %v1468 = vadd.s32 %v456, 18
      %v1469 = vadd.s32 %v485, 18
      %v1470 = vadd.s32 %v514, 18
      %v1471 = vadd.s32 %v543, 18
      %v1472 = vadd.s32 %v572, 18
      %v1473 = vadd.s32 %v601, 18
      %v1474 = vadd.s32 %v630, 18
      %v1475 = vadd.s32 %v659, 18
      %v1476 = vadd.s32 %v688, 18
      %v1477 = vadd.s32 %v717, 18
      %v1478 = vadd.s32 %v746, 18
      %v1479 = vadd.s32 %v775, 18
      %v1480 = vadd.s32 %v804, 18
      %v1481 = vadd.s32 %v833, 18
      %v1482 = vadd.s32 %v862, 18
      %v1483 = vadd.s32 %v891, 18
      %v1484 = vadd.s32 %v920, 18
      %v1485 = vadd.s32 %v949, 18
      %v1486 = vadd.s32 %v978, 18
      %v1487 = vadd.s32 %v1007, 18
      %v1488 = vadd.s32 %v1036, 18
      %v1489 = vadd.s32 %v1065, 18
      %v1490 = vadd.s32 %v1094, 18
      %v1491 = vadd.s32 %v1123, 18
      %v1492 = vadd.s32 %v1152, 18
      %v1493 = vadd.s32 %v1181, 18
      %v1494 = vadd.s32 %v1210, 18
      %v1495 = vadd.s32 %v1239, 18
      %v1496 = vadd.s32 %v1268, 18
      %v1497 = vadd.s32 %v1297, 18
      %v1498 = vadd.s32 %v1326, 18
      %v1499 = vadd.s32 %v1355, 18
      %v1500 = vsel %vm1428, %v1464, %v340
      %v1501 = vsel %vm1429, %v1465, %v369
      %v1502 = vsel %vm1430, %v1466, %v398
      %v1503 = vsel %vm1431, %v1467, %v427
      %v1504 = vsel %vm1432, %v1468, %v456
      %v1505 = vsel %vm1433, %v1469, %v485
      %v1506 = vsel %vm1434, %v1470, %v514
      %v1507 = vsel %vm1435, %v1471, %v543
      %v1508 = vsel %vm1436, %v1472, %v572
      %v1509 = vsel %vm1437, %v1473, %v601
      %v1510 = vsel %vm1438, %v1474, %v630
      %v1511 = vsel %vm1439, %v1475, %v659
      %v1512 = vsel %vm1440, %v1476, %v688
      %v1513 = vsel %vm1441, %v1477, %v717
      %v1514 = vsel %vm1442, %v1478, %v746
      %v1515 = vsel %vm1443, %v1479, %v775
      %v1516 = vsel %vm1444, %v1480, %v804
      %v1517 = vsel %vm1445, %v1481, %v833
      %v1518 = vsel %vm1446, %v1482, %v862
      %v1519 = vsel %vm1447, %v1483, %v891
      %v1520 = vsel %vm1448, %v1484, %v920
      %v1521 = vsel %vm1449, %v1485, %v949
      %v1522 = vsel %vm1450, %v1486, %v978
      %v1523 = vsel %vm1451, %v1487, %v1007
      %v1524 = vsel %vm1452, %v1488, %v1036
      %v1525 = vsel %vm1453, %v1489, %v1065
      %v1526 = vsel %vm1454, %v1490, %v1094
      %v1527 = vsel %vm1455, %v1491, %v1123
      %v1528 = vsel %vm1456, %v1492, %v1152
      %v1529 = vsel %vm1457, %v1493, %v1181
      %v1530 = vsel %vm1458, %v1494, %v1210
      %v1531 = vsel %vm1459, %v1495, %v1239
      %v1532 = vsel %vm1460, %v1496, %v1268
      %v1533 = vsel %vm1461, %v1497, %v1297
      %v1534 = vsel %vm1462, %v1498, %v1326
      %v1535 = vsel %vm1463, %v1499, %v1355
      %v1536 = vld [vmem:[%s257] sm:$0xf]
      %v1537 = vld [vmem:[%s257 + $0x4] sm:$0xf]
      %v1538 = vld [vmem:[%s257 + $0x8] sm:$0xf]
      %v1539 = vld [vmem:[%s257 + $0xc] sm:$0xf]
      %v1540 = vld [vmem:[%s257 + $0x10] sm:$0xf]
      %v1541 = vld [vmem:[%s257 + $0x14] sm:$0xf]
      %v1542 = vld [vmem:[%s257 + $0x18] sm:$0xf]
      %v1543 = vld [vmem:[%s257 + $0x1c] sm:$0xf]
      %v1544 = vld [vmem:[%s257 + $0x20] sm:$0xf]
      %v1545 = vld [vmem:[%s257 + $0x24] sm:$0xf]
      %v1546 = vld [vmem:[%s257 + $0x28] sm:$0xf]
      %v1547 = vld [vmem:[%s257 + $0x2c] sm:$0xf]
      %v1548 = vld [vmem:[%s257 + $0x30] sm:$0xf]
      %v1549 = vld [vmem:[%s257 + $0x34] sm:$0xf]
      %v1550 = vld [vmem:[%s257 + $0x38] sm:$0xf]
      %v1551 = vld [vmem:[%s257 + $0x3c] sm:$0xf]
      %v1552 = vld [vmem:[%s257 + $0x40] sm:$0xf]
      %v1553 = vld [vmem:[%s257 + $0x44] sm:$0xf]
      %v1554 = vld [vmem:[%s257 + $0x48] sm:$0xf]
      %v1555 = vld [vmem:[%s257 + $0x4c] sm:$0xf]
      %v1556 = vld [vmem:[%s257 + $0x50] sm:$0xf]
      %v1557 = vld [vmem:[%s257 + $0x54] sm:$0xf]
      %v1558 = vld [vmem:[%s257 + $0x58] sm:$0xf]
      %v1559 = vld [vmem:[%s257 + $0x5c] sm:$0xf]
      %v1560 = vld [vmem:[%s257 + $0x60] sm:$0xf]
      %v1561 = vld [vmem:[%s257 + $0x64] sm:$0xf]
      %v1562 = vld [vmem:[%s257 + $0x68] sm:$0xf]
      %v1563 = vld [vmem:[%s257 + $0x6c] sm:$0xf]
      %v1564 = vld [vmem:[%s257 + $0x70] sm:$0xf]
      %v1565 = vld [vmem:[%s257 + $0x74] sm:$0xf]
      %v1566 = vld [vmem:[%s257 + $0x78] sm:$0xf]
      %v1567 = vld [vmem:[%s257 + $0x7c] sm:$0xf]
      %v1568 = vld [vmem:[%s257 + $0x80] sm:$0xf]
      %v1569 = vld [vmem:[%s257 + $0x84] sm:$0xf]
      %v1570 = vld [vmem:[%s257 + $0x88] sm:$0xf]
      %v1571 = vld [vmem:[%s257 + $0x8c] sm:$0xf]
      %v1572 = vunpack.c.l.bf16 %v1536
      %v1573 = vunpack.c.l.bf16 %v1537
      %v1574 = vunpack.c.l.bf16 %v1538
      %v1575 = vunpack.c.l.bf16 %v1539
      %v1576 = vunpack.c.l.bf16 %v1540
      %v1577 = vunpack.c.l.bf16 %v1541
      %v1578 = vunpack.c.l.bf16 %v1542
      %v1579 = vunpack.c.l.bf16 %v1543
      %v1580 = vunpack.c.l.bf16 %v1544
      %v1581 = vunpack.c.l.bf16 %v1545
      %v1582 = vunpack.c.l.bf16 %v1546
      %v1583 = vunpack.c.l.bf16 %v1547
      %v1584 = vunpack.c.l.bf16 %v1548
      %v1585 = vunpack.c.l.bf16 %v1549
      %v1586 = vunpack.c.l.bf16 %v1550
      %v1587 = vunpack.c.l.bf16 %v1551
      %v1588 = vunpack.c.l.bf16 %v1552
      %v1589 = vunpack.c.l.bf16 %v1553
      %v1590 = vunpack.c.l.bf16 %v1554
      %v1591 = vunpack.c.l.bf16 %v1555
      %v1592 = vunpack.c.l.bf16 %v1556
      %v1593 = vunpack.c.l.bf16 %v1557
      %v1594 = vunpack.c.l.bf16 %v1558
      %v1595 = vunpack.c.l.bf16 %v1559
      %v1596 = vunpack.c.l.bf16 %v1560
      %v1597 = vunpack.c.l.bf16 %v1561
      %v1598 = vunpack.c.l.bf16 %v1562
      %v1599 = vunpack.c.l.bf16 %v1563
      %v1600 = vunpack.c.l.bf16 %v1564
      %v1601 = vunpack.c.l.bf16 %v1565
      %v1602 = vunpack.c.l.bf16 %v1566
      %v1603 = vunpack.c.l.bf16 %v1567
      %v1604 = vunpack.c.l.bf16 %v1568
      %v1605 = vunpack.c.l.bf16 %v1569
      %v1606 = vunpack.c.l.bf16 %v1570
      %v1607 = vunpack.c.l.bf16 %v1571
      %v1608 = vld [vmem:[%s1] sm:$0x1]
      %v1610 = vperm.slane %v1608, 0
      %v1612 = vmul.f32 %v1572, %v1610
      %v1613 = vmul.f32 %v1573, %v1610
      %v1614 = vmul.f32 %v1574, %v1610
      %v1615 = vmul.f32 %v1575, %v1610
      %v1616 = vmul.f32 %v1576, %v1610
      %v1617 = vmul.f32 %v1577, %v1610
      %v1618 = vmul.f32 %v1578, %v1610
      %v1619 = vmul.f32 %v1579, %v1610
      %v1620 = vmul.f32 %v1580, %v1610
      %v1621 = vmul.f32 %v1581, %v1610
      %v1622 = vmul.f32 %v1582, %v1610
      %v1623 = vmul.f32 %v1583, %v1610
      %v1624 = vmul.f32 %v1584, %v1610
      %v1625 = vmul.f32 %v1585, %v1610
      %v1626 = vmul.f32 %v1586, %v1610
      %v1627 = vmul.f32 %v1587, %v1610
      %v1628 = vmul.f32 %v1588, %v1610
      %v1629 = vmul.f32 %v1589, %v1610
      %v1630 = vmul.f32 %v1590, %v1610
      %v1631 = vmul.f32 %v1591, %v1610
      %v1632 = vmul.f32 %v1592, %v1610
      %v1633 = vmul.f32 %v1593, %v1610
      %v1634 = vmul.f32 %v1594, %v1610
      %v1635 = vmul.f32 %v1595, %v1610
      %v1636 = vmul.f32 %v1596, %v1610
      %v1637 = vmul.f32 %v1597, %v1610
      %v1638 = vmul.f32 %v1598, %v1610
      %v1639 = vmul.f32 %v1599, %v1610
      %v1640 = vmul.f32 %v1600, %v1610
      %v1641 = vmul.f32 %v1601, %v1610
      %v1642 = vmul.f32 %v1602, %v1610
      %v1643 = vmul.f32 %v1603, %v1610
      %v1644 = vmul.f32 %v1604, %v1610
      %v1645 = vmul.f32 %v1605, %v1610
      %v1646 = vmul.f32 %v1606, %v1610
      %v1647 = vmul.f32 %v1607, %v1610
      %v1648 = vld [vmem:[%s2] sm:$0x1]
      %v1650 = vperm.slane %v1648, 0
      %v1652 = vadd.f32 %v1612, %v1650
      %v1653 = vadd.f32 %v1613, %v1650
      %v1654 = vadd.f32 %v1614, %v1650
      %v1655 = vadd.f32 %v1615, %v1650
      %v1656 = vadd.f32 %v1616, %v1650
      %v1657 = vadd.f32 %v1617, %v1650
      %v1658 = vadd.f32 %v1618, %v1650
      %v1659 = vadd.f32 %v1619, %v1650
      %v1660 = vadd.f32 %v1620, %v1650
      %v1661 = vadd.f32 %v1621, %v1650
      %v1662 = vadd.f32 %v1622, %v1650
      %v1663 = vadd.f32 %v1623, %v1650
      %v1664 = vadd.f32 %v1624, %v1650
      %v1665 = vadd.f32 %v1625, %v1650
      %v1666 = vadd.f32 %v1626, %v1650
      %v1667 = vadd.f32 %v1627, %v1650
      %v1668 = vadd.f32 %v1628, %v1650
      %v1669 = vadd.f32 %v1629, %v1650
      %v1670 = vadd.f32 %v1630, %v1650
      %v1671 = vadd.f32 %v1631, %v1650
      %v1672 = vadd.f32 %v1632, %v1650
      %v1673 = vadd.f32 %v1633, %v1650
      %v1674 = vadd.f32 %v1634, %v1650
      %v1675 = vadd.f32 %v1635, %v1650
      %v1676 = vadd.f32 %v1636, %v1650
      %v1677 = vadd.f32 %v1637, %v1650
      %v1678 = vadd.f32 %v1638, %v1650
      %v1679 = vadd.f32 %v1639, %v1650
      %v1680 = vadd.f32 %v1640, %v1650
      %v1681 = vadd.f32 %v1641, %v1650
      %v1682 = vadd.f32 %v1642, %v1650
      %v1683 = vadd.f32 %v1643, %v1650
      %v1684 = vadd.f32 %v1644, %v1650
      %v1685 = vadd.f32 %v1645, %v1650
      %v1686 = vadd.f32 %v1646, %v1650
      %v1687 = vadd.f32 %v1647, %v1650
      %vm1688 = vcmp.gt.f32.partialorder %v1652, 0.0
      %vm1689 = vcmp.gt.f32.partialorder %v1653, 0.0
      %vm1690 = vcmp.gt.f32.partialorder %v1654, 0.0
      %vm1691 = vcmp.gt.f32.partialorder %v1655, 0.0
      %vm1692 = vcmp.gt.f32.partialorder %v1656, 0.0
      %vm1693 = vcmp.gt.f32.partialorder %v1657, 0.0
      %vm1694 = vcmp.gt.f32.partialorder %v1658, 0.0
      %vm1695 = vcmp.gt.f32.partialorder %v1659, 0.0
      %vm1696 = vcmp.gt.f32.partialorder %v1660, 0.0
      %vm1697 = vcmp.gt.f32.partialorder %v1661, 0.0
      %vm1698 = vcmp.gt.f32.partialorder %v1662, 0.0
      %vm1699 = vcmp.gt.f32.partialorder %v1663, 0.0
      %vm1700 = vcmp.gt.f32.partialorder %v1664, 0.0
      %vm1701 = vcmp.gt.f32.partialorder %v1665, 0.0
      %vm1702 = vcmp.gt.f32.partialorder %v1666, 0.0
      %vm1703 = vcmp.gt.f32.partialorder %v1667, 0.0
      %vm1704 = vcmp.gt.f32.partialorder %v1668, 0.0
      %vm1705 = vcmp.gt.f32.partialorder %v1669, 0.0
      %vm1706 = vcmp.gt.f32.partialorder %v1670, 0.0
      %vm1707 = vcmp.gt.f32.partialorder %v1671, 0.0
      %vm1708 = vcmp.gt.f32.partialorder %v1672, 0.0
      %vm1709 = vcmp.gt.f32.partialorder %v1673, 0.0
      %vm1710 = vcmp.gt.f32.partialorder %v1674, 0.0
      %vm1711 = vcmp.gt.f32.partialorder %v1675, 0.0
      %vm1712 = vcmp.gt.f32.partialorder %v1676, 0.0
      %vm1713 = vcmp.gt.f32.partialorder %v1677, 0.0
      %vm1714 = vcmp.gt.f32.partialorder %v1678, 0.0
      %vm1715 = vcmp.gt.f32.partialorder %v1679, 0.0
      %vm1716 = vcmp.gt.f32.partialorder %v1680, 0.0
      %vm1717 = vcmp.gt.f32.partialorder %v1681, 0.0
      %vm1718 = vcmp.gt.f32.partialorder %v1682, 0.0
      %vm1719 = vcmp.gt.f32.partialorder %v1683, 0.0
      %vm1720 = vcmp.gt.f32.partialorder %v1684, 0.0
      %vm1721 = vcmp.gt.f32.partialorder %v1685, 0.0
      %vm1722 = vcmp.gt.f32.partialorder %v1686, 0.0
      %vm1723 = vcmp.gt.f32.partialorder %v1687, 0.0
      %v1724 = vmul.f32 %v1652, 0.01
      %v1725 = vmul.f32 %v1653, 0.01
      %v1726 = vmul.f32 %v1654, 0.01
      %v1727 = vmul.f32 %v1655, 0.01
      %v1728 = vmul.f32 %v1656, 0.01
      %v1729 = vmul.f32 %v1657, 0.01
      %v1730 = vmul.f32 %v1658, 0.01
      %v1731 = vmul.f32 %v1659, 0.01
      %v1732 = vmul.f32 %v1660, 0.01
      %v1733 = vmul.f32 %v1661, 0.01
      %v1734 = vmul.f32 %v1662, 0.01
      %v1735 = vmul.f32 %v1663, 0.01
      %v1736 = vmul.f32 %v1664, 0.01
      %v1737 = vmul.f32 %v1665, 0.01
      %v1738 = vmul.f32 %v1666, 0.01
      %v1739 = vmul.f32 %v1667, 0.01
      %v1740 = vmul.f32 %v1668, 0.01
      %v1741 = vmul.f32 %v1669, 0.01
      %v1742 = vmul.f32 %v1670, 0.01
      %v1743 = vmul.f32 %v1671, 0.01
      %v1744 = vmul.f32 %v1672, 0.01
      %v1745 = vmul.f32 %v1673, 0.01
      %v1746 = vmul.f32 %v1674, 0.01
      %v1747 = vmul.f32 %v1675, 0.01
      %v1748 = vmul.f32 %v1676, 0.01
      %v1749 = vmul.f32 %v1677, 0.01
      %v1750 = vmul.f32 %v1678, 0.01
      %v1751 = vmul.f32 %v1679, 0.01
      %v1752 = vmul.f32 %v1680, 0.01
      %v1753 = vmul.f32 %v1681, 0.01
      %v1754 = vmul.f32 %v1682, 0.01
      %v1755 = vmul.f32 %v1683, 0.01
      %v1756 = vmul.f32 %v1684, 0.01
      %v1757 = vmul.f32 %v1685, 0.01
      %v1758 = vmul.f32 %v1686, 0.01
      %v1759 = vmul.f32 %v1687, 0.01
      %v1760 = vsel %vm1688, %v1652, %v1724
      %v1761 = vsel %vm1689, %v1653, %v1725
      %v1762 = vsel %vm1690, %v1654, %v1726
      %v1763 = vsel %vm1691, %v1655, %v1727
      %v1764 = vsel %vm1692, %v1656, %v1728
      %v1765 = vsel %vm1693, %v1657, %v1729
      %v1766 = vsel %vm1694, %v1658, %v1730
      %v1767 = vsel %vm1695, %v1659, %v1731
      %v1768 = vsel %vm1696, %v1660, %v1732
      %v1769 = vsel %vm1697, %v1661, %v1733
      %v1770 = vsel %vm1698, %v1662, %v1734
      %v1771 = vsel %vm1699, %v1663, %v1735
      %v1772 = vsel %vm1700, %v1664, %v1736
      %v1773 = vsel %vm1701, %v1665, %v1737
      %v1774 = vsel %vm1702, %v1666, %v1738
      %v1775 = vsel %vm1703, %v1667, %v1739
      %v1776 = vsel %vm1704, %v1668, %v1740
      %v1777 = vsel %vm1705, %v1669, %v1741
      %v1778 = vsel %vm1706, %v1670, %v1742
      %v1779 = vsel %vm1707, %v1671, %v1743
      %v1780 = vsel %vm1708, %v1672, %v1744
      %v1781 = vsel %vm1709, %v1673, %v1745
      %v1782 = vsel %vm1710, %v1674, %v1746
      %v1783 = vsel %vm1711, %v1675, %v1747
      %v1784 = vsel %vm1712, %v1676, %v1748
      %v1785 = vsel %vm1713, %v1677, %v1749
      %v1786 = vsel %vm1714, %v1678, %v1750
      %v1787 = vsel %vm1715, %v1679, %v1751
      %v1788 = vsel %vm1716, %v1680, %v1752
      %v1789 = vsel %vm1717, %v1681, %v1753
      %v1790 = vsel %vm1718, %v1682, %v1754
      %v1791 = vsel %vm1719, %v1683, %v1755
      %v1792 = vsel %vm1720, %v1684, %v1756
      %v1793 = vsel %vm1721, %v1685, %v1757
      %v1794 = vsel %vm1722, %v1686, %v1758
      %v1795 = vsel %vm1723, %v1687, %v1759
      %vm1796 = vcmp.lt.s32.totalorder %v1500, 16
      %vm1797 = vcmp.lt.s32.totalorder %v1501, 16
      %vm1798 = vcmp.lt.s32.totalorder %v1502, 16
      %vm1799 = vcmp.lt.s32.totalorder %v1503, 16
      %vm1800 = vcmp.lt.s32.totalorder %v1504, 16
      %vm1801 = vcmp.lt.s32.totalorder %v1505, 16
      %vm1802 = vcmp.lt.s32.totalorder %v1506, 16
      %vm1803 = vcmp.lt.s32.totalorder %v1507, 16
      %vm1804 = vcmp.lt.s32.totalorder %v1508, 16
      %vm1805 = vcmp.lt.s32.totalorder %v1509, 16
      %vm1806 = vcmp.lt.s32.totalorder %v1510, 16
      %vm1807 = vcmp.lt.s32.totalorder %v1511, 16
      %vm1808 = vcmp.lt.s32.totalorder %v1512, 16
      %vm1809 = vcmp.lt.s32.totalorder %v1513, 16
      %vm1810 = vcmp.lt.s32.totalorder %v1514, 16
      %vm1811 = vcmp.lt.s32.totalorder %v1515, 16
      %vm1812 = vcmp.lt.s32.totalorder %v1516, 16
      %vm1813 = vcmp.lt.s32.totalorder %v1517, 16
      %vm1814 = vcmp.lt.s32.totalorder %v1518, 16
      %vm1815 = vcmp.lt.s32.totalorder %v1519, 16
      %vm1816 = vcmp.lt.s32.totalorder %v1520, 16
      %vm1817 = vcmp.lt.s32.totalorder %v1521, 16
      %vm1818 = vcmp.lt.s32.totalorder %v1522, 16
      %vm1819 = vcmp.lt.s32.totalorder %v1523, 16
      %vm1820 = vcmp.lt.s32.totalorder %v1524, 16
      %vm1821 = vcmp.lt.s32.totalorder %v1525, 16
      %vm1822 = vcmp.lt.s32.totalorder %v1526, 16
      %vm1823 = vcmp.lt.s32.totalorder %v1527, 16
      %vm1824 = vcmp.lt.s32.totalorder %v1528, 16
      %vm1825 = vcmp.lt.s32.totalorder %v1529, 16
      %vm1826 = vcmp.lt.s32.totalorder %v1530, 16
      %vm1827 = vcmp.lt.s32.totalorder %v1531, 16
      %vm1828 = vcmp.lt.s32.totalorder %v1532, 16
      %vm1829 = vcmp.lt.s32.totalorder %v1533, 16
      %vm1830 = vcmp.lt.s32.totalorder %v1534, 16
      %vm1831 = vcmp.lt.s32.totalorder %v1535, 16
      %v1832 = vsel %vm1796, 1, 0
      %v1833 = vsel %vm1797, 1, 0
      %v1834 = vsel %vm1798, 1, 0
      %v1835 = vsel %vm1799, 1, 0
      %v1836 = vsel %vm1800, 1, 0
      %v1837 = vsel %vm1801, 1, 0
      %v1838 = vsel %vm1802, 1, 0
      %v1839 = vsel %vm1803, 1, 0
      %v1840 = vsel %vm1804, 1, 0
      %v1841 = vsel %vm1805, 1, 0
      %v1842 = vsel %vm1806, 1, 0
      %v1843 = vsel %vm1807, 1, 0
      %v1844 = vsel %vm1808, 1, 0
      %v1845 = vsel %vm1809, 1, 0
      %v1846 = vsel %vm1810, 1, 0
      %v1847 = vsel %vm1811, 1, 0
      %v1848 = vsel %vm1812, 1, 0
      %v1849 = vsel %vm1813, 1, 0
      %v1850 = vsel %vm1814, 1, 0
      %v1851 = vsel %vm1815, 1, 0
      %v1852 = vsel %vm1816, 1, 0
      %v1853 = vsel %vm1817, 1, 0
      %v1854 = vsel %vm1818, 1, 0
      %v1855 = vsel %vm1819, 1, 0
      %v1856 = vsel %vm1820, 1, 0
      %v1857 = vsel %vm1821, 1, 0
      %v1858 = vsel %vm1822, 1, 0
      %v1859 = vsel %vm1823, 1, 0
      %v1860 = vsel %vm1824, 1, 0
      %v1861 = vsel %vm1825, 1, 0
      %v1862 = vsel %vm1826, 1, 0
      %v1863 = vsel %vm1827, 1, 0
      %v1864 = vsel %vm1828, 1, 0
      %v1865 = vsel %vm1829, 1, 0
      %v1866 = vsel %vm1830, 1, 0
      %v1867 = vsel %vm1831, 1, 0
      %vm1868 = vcmp.eq.s32.totalorder %v1832, 1
      %vm1869 = vcmp.eq.s32.totalorder %v1833, 1
      %vm1870 = vcmp.eq.s32.totalorder %v1834, 1
      %vm1871 = vcmp.eq.s32.totalorder %v1835, 1
      %vm1872 = vcmp.eq.s32.totalorder %v1836, 1
      %vm1873 = vcmp.eq.s32.totalorder %v1837, 1
      %vm1874 = vcmp.eq.s32.totalorder %v1838, 1
      %vm1875 = vcmp.eq.s32.totalorder %v1839, 1
      %vm1876 = vcmp.eq.s32.totalorder %v1840, 1
      %vm1877 = vcmp.eq.s32.totalorder %v1841, 1
      %vm1878 = vcmp.eq.s32.totalorder %v1842, 1
      %vm1879 = vcmp.eq.s32.totalorder %v1843, 1
      %vm1880 = vcmp.eq.s32.totalorder %v1844, 1
      %vm1881 = vcmp.eq.s32.totalorder %v1845, 1
      %vm1882 = vcmp.eq.s32.totalorder %v1846, 1
      %vm1883 = vcmp.eq.s32.totalorder %v1847, 1
      %vm1884 = vcmp.eq.s32.totalorder %v1848, 1
      %vm1885 = vcmp.eq.s32.totalorder %v1849, 1
      %vm1886 = vcmp.eq.s32.totalorder %v1850, 1
      %vm1887 = vcmp.eq.s32.totalorder %v1851, 1
      %vm1888 = vcmp.eq.s32.totalorder %v1852, 1
      %vm1889 = vcmp.eq.s32.totalorder %v1853, 1
      %vm1890 = vcmp.eq.s32.totalorder %v1854, 1
      %vm1891 = vcmp.eq.s32.totalorder %v1855, 1
      %vm1892 = vcmp.eq.s32.totalorder %v1856, 1
      %vm1893 = vcmp.eq.s32.totalorder %v1857, 1
      %vm1894 = vcmp.eq.s32.totalorder %v1858, 1
      %vm1895 = vcmp.eq.s32.totalorder %v1859, 1
      %vm1896 = vcmp.eq.s32.totalorder %v1860, 1
      %vm1897 = vcmp.eq.s32.totalorder %v1861, 1
      %vm1898 = vcmp.eq.s32.totalorder %v1862, 1
      %vm1899 = vcmp.eq.s32.totalorder %v1863, 1
      %vm1900 = vcmp.eq.s32.totalorder %v1864, 1
      %vm1901 = vcmp.eq.s32.totalorder %v1865, 1
      %vm1902 = vcmp.eq.s32.totalorder %v1866, 1
      %vm1903 = vcmp.eq.s32.totalorder %v1867, 1
      %v1904 = vsel %vm1868, %v1760, 0.0
      %v1905 = vsel %vm1869, %v1761, 0.0
      %v1906 = vsel %vm1870, %v1762, 0.0
      %v1907 = vsel %vm1871, %v1763, 0.0
      %v1908 = vsel %vm1872, %v1764, 0.0
      %v1909 = vsel %vm1873, %v1765, 0.0
      %v1910 = vsel %vm1874, %v1766, 0.0
      %v1911 = vsel %vm1875, %v1767, 0.0
      %v1912 = vsel %vm1876, %v1768, 0.0
      %v1913 = vsel %vm1877, %v1769, 0.0
      %v1914 = vsel %vm1878, %v1770, 0.0
      %v1915 = vsel %vm1879, %v1771, 0.0
      %v1916 = vsel %vm1880, %v1772, 0.0
      %v1917 = vsel %vm1881, %v1773, 0.0
      %v1918 = vsel %vm1882, %v1774, 0.0
      %v1919 = vsel %vm1883, %v1775, 0.0
      %v1920 = vsel %vm1884, %v1776, 0.0
      %v1921 = vsel %vm1885, %v1777, 0.0
      %v1922 = vsel %vm1886, %v1778, 0.0
      %v1923 = vsel %vm1887, %v1779, 0.0
      %v1924 = vsel %vm1888, %v1780, 0.0
      %v1925 = vsel %vm1889, %v1781, 0.0
      %v1926 = vsel %vm1890, %v1782, 0.0
      %v1927 = vsel %vm1891, %v1783, 0.0
      %v1928 = vsel %vm1892, %v1784, 0.0
      %v1929 = vsel %vm1893, %v1785, 0.0
      %v1930 = vsel %vm1894, %v1786, 0.0
      %v1931 = vsel %vm1895, %v1787, 0.0
      %v1932 = vsel %vm1896, %v1788, 0.0
      %v1933 = vsel %vm1897, %v1789, 0.0
      %v1934 = vsel %vm1898, %v1790, 0.0
      %v1935 = vsel %vm1899, %v1791, 0.0
      %v1936 = vsel %vm1900, %v1792, 0.0
      %v1937 = vsel %vm1901, %v1793, 0.0
      %v1938 = vsel %vm1902, %v1794, 0.0
      %v1939 = vsel %vm1903, %v1795, 0.0
      %1940 = vst [vmem:[#allocation2 + $0x18] sm:$0xff] %v1904
      %1941 = vst [vmem:[#allocation2 + $0x20] sm:$0xff] %v1905
      %1942 = vst [vmem:[#allocation2 + $0x28] sm:$0xff] %v1906
      %1943 = vst [vmem:[#allocation2 + $0x30] sm:$0xff] %v1907
      %1944 = vst [vmem:[#allocation2 + $0x38] sm:$0xff] %v1908
      %1945 = vst [vmem:[#allocation2 + $0x40] sm:$0xff] %v1909
      %1946 = vst [vmem:[#allocation2 + $0x48] sm:$0xff] %v1910
      %1947 = vst [vmem:[#allocation2 + $0x50] sm:$0xff] %v1911
      %1948 = vst [vmem:[#allocation2 + $0x58] sm:$0xff] %v1912
      %1949 = vst [vmem:[#allocation2 + $0x60] sm:$0xff] %v1913
      %1950 = vst [vmem:[#allocation2 + $0x68] sm:$0xff] %v1914
      %1951 = vst [vmem:[#allocation2 + $0x70] sm:$0xff] %v1915
      %1952 = vst [vmem:[#allocation2 + $0x78] sm:$0xff] %v1916
      %1953 = vst [vmem:[#allocation2 + $0x80] sm:$0xff] %v1917
      %1954 = vst [vmem:[#allocation2 + $0x88] sm:$0xff] %v1918
      %1955 = vst [vmem:[#allocation2 + $0x90] sm:$0xff] %v1919
      %1956 = vst [vmem:[#allocation2 + $0x98] sm:$0xff] %v1920
      %1957 = vst [vmem:[#allocation2 + $0xa0] sm:$0xff] %v1921
      %1958 = vst [vmem:[#allocation2 + $0xa8] sm:$0xff] %v1922
      %1959 = vst [vmem:[#allocation2 + $0xb0] sm:$0xff] %v1923
      %1960 = vst [vmem:[#allocation2 + $0xb8] sm:$0xff] %v1924
      %1961 = vst [vmem:[#allocation2 + $0xc0] sm:$0xff] %v1925
      %1962 = vst [vmem:[#allocation2 + $0xc8] sm:$0xff] %v1926
      %1963 = vst [vmem:[#allocation2 + $0xd0] sm:$0xff] %v1927
      %1964 = vst [vmem:[#allocation2 + $0xd8] sm:$0xff] %v1928
      %1965 = vst [vmem:[#allocation2 + $0xe0] sm:$0xff] %v1929
      %1966 = vst [vmem:[#allocation2 + $0xe8] sm:$0xff] %v1930
      %1967 = vst [vmem:[#allocation2 + $0xf0] sm:$0xff] %v1931
      %1968 = vst [vmem:[#allocation2 + $0xf8] sm:$0xff] %v1932
      %1969 = vst [vmem:[#allocation2 + $0x100] sm:$0xff] %v1933
      %1970 = vst [vmem:[#allocation2 + $0x108] sm:$0xff] %v1934
      %1971 = vst [vmem:[#allocation2 + $0x110] sm:$0xff] %v1935
      %1972 = vst [vmem:[#allocation2 + $0x118] sm:$0xff] %v1936
      %1973 = vst [vmem:[#allocation2 + $0x120] sm:$0xff] %v1937
      %1974 = vst [vmem:[#allocation2 + $0x128] sm:$0xff] %v1938
      %1975 = vst [vmem:[#allocation2 + $0x130] sm:$0xff] %v1939
      %v1976 = vld [vmem:[#allocation2 + $0x5] sm:$0xff]
      %v1977 = vld [vmem:[#allocation2 + $0xd] sm:$0xff]
      %v1978 = vld [vmem:[#allocation2 + $0x15] sm:$0xff]
      %v1979 = vld [vmem:[#allocation2 + $0x1d] sm:$0xff]
      %v1980 = vld [vmem:[#allocation2 + $0x25] sm:$0xff]
      %v1981 = vld [vmem:[#allocation2 + $0x2d] sm:$0xff]
      %v1982 = vld [vmem:[#allocation2 + $0x35] sm:$0xff]
      %v1983 = vld [vmem:[#allocation2 + $0x3d] sm:$0xff]
      %v1984 = vld [vmem:[#allocation2 + $0x45] sm:$0xff]
      %v1985 = vld [vmem:[#allocation2 + $0x4d] sm:$0xff]
      %v1986 = vld [vmem:[#allocation2 + $0x55] sm:$0xff]
      %v1987 = vld [vmem:[#allocation2 + $0x5d] sm:$0xff]
      %v1988 = vld [vmem:[#allocation2 + $0x65] sm:$0xff]
      %v1989 = vld [vmem:[#allocation2 + $0x6d] sm:$0xff]
      %v1990 = vld [vmem:[#allocation2 + $0x75] sm:$0xff]
      %v1991 = vld [vmem:[#allocation2 + $0x7d] sm:$0xff]
      %v1992 = vld [vmem:[#allocation2 + $0x85] sm:$0xff]
      %v1993 = vld [vmem:[#allocation2 + $0x8d] sm:$0xff]
      %v1994 = vld [vmem:[#allocation2 + $0x95] sm:$0xff]
      %v1995 = vld [vmem:[#allocation2 + $0x9d] sm:$0xff]
      %v1996 = vld [vmem:[#allocation2 + $0xa5] sm:$0xff]
      %v1997 = vld [vmem:[#allocation2 + $0xad] sm:$0xff]
      %v1998 = vld [vmem:[#allocation2 + $0xb5] sm:$0xff]
      %v1999 = vld [vmem:[#allocation2 + $0xbd] sm:$0xff]
      %v2000 = vld [vmem:[#allocation2 + $0xc5] sm:$0xff]
      %v2001 = vld [vmem:[#allocation2 + $0xcd] sm:$0xff]
      %v2002 = vld [vmem:[#allocation2 + $0xd5] sm:$0xff]
      %v2003 = vld [vmem:[#allocation2 + $0xdd] sm:$0xff]
      %v2004 = vld [vmem:[#allocation2 + $0xe5] sm:$0xff]
      %v2005 = vld [vmem:[#allocation2 + $0xed] sm:$0xff]
      %v2006 = vld [vmem:[#allocation2 + $0xf5] sm:$0xff]
      %v2007 = vld [vmem:[#allocation2 + $0xfd] sm:$0xff]
      %v2008 = vld [vmem:[#allocation2 + $0x105] sm:$0xff]
      %v2009 = vld [vmem:[#allocation2 + $0x10d] sm:$0xff]
      %v2010 = vld [vmem:[#allocation2 + $0x115] sm:$0xff]
      %v2011 = vld [vmem:[#allocation2 + $0x11d] sm:$0xff]
      %v2012 = vpack.c.bf16 %v1977, %v1976
      %v2013 = vpack.c.bf16 %v1979, %v1978
      %v2014 = vpack.c.bf16 %v1981, %v1980
      %v2015 = vpack.c.bf16 %v1983, %v1982
      %v2016 = vpack.c.bf16 %v1985, %v1984
      %v2017 = vpack.c.bf16 %v1987, %v1986
      %v2018 = vpack.c.bf16 %v1989, %v1988
      %v2019 = vpack.c.bf16 %v1991, %v1990
      %v2020 = vpack.c.bf16 %v1993, %v1992
      %v2021 = vpack.c.bf16 %v1995, %v1994
      %v2022 = vpack.c.bf16 %v1997, %v1996
      %v2023 = vpack.c.bf16 %v1999, %v1998
      %v2024 = vpack.c.bf16 %v2001, %v2000
      %v2025 = vpack.c.bf16 %v2003, %v2002
      %v2026 = vpack.c.bf16 %v2005, %v2004
      %v2027 = vpack.c.bf16 %v2007, %v2006
      %v2028 = vpack.c.bf16 %v2009, %v2008
      %v2029 = vpack.c.bf16 %v2011, %v2010
      %v2030 = vld [vmem:[%s3] sm:$0xf]
      %v2031 = vld [vmem:[%s3 + $0x4] sm:$0xf]
      %v2032 = vld [vmem:[%s3 + $0x8] sm:$0xf]
      %v2033 = vld [vmem:[%s3 + $0xc] sm:$0xf]
      %v2034 = vld [vmem:[%s3 + $0x10] sm:$0xf]
      %v2035 = vld [vmem:[%s3 + $0x14] sm:$0xf]
      %v2036 = vld [vmem:[%s3 + $0x18] sm:$0xf]
      %v2037 = vld [vmem:[%s3 + $0x1c] sm:$0xf]
      %v2038 = vld [vmem:[%s3 + $0x20] sm:$0xf]
      %v2039 = vld [vmem:[%s3 + $0x24] sm:$0xf]
      %v2040 = vld [vmem:[%s3 + $0x28] sm:$0xf]
      %v2041 = vld [vmem:[%s3 + $0x2c] sm:$0xf]
      %v2042 = vld [vmem:[%s3 + $0x30] sm:$0xf]
      %v2043 = vld [vmem:[%s3 + $0x34] sm:$0xf]
      %v2044 = vld [vmem:[%s3 + $0x38] sm:$0xf]
      %v2045 = vld [vmem:[%s3 + $0x3c] sm:$0xf]
      %v2046 = vld [vmem:[#allocation2 + $0x6] sm:$0xff]
      %v2047 = vld [vmem:[#allocation2 + $0xe] sm:$0xff]
      %v2048 = vld [vmem:[#allocation2 + $0x16] sm:$0xff]
      %v2049 = vld [vmem:[#allocation2 + $0x1e] sm:$0xff]
      %v2050 = vld [vmem:[#allocation2 + $0x26] sm:$0xff]
      %v2051 = vld [vmem:[#allocation2 + $0x2e] sm:$0xff]
      %v2052 = vld [vmem:[#allocation2 + $0x36] sm:$0xff]
      %v2053 = vld [vmem:[#allocation2 + $0x3e] sm:$0xff]
      %v2054 = vld [vmem:[#allocation2 + $0x46] sm:$0xff]
      %v2055 = vld [vmem:[#allocation2 + $0x4e] sm:$0xff]
      %v2056 = vld [vmem:[#allocation2 + $0x56] sm:$0xff]
      %v2057 = vld [vmem:[#allocation2 + $0x5e] sm:$0xff]
      %v2058 = vld [vmem:[#allocation2 + $0x66] sm:$0xff]
      %v2059 = vld [vmem:[#allocation2 + $0x6e] sm:$0xff]
      %v2060 = vld [vmem:[#allocation2 + $0x76] sm:$0xff]
      %v2061 = vld [vmem:[#allocation2 + $0x7e] sm:$0xff]
      %v2062 = vld [vmem:[#allocation2 + $0x86] sm:$0xff]
      %v2063 = vld [vmem:[#allocation2 + $0x8e] sm:$0xff]
      %v2064 = vld [vmem:[#allocation2 + $0x96] sm:$0xff]
      %v2065 = vld [vmem:[#allocation2 + $0x9e] sm:$0xff]
      %v2066 = vld [vmem:[#allocation2 + $0xa6] sm:$0xff]
      %v2067 = vld [vmem:[#allocation2 + $0xae] sm:$0xff]
      %v2068 = vld [vmem:[#allocation2 + $0xb6] sm:$0xff]
      %v2069 = vld [vmem:[#allocation2 + $0xbe] sm:$0xff]
      %v2070 = vld [vmem:[#allocation2 + $0xc6] sm:$0xff]
      %v2071 = vld [vmem:[#allocation2 + $0xce] sm:$0xff]
      %v2072 = vld [vmem:[#allocation2 + $0xd6] sm:$0xff]
      %v2073 = vld [vmem:[#allocation2 + $0xde] sm:$0xff]
      %v2074 = vld [vmem:[#allocation2 + $0xe6] sm:$0xff]
      %v2075 = vld [vmem:[#allocation2 + $0xee] sm:$0xff]
      %v2076 = vld [vmem:[#allocation2 + $0xf6] sm:$0xff]
      %v2077 = vld [vmem:[#allocation2 + $0xfe] sm:$0xff]
      %v2078 = vld [vmem:[#allocation2 + $0x106] sm:$0xff]
      %v2079 = vld [vmem:[#allocation2 + $0x10e] sm:$0xff]
      %v2080 = vld [vmem:[#allocation2 + $0x116] sm:$0xff]
      %v2081 = vld [vmem:[#allocation2 + $0x11e] sm:$0xff]
      %v2082 = vpack.c.bf16 %v2047, %v2046
      %v2083 = vpack.c.bf16 %v2049, %v2048
      %v2084 = vpack.c.bf16 %v2051, %v2050
      %v2085 = vpack.c.bf16 %v2053, %v2052
      %v2086 = vpack.c.bf16 %v2055, %v2054
      %v2087 = vpack.c.bf16 %v2057, %v2056
      %v2088 = vpack.c.bf16 %v2059, %v2058
      %v2089 = vpack.c.bf16 %v2061, %v2060
      %v2090 = vpack.c.bf16 %v2063, %v2062
      %v2091 = vpack.c.bf16 %v2065, %v2064
      %v2092 = vpack.c.bf16 %v2067, %v2066
      %v2093 = vpack.c.bf16 %v2069, %v2068
      %v2094 = vpack.c.bf16 %v2071, %v2070
      %v2095 = vpack.c.bf16 %v2073, %v2072
      %v2096 = vpack.c.bf16 %v2075, %v2074
      %v2097 = vpack.c.bf16 %v2077, %v2076
      %v2098 = vpack.c.bf16 %v2079, %v2078
      %v2099 = vpack.c.bf16 %v2081, %v2080
      %s2100 = scalar_lea.vmem %s3, 64
      %v2101 = vld [vmem:[%s2100] sm:$0xf]
      %v2102 = vld [vmem:[%s2100 + $0x4] sm:$0xf]
      %v2103 = vld [vmem:[%s2100 + $0x8] sm:$0xf]
      %v2104 = vld [vmem:[%s2100 + $0xc] sm:$0xf]
      %v2105 = vld [vmem:[%s2100 + $0x10] sm:$0xf]
      %v2106 = vld [vmem:[%s2100 + $0x14] sm:$0xf]
      %v2107 = vld [vmem:[%s2100 + $0x18] sm:$0xf]
      %v2108 = vld [vmem:[%s2100 + $0x1c] sm:$0xf]
      %v2109 = vld [vmem:[%s2100 + $0x20] sm:$0xf]
      %v2110 = vld [vmem:[%s2100 + $0x24] sm:$0xf]
      %v2111 = vld [vmem:[%s2100 + $0x28] sm:$0xf]
      %v2112 = vld [vmem:[%s2100 + $0x2c] sm:$0xf]
      %v2113 = vld [vmem:[%s2100 + $0x30] sm:$0xf]
      %v2114 = vld [vmem:[%s2100 + $0x34] sm:$0xf]
      %v2115 = vld [vmem:[%s2100 + $0x38] sm:$0xf]
      %v2116 = vld [vmem:[%s2100 + $0x3c] sm:$0xf]
      %v2133 = vunpack.c.l.b16 %v2101
      %v2134 = vunpack.c.l.b16 %v2102
      %v2135 = vunpack.c.l.b16 %v2103
      %v2136 = vunpack.c.l.b16 %v2104
      %v2137 = vunpack.c.l.b16 %v2105
      %v2138 = vunpack.c.l.b16 %v2106
      %v2139 = vunpack.c.l.b16 %v2107
      %v2140 = vunpack.c.l.b16 %v2108
      %v2141 = vunpack.c.l.b16 %v2109
      %v2142 = vunpack.c.l.b16 %v2110
      %v2143 = vunpack.c.l.b16 %v2111
      %v2144 = vunpack.c.l.b16 %v2112
      %v2145 = vunpack.c.l.b16 %v2113
      %v2146 = vunpack.c.l.b16 %v2114
      %v2147 = vunpack.c.l.b16 %v2115
      %v2148 = vunpack.c.l.b16 %v2116
      %v2149 = vpack.c.b16 %v2134, %v2133
      %v2150 = vpack.c.b16 %v2136, %v2135
      %v2151 = vpack.c.b16 %v2138, %v2137
      %v2152 = vpack.c.b16 %v2140, %v2139
      %v2153 = vpack.c.b16 %v2142, %v2141
      %v2154 = vpack.c.b16 %v2144, %v2143
      %v2155 = vpack.c.b16 %v2146, %v2145
      %v2156 = vpack.c.b16 %v2148, %v2147
      %2165 = vmatpush.bf16.msra.mxu0 %v2156
      %2166 = vmatpush.bf16.msra.mxu0 %v2155
      %2167 = vmatpush.bf16.msra.mxu0 %v2154
      %2168 = vmatpush.bf16.msra.mxu0 %v2153
      %2169 = vmatpush.bf16.msra.mxu0 %v2152
      %2170 = vmatpush.bf16.msra.mxu0 %v2151
      %2171 = vmatpush.bf16.msra.mxu0 %v2150
      %2172 = vmatpush.bf16.msra.mxu0 %v2149
      %2173 = vmatmul.bf16.gmra.mxu0 %v2082
      %v2174 = vpop.f32.mrf.mxu0
      %v2175 = vadd.f32 0.0, %v2174
      %v2176 = vpop.f32.mrf.mxu0
      %v2177 = vadd.f32 0.0, %v2176
      %2178 = vmatmul.bf16.gmra.mxu0 %v2083
      %v2179 = vpop.f32.mrf.mxu0
      %v2180 = vadd.f32 0.0, %v2179
      %v2181 = vpop.f32.mrf.mxu0
      %v2182 = vadd.f32 0.0, %v2181
      %2183 = vmatmul.bf16.gmra.mxu0 %v2084
      %v2184 = vpop.f32.mrf.mxu0
      %v2185 = vadd.f32 0.0, %v2184
      %v2186 = vpop.f32.mrf.mxu0
      %v2187 = vadd.f32 0.0, %v2186
      %2188 = vmatmul.bf16.gmra.mxu0 %v2085
      %v2189 = vpop.f32.mrf.mxu0
      %v2190 = vadd.f32 0.0, %v2189
      %v2191 = vpop.f32.mrf.mxu0
      %v2192 = vadd.f32 0.0, %v2191
      %2193 = vmatmul.bf16.gmra.mxu0 %v2086
      %v2194 = vpop.f32.mrf.mxu0
      %v2195 = vadd.f32 0.0, %v2194
      %v2196 = vpop.f32.mrf.mxu0
      %v2197 = vadd.f32 0.0, %v2196
      %2198 = vmatmul.bf16.gmra.mxu0 %v2087
      %v2199 = vpop.f32.mrf.mxu0
      %v2200 = vadd.f32 0.0, %v2199
      %v2201 = vpop.f32.mrf.mxu0
      %v2202 = vadd.f32 0.0, %v2201
      %2203 = vmatmul.bf16.gmra.mxu0 %v2088
      %v2204 = vpop.f32.mrf.mxu0
      %v2205 = vadd.f32 0.0, %v2204
      %v2206 = vpop.f32.mrf.mxu0
      %v2207 = vadd.f32 0.0, %v2206
      %2208 = vmatmul.bf16.gmra.mxu0 %v2089
      %v2209 = vpop.f32.mrf.mxu0
      %v2210 = vadd.f32 0.0, %v2209
      %v2211 = vpop.f32.mrf.mxu0
      %v2212 = vadd.f32 0.0, %v2211
      %2213 = vmatmul.bf16.gmra.mxu0 %v2090
      %v2214 = vpop.f32.mrf.mxu0
      %v2215 = vadd.f32 0.0, %v2214
      %v2216 = vpop.f32.mrf.mxu0
      %v2217 = vadd.f32 0.0, %v2216
      %2218 = vmatmul.bf16.gmra.mxu0 %v2091
      %v2219 = vpop.f32.mrf.mxu0
      %v2220 = vadd.f32 0.0, %v2219
      %v2221 = vpop.f32.mrf.mxu0
      %v2222 = vadd.f32 0.0, %v2221
      %2223 = vmatmul.bf16.gmra.mxu0 %v2092
      %v2224 = vpop.f32.mrf.mxu0
      %v2225 = vadd.f32 0.0, %v2224
      %v2226 = vpop.f32.mrf.mxu0
      %v2227 = vadd.f32 0.0, %v2226
      %2228 = vmatmul.bf16.gmra.mxu0 %v2093
      %v2229 = vpop.f32.mrf.mxu0
      %v2230 = vadd.f32 0.0, %v2229
      %v2231 = vpop.f32.mrf.mxu0
      %v2232 = vadd.f32 0.0, %v2231
      %2233 = vmatmul.bf16.gmra.mxu0 %v2094
      %v2234 = vpop.f32.mrf.mxu0
      %v2235 = vadd.f32 0.0, %v2234
      %v2236 = vpop.f32.mrf.mxu0
      %v2237 = vadd.f32 0.0, %v2236
      %2238 = vmatmul.bf16.gmra.mxu0 %v2095
      %v2239 = vpop.f32.mrf.mxu0
      %v2240 = vadd.f32 0.0, %v2239
      %v2241 = vpop.f32.mrf.mxu0
      %v2242 = vadd.f32 0.0, %v2241
      %2243 = vmatmul.bf16.gmra.mxu0 %v2096
      %v2244 = vpop.f32.mrf.mxu0
      %v2245 = vadd.f32 0.0, %v2244
      %v2246 = vpop.f32.mrf.mxu0
      %v2247 = vadd.f32 0.0, %v2246
      %2248 = vmatmul.bf16.gmra.mxu0 %v2097
      %v2249 = vpop.f32.mrf.mxu0
      %v2250 = vadd.f32 0.0, %v2249
      %v2251 = vpop.f32.mrf.mxu0
      %v2252 = vadd.f32 0.0, %v2251
      %2253 = vmatmul.bf16.gmra.mxu0 %v2098
      %v2254 = vpop.f32.mrf.mxu0
      %v2255 = vadd.f32 0.0, %v2254
      %v2256 = vpop.f32.mrf.mxu0
      %v2257 = vadd.f32 0.0, %v2256
      %2258 = vmatmul.bf16.gmra.mxu0 %v2099
      %v2259 = vpop.f32.mrf.mxu0
      %v2260 = vadd.f32 0.0, %v2259
      %v2261 = vpop.f32.mrf.mxu0
      %v2262 = vadd.f32 0.0, %v2261
      %2263 = vdwg.mxu0
      %v2280 = vunpack.c.l.b16 %v2030
      %v2281 = vunpack.c.l.b16 %v2031
      %v2282 = vunpack.c.l.b16 %v2032
      %v2283 = vunpack.c.l.b16 %v2033
      %v2284 = vunpack.c.l.b16 %v2034
      %v2285 = vunpack.c.l.b16 %v2035
      %v2286 = vunpack.c.l.b16 %v2036
      %v2287 = vunpack.c.l.b16 %v2037
      %v2288 = vunpack.c.l.b16 %v2038
      %v2289 = vunpack.c.l.b16 %v2039
      %v2290 = vunpack.c.l.b16 %v2040
      %v2291 = vunpack.c.l.b16 %v2041
      %v2292 = vunpack.c.l.b16 %v2042
      %v2293 = vunpack.c.l.b16 %v2043
      %v2294 = vunpack.c.l.b16 %v2044
      %v2295 = vunpack.c.l.b16 %v2045
      %v2296 = vpack.c.b16 %v2281, %v2280
      %v2297 = vpack.c.b16 %v2283, %v2282
      %v2298 = vpack.c.b16 %v2285, %v2284
      %v2299 = vpack.c.b16 %v2287, %v2286
      %v2300 = vpack.c.b16 %v2289, %v2288
      %v2301 = vpack.c.b16 %v2291, %v2290
      %v2302 = vpack.c.b16 %v2293, %v2292
      %v2303 = vpack.c.b16 %v2295, %v2294
      %2312 = vmatpush.bf16.msra.mxu0 %v2303
      %2313 = vmatpush.bf16.msra.mxu0 %v2302
      %2314 = vmatpush.bf16.msra.mxu0 %v2301
      %2315 = vmatpush.bf16.msra.mxu0 %v2300
      %2316 = vmatpush.bf16.msra.mxu0 %v2299
      %2317 = vmatpush.bf16.msra.mxu0 %v2298
      %2318 = vmatpush.bf16.msra.mxu0 %v2297
      %2319 = vmatpush.bf16.msra.mxu0 %v2296
      %2320 = vmatmul.bf16.gmra.mxu0 %v2012
      %v2321 = vpop.f32.mrf.mxu0
      %v2322 = vadd.f32 %v2175, %v2321
      %v2323 = vpop.f32.mrf.mxu0
      %v2324 = vadd.f32 %v2177, %v2323
      %2325 = vmatmul.bf16.gmra.mxu0 %v2013
      %v2326 = vpop.f32.mrf.mxu0
      %v2327 = vadd.f32 %v2180, %v2326
      %v2328 = vpop.f32.mrf.mxu0
      %v2329 = vadd.f32 %v2182, %v2328
      %2330 = vmatmul.bf16.gmra.mxu0 %v2014
      %v2331 = vpop.f32.mrf.mxu0
      %v2332 = vadd.f32 %v2185, %v2331
      %v2333 = vpop.f32.mrf.mxu0
      %v2334 = vadd.f32 %v2187, %v2333
      %2335 = vmatmul.bf16.gmra.mxu0 %v2015
      %v2336 = vpop.f32.mrf.mxu0
      %v2337 = vadd.f32 %v2190, %v2336
      %v2338 = vpop.f32.mrf.mxu0
      %v2339 = vadd.f32 %v2192, %v2338
      %2340 = vmatmul.bf16.gmra.mxu0 %v2016
      %v2341 = vpop.f32.mrf.mxu0
      %v2342 = vadd.f32 %v2195, %v2341
      %v2343 = vpop.f32.mrf.mxu0
      %v2344 = vadd.f32 %v2197, %v2343
      %2345 = vmatmul.bf16.gmra.mxu0 %v2017
      %v2346 = vpop.f32.mrf.mxu0
      %v2347 = vadd.f32 %v2200, %v2346
      %v2348 = vpop.f32.mrf.mxu0
      %v2349 = vadd.f32 %v2202, %v2348
      %2350 = vmatmul.bf16.gmra.mxu0 %v2018
      %v2351 = vpop.f32.mrf.mxu0
      %v2352 = vadd.f32 %v2205, %v2351
      %v2353 = vpop.f32.mrf.mxu0
      %v2354 = vadd.f32 %v2207, %v2353
      %2355 = vmatmul.bf16.gmra.mxu0 %v2019
      %v2356 = vpop.f32.mrf.mxu0
      %v2357 = vadd.f32 %v2210, %v2356
      %v2358 = vpop.f32.mrf.mxu0
      %v2359 = vadd.f32 %v2212, %v2358
      %2360 = vmatmul.bf16.gmra.mxu0 %v2020
      %v2361 = vpop.f32.mrf.mxu0
      %v2362 = vadd.f32 %v2215, %v2361
      %v2363 = vpop.f32.mrf.mxu0
      %v2364 = vadd.f32 %v2217, %v2363
      %2365 = vmatmul.bf16.gmra.mxu0 %v2021
      %v2366 = vpop.f32.mrf.mxu0
      %v2367 = vadd.f32 %v2220, %v2366
      %v2368 = vpop.f32.mrf.mxu0
      %v2369 = vadd.f32 %v2222, %v2368
      %2370 = vmatmul.bf16.gmra.mxu0 %v2022
      %v2371 = vpop.f32.mrf.mxu0
      %v2372 = vadd.f32 %v2225, %v2371
      %v2373 = vpop.f32.mrf.mxu0
      %v2374 = vadd.f32 %v2227, %v2373
      %2375 = vmatmul.bf16.gmra.mxu0 %v2023
      %v2376 = vpop.f32.mrf.mxu0
      %v2377 = vadd.f32 %v2230, %v2376
      %v2378 = vpop.f32.mrf.mxu0
      %v2379 = vadd.f32 %v2232, %v2378
      %2380 = vmatmul.bf16.gmra.mxu0 %v2024
      %v2381 = vpop.f32.mrf.mxu0
      %v2382 = vadd.f32 %v2235, %v2381
      %v2383 = vpop.f32.mrf.mxu0
      %v2384 = vadd.f32 %v2237, %v2383
      %2385 = vmatmul.bf16.gmra.mxu0 %v2025
      %v2386 = vpop.f32.mrf.mxu0
      %v2387 = vadd.f32 %v2240, %v2386
      %v2388 = vpop.f32.mrf.mxu0
      %v2389 = vadd.f32 %v2242, %v2388
      %2390 = vmatmul.bf16.gmra.mxu0 %v2026
      %v2391 = vpop.f32.mrf.mxu0
      %v2392 = vadd.f32 %v2245, %v2391
      %v2393 = vpop.f32.mrf.mxu0
      %v2394 = vadd.f32 %v2247, %v2393
      %2395 = vmatmul.bf16.gmra.mxu0 %v2027
      %v2396 = vpop.f32.mrf.mxu0
      %v2397 = vadd.f32 %v2250, %v2396
      %v2398 = vpop.f32.mrf.mxu0
      %v2399 = vadd.f32 %v2252, %v2398
      %2400 = vmatmul.bf16.gmra.mxu0 %v2028
      %v2401 = vpop.f32.mrf.mxu0
      %v2402 = vadd.f32 %v2255, %v2401
      %v2403 = vpop.f32.mrf.mxu0
      %v2404 = vadd.f32 %v2257, %v2403
      %2405 = vmatmul.bf16.gmra.mxu0 %v2029
      %v2406 = vpop.f32.mrf.mxu0
      %v2407 = vadd.f32 %v2260, %v2406
      %v2408 = vpop.f32.mrf.mxu0
      %v2409 = vadd.f32 %v2262, %v2408
      %2410 = vdwg.mxu0
      %v2411 = vld [vmem:[#allocation2 + $0x7] sm:$0xff]
      %v2412 = vld [vmem:[#allocation2 + $0xf] sm:$0xff]
      %v2413 = vld [vmem:[#allocation2 + $0x17] sm:$0xff]
      %v2414 = vld [vmem:[#allocation2 + $0x1f] sm:$0xff]
      %v2415 = vld [vmem:[#allocation2 + $0x27] sm:$0xff]
      %v2416 = vld [vmem:[#allocation2 + $0x2f] sm:$0xff]
      %v2417 = vld [vmem:[#allocation2 + $0x37] sm:$0xff]
      %v2418 = vld [vmem:[#allocation2 + $0x3f] sm:$0xff]
      %v2419 = vld [vmem:[#allocation2 + $0x47] sm:$0xff]
      %v2420 = vld [vmem:[#allocation2 + $0x4f] sm:$0xff]
      %v2421 = vld [vmem:[#allocation2 + $0x57] sm:$0xff]
      %v2422 = vld [vmem:[#allocation2 + $0x5f] sm:$0xff]
      %v2423 = vld [vmem:[#allocation2 + $0x67] sm:$0xff]
      %v2424 = vld [vmem:[#allocation2 + $0x6f] sm:$0xff]
      %v2425 = vld [vmem:[#allocation2 + $0x77] sm:$0xff]
      %v2426 = vld [vmem:[#allocation2 + $0x7f] sm:$0xff]
      %v2427 = vld [vmem:[#allocation2 + $0x87] sm:$0xff]
      %v2428 = vld [vmem:[#allocation2 + $0x8f] sm:$0xff]
      %v2429 = vld [vmem:[#allocation2 + $0x97] sm:$0xff]
      %v2430 = vld [vmem:[#allocation2 + $0x9f] sm:$0xff]
      %v2431 = vld [vmem:[#allocation2 + $0xa7] sm:$0xff]
      %v2432 = vld [vmem:[#allocation2 + $0xaf] sm:$0xff]
      %v2433 = vld [vmem:[#allocation2 + $0xb7] sm:$0xff]
      %v2434 = vld [vmem:[#allocation2 + $0xbf] sm:$0xff]
      %v2435 = vld [vmem:[#allocation2 + $0xc7] sm:$0xff]
      %v2436 = vld [vmem:[#allocation2 + $0xcf] sm:$0xff]
      %v2437 = vld [vmem:[#allocation2 + $0xd7] sm:$0xff]
      %v2438 = vld [vmem:[#allocation2 + $0xdf] sm:$0xff]
      %v2439 = vld [vmem:[#allocation2 + $0xe7] sm:$0xff]
      %v2440 = vld [vmem:[#allocation2 + $0xef] sm:$0xff]
      %v2441 = vld [vmem:[#allocation2 + $0xf7] sm:$0xff]
      %v2442 = vld [vmem:[#allocation2 + $0xff] sm:$0xff]
      %v2443 = vld [vmem:[#allocation2 + $0x107] sm:$0xff]
      %v2444 = vld [vmem:[#allocation2 + $0x10f] sm:$0xff]
      %v2445 = vld [vmem:[#allocation2 + $0x117] sm:$0xff]
      %v2446 = vld [vmem:[#allocation2 + $0x11f] sm:$0xff]
      %v2447 = vpack.c.bf16 %v2412, %v2411
      %v2448 = vpack.c.bf16 %v2414, %v2413
      %v2449 = vpack.c.bf16 %v2416, %v2415
      %v2450 = vpack.c.bf16 %v2418, %v2417
      %v2451 = vpack.c.bf16 %v2420, %v2419
      %v2452 = vpack.c.bf16 %v2422, %v2421
      %v2453 = vpack.c.bf16 %v2424, %v2423
      %v2454 = vpack.c.bf16 %v2426, %v2425
      %v2455 = vpack.c.bf16 %v2428, %v2427
      %v2456 = vpack.c.bf16 %v2430, %v2429
      %v2457 = vpack.c.bf16 %v2432, %v2431
      %v2458 = vpack.c.bf16 %v2434, %v2433
      %v2459 = vpack.c.bf16 %v2436, %v2435
      %v2460 = vpack.c.bf16 %v2438, %v2437
      %v2461 = vpack.c.bf16 %v2440, %v2439
      %v2462 = vpack.c.bf16 %v2442, %v2441
      %v2463 = vpack.c.bf16 %v2444, %v2443
      %v2464 = vpack.c.bf16 %v2446, %v2445
      %s2465 = scalar_lea.vmem %s3, 128
      %v2466 = vld [vmem:[%s2465] sm:$0xf]
      %v2467 = vld [vmem:[%s2465 + $0x4] sm:$0xf]
      %v2468 = vld [vmem:[%s2465 + $0x8] sm:$0xf]
      %v2469 = vld [vmem:[%s2465 + $0xc] sm:$0xf]
      %v2470 = vld [vmem:[%s2465 + $0x10] sm:$0xf]
      %v2471 = vld [vmem:[%s2465 + $0x14] sm:$0xf]
      %v2472 = vld [vmem:[%s2465 + $0x18] sm:$0xf]
      %v2473 = vld [vmem:[%s2465 + $0x1c] sm:$0xf]
      %v2474 = vld [vmem:[%s2465 + $0x20] sm:$0xf]
      %v2475 = vld [vmem:[%s2465 + $0x24] sm:$0xf]
      %v2476 = vld [vmem:[%s2465 + $0x28] sm:$0xf]
      %v2477 = vld [vmem:[%s2465 + $0x2c] sm:$0xf]
      %v2478 = vld [vmem:[%s2465 + $0x30] sm:$0xf]
      %v2479 = vld [vmem:[%s2465 + $0x34] sm:$0xf]
      %v2480 = vld [vmem:[%s2465 + $0x38] sm:$0xf]
      %v2481 = vld [vmem:[%s2465 + $0x3c] sm:$0xf]
      %v2498 = vunpack.c.l.b16 %v2466
      %v2499 = vunpack.c.l.b16 %v2467
      %v2500 = vunpack.c.l.b16 %v2468
      %v2501 = vunpack.c.l.b16 %v2469
      %v2502 = vunpack.c.l.b16 %v2470
      %v2503 = vunpack.c.l.b16 %v2471
      %v2504 = vunpack.c.l.b16 %v2472
      %v2505 = vunpack.c.l.b16 %v2473
      %v2506 = vunpack.c.l.b16 %v2474
      %v2507 = vunpack.c.l.b16 %v2475
      %v2508 = vunpack.c.l.b16 %v2476
      %v2509 = vunpack.c.l.b16 %v2477
      %v2510 = vunpack.c.l.b16 %v2478
      %v2511 = vunpack.c.l.b16 %v2479
      %v2512 = vunpack.c.l.b16 %v2480
      %v2513 = vunpack.c.l.b16 %v2481
      %v2514 = vpack.c.b16 %v2499, %v2498
      %v2515 = vpack.c.b16 %v2501, %v2500
      %v2516 = vpack.c.b16 %v2503, %v2502
      %v2517 = vpack.c.b16 %v2505, %v2504
      %v2518 = vpack.c.b16 %v2507, %v2506
      %v2519 = vpack.c.b16 %v2509, %v2508
      %v2520 = vpack.c.b16 %v2511, %v2510
      %v2521 = vpack.c.b16 %v2513, %v2512
      %2530 = vmatpush.bf16.msra.mxu0 %v2521
      %2531 = vmatpush.bf16.msra.mxu0 %v2520
      %2532 = vmatpush.bf16.msra.mxu0 %v2519
      %2533 = vmatpush.bf16.msra.mxu0 %v2518
      %2534 = vmatpush.bf16.msra.mxu0 %v2517
      %2535 = vmatpush.bf16.msra.mxu0 %v2516
      %2536 = vmatpush.bf16.msra.mxu0 %v2515
      %2537 = vmatpush.bf16.msra.mxu0 %v2514
      %2538 = vmatmul.bf16.gmra.mxu0 %v2447
      %v2539 = vpop.f32.mrf.mxu0
      %v2540 = vadd.f32 0.0, %v2539
      %v2541 = vpop.f32.mrf.mxu0
      %v2542 = vadd.f32 0.0, %v2541
      %2543 = vmatmul.bf16.gmra.mxu0 %v2448
      %v2544 = vpop.f32.mrf.mxu0
      %v2545 = vadd.f32 0.0, %v2544
      %v2546 = vpop.f32.mrf.mxu0
      %v2547 = vadd.f32 0.0, %v2546
      %2548 = vmatmul.bf16.gmra.mxu0 %v2449
      %v2549 = vpop.f32.mrf.mxu0
      %v2550 = vadd.f32 0.0, %v2549
      %v2551 = vpop.f32.mrf.mxu0
      %v2552 = vadd.f32 0.0, %v2551
      %2553 = vmatmul.bf16.gmra.mxu0 %v2450
      %v2554 = vpop.f32.mrf.mxu0
      %v2555 = vadd.f32 0.0, %v2554
      %v2556 = vpop.f32.mrf.mxu0
      %v2557 = vadd.f32 0.0, %v2556
      %2558 = vmatmul.bf16.gmra.mxu0 %v2451
      %v2559 = vpop.f32.mrf.mxu0
      %v2560 = vadd.f32 0.0, %v2559
      %v2561 = vpop.f32.mrf.mxu0
      %v2562 = vadd.f32 0.0, %v2561
      %2563 = vmatmul.bf16.gmra.mxu0 %v2452
      %v2564 = vpop.f32.mrf.mxu0
      %v2565 = vadd.f32 0.0, %v2564
      %v2566 = vpop.f32.mrf.mxu0
      %v2567 = vadd.f32 0.0, %v2566
      %2568 = vmatmul.bf16.gmra.mxu0 %v2453
      %v2569 = vpop.f32.mrf.mxu0
      %v2570 = vadd.f32 0.0, %v2569
      %v2571 = vpop.f32.mrf.mxu0
      %v2572 = vadd.f32 0.0, %v2571
      %2573 = vmatmul.bf16.gmra.mxu0 %v2454
      %v2574 = vpop.f32.mrf.mxu0
      %v2575 = vadd.f32 0.0, %v2574
      %v2576 = vpop.f32.mrf.mxu0
      %v2577 = vadd.f32 0.0, %v2576
      %2578 = vmatmul.bf16.gmra.mxu0 %v2455
      %v2579 = vpop.f32.mrf.mxu0
      %v2580 = vadd.f32 0.0, %v2579
      %v2581 = vpop.f32.mrf.mxu0
      %v2582 = vadd.f32 0.0, %v2581
      %2583 = vmatmul.bf16.gmra.mxu0 %v2456
      %v2584 = vpop.f32.mrf.mxu0
      %v2585 = vadd.f32 0.0, %v2584
      %v2586 = vpop.f32.mrf.mxu0
      %v2587 = vadd.f32 0.0, %v2586
      %2588 = vmatmul.bf16.gmra.mxu0 %v2457
      %v2589 = vpop.f32.mrf.mxu0
      %v2590 = vadd.f32 0.0, %v2589
      %v2591 = vpop.f32.mrf.mxu0
      %v2592 = vadd.f32 0.0, %v2591
      %2593 = vmatmul.bf16.gmra.mxu0 %v2458
      %v2594 = vpop.f32.mrf.mxu0
      %v2595 = vadd.f32 0.0, %v2594
      %v2596 = vpop.f32.mrf.mxu0
      %v2597 = vadd.f32 0.0, %v2596
      %2598 = vmatmul.bf16.gmra.mxu0 %v2459
      %v2599 = vpop.f32.mrf.mxu0
      %v2600 = vadd.f32 0.0, %v2599
      %v2601 = vpop.f32.mrf.mxu0
      %v2602 = vadd.f32 0.0, %v2601
      %2603 = vmatmul.bf16.gmra.mxu0 %v2460
      %v2604 = vpop.f32.mrf.mxu0
      %v2605 = vadd.f32 0.0, %v2604
      %v2606 = vpop.f32.mrf.mxu0
      %v2607 = vadd.f32 0.0, %v2606
      %2608 = vmatmul.bf16.gmra.mxu0 %v2461
      %v2609 = vpop.f32.mrf.mxu0
      %v2610 = vadd.f32 0.0, %v2609
      %v2611 = vpop.f32.mrf.mxu0
      %v2612 = vadd.f32 0.0, %v2611
      %2613 = vmatmul.bf16.gmra.mxu0 %v2462
      %v2614 = vpop.f32.mrf.mxu0
      %v2615 = vadd.f32 0.0, %v2614
      %v2616 = vpop.f32.mrf.mxu0
      %v2617 = vadd.f32 0.0, %v2616
      %2618 = vmatmul.bf16.gmra.mxu0 %v2463
      %v2619 = vpop.f32.mrf.mxu0
      %v2620 = vadd.f32 0.0, %v2619
      %v2621 = vpop.f32.mrf.mxu0
      %v2622 = vadd.f32 0.0, %v2621
      %2623 = vmatmul.bf16.gmra.mxu0 %v2464
      %v2624 = vpop.f32.mrf.mxu0
      %v2625 = vadd.f32 0.0, %v2624
      %v2626 = vpop.f32.mrf.mxu0
      %v2627 = vadd.f32 0.0, %v2626
      %2628 = vdwg.mxu0
      %v2629 = vadd.f32 %v2322, %v2540
      %v2630 = vadd.f32 %v2324, %v2542
      %v2631 = vadd.f32 %v2327, %v2545
      %v2632 = vadd.f32 %v2329, %v2547
      %v2633 = vadd.f32 %v2332, %v2550
      %v2634 = vadd.f32 %v2334, %v2552
      %v2635 = vadd.f32 %v2337, %v2555
      %v2636 = vadd.f32 %v2339, %v2557
      %v2637 = vadd.f32 %v2342, %v2560
      %v2638 = vadd.f32 %v2344, %v2562
      %v2639 = vadd.f32 %v2347, %v2565
      %v2640 = vadd.f32 %v2349, %v2567
      %v2641 = vadd.f32 %v2352, %v2570
      %v2642 = vadd.f32 %v2354, %v2572
      %v2643 = vadd.f32 %v2357, %v2575
      %v2644 = vadd.f32 %v2359, %v2577
      %v2645 = vadd.f32 %v2362, %v2580
      %v2646 = vadd.f32 %v2364, %v2582
      %v2647 = vadd.f32 %v2367, %v2585
      %v2648 = vadd.f32 %v2369, %v2587
      %v2649 = vadd.f32 %v2372, %v2590
      %v2650 = vadd.f32 %v2374, %v2592
      %v2651 = vadd.f32 %v2377, %v2595
      %v2652 = vadd.f32 %v2379, %v2597
      %v2653 = vadd.f32 %v2382, %v2600
      %v2654 = vadd.f32 %v2384, %v2602
      %v2655 = vadd.f32 %v2387, %v2605
      %v2656 = vadd.f32 %v2389, %v2607
      %v2657 = vadd.f32 %v2392, %v2610
      %v2658 = vadd.f32 %v2394, %v2612
      %v2659 = vadd.f32 %v2397, %v2615
      %v2660 = vadd.f32 %v2399, %v2617
      %v2661 = vadd.f32 %v2402, %v2620
      %v2662 = vadd.f32 %v2404, %v2622
      %v2663 = vadd.f32 %v2407, %v2625
      %v2664 = vadd.f32 %v2409, %v2627
      %v2665 = vld [vmem:[#allocation2 + $0x17] sm:$0xff]
      %v2666 = vld [vmem:[#allocation2 + $0x1f] sm:$0xff]
      %v2667 = vld [vmem:[#allocation2 + $0x27] sm:$0xff]
      %v2668 = vld [vmem:[#allocation2 + $0x2f] sm:$0xff]
      %v2669 = vld [vmem:[#allocation2 + $0x37] sm:$0xff]
      %v2670 = vld [vmem:[#allocation2 + $0x3f] sm:$0xff]
      %v2671 = vld [vmem:[#allocation2 + $0x47] sm:$0xff]
      %v2672 = vld [vmem:[#allocation2 + $0x4f] sm:$0xff]
      %v2673 = vld [vmem:[#allocation2 + $0x57] sm:$0xff]
      %v2674 = vld [vmem:[#allocation2 + $0x5f] sm:$0xff]
      %v2675 = vld [vmem:[#allocation2 + $0x67] sm:$0xff]
      %v2676 = vld [vmem:[#allocation2 + $0x6f] sm:$0xff]
      %v2677 = vld [vmem:[#allocation2 + $0x77] sm:$0xff]
      %v2678 = vld [vmem:[#allocation2 + $0x7f] sm:$0xff]
      %v2679 = vld [vmem:[#allocation2 + $0x87] sm:$0xff]
      %v2680 = vld [vmem:[#allocation2 + $0x8f] sm:$0xff]
      %v2681 = vld [vmem:[#allocation2 + $0x97] sm:$0xff]
      %v2682 = vld [vmem:[#allocation2 + $0x9f] sm:$0xff]
      %v2683 = vld [vmem:[#allocation2 + $0xa7] sm:$0xff]
      %v2684 = vld [vmem:[#allocation2 + $0xaf] sm:$0xff]
      %v2685 = vld [vmem:[#allocation2 + $0xb7] sm:$0xff]
      %v2686 = vld [vmem:[#allocation2 + $0xbf] sm:$0xff]
      %v2687 = vld [vmem:[#allocation2 + $0xc7] sm:$0xff]
      %v2688 = vld [vmem:[#allocation2 + $0xcf] sm:$0xff]
      %v2689 = vld [vmem:[#allocation2 + $0xd7] sm:$0xff]
      %v2690 = vld [vmem:[#allocation2 + $0xdf] sm:$0xff]
      %v2691 = vld [vmem:[#allocation2 + $0xe7] sm:$0xff]
      %v2692 = vld [vmem:[#allocation2 + $0xef] sm:$0xff]
      %v2693 = vld [vmem:[#allocation2 + $0xf7] sm:$0xff]
      %v2694 = vld [vmem:[#allocation2 + $0xff] sm:$0xff]
      %v2695 = vld [vmem:[#allocation2 + $0x107] sm:$0xff]
      %v2696 = vld [vmem:[#allocation2 + $0x10f] sm:$0xff]
      %v2697 = vld [vmem:[#allocation2 + $0x117] sm:$0xff]
      %v2698 = vld [vmem:[#allocation2 + $0x11f] sm:$0xff]
      %v2699 = vld [vmem:[#allocation2 + $0x127] sm:$0xff]
      %v2700 = vld [vmem:[#allocation2 + $0x12f] sm:$0xff]
      %v2701 = vpack.c.bf16 %v2666, %v2665
      %v2702 = vpack.c.bf16 %v2668, %v2667
      %v2703 = vpack.c.bf16 %v2670, %v2669
      %v2704 = vpack.c.bf16 %v2672, %v2671
      %v2705 = vpack.c.bf16 %v2674, %v2673
      %v2706 = vpack.c.bf16 %v2676, %v2675
      %v2707 = vpack.c.bf16 %v2678, %v2677
      %v2708 = vpack.c.bf16 %v2680, %v2679
      %v2709 = vpack.c.bf16 %v2682, %v2681
      %v2710 = vpack.c.bf16 %v2684, %v2683
      %v2711 = vpack.c.bf16 %v2686, %v2685
      %v2712 = vpack.c.bf16 %v2688, %v2687
      %v2713 = vpack.c.bf16 %v2690, %v2689
      %v2714 = vpack.c.bf16 %v2692, %v2691
      %v2715 = vpack.c.bf16 %v2694, %v2693
      %v2716 = vpack.c.bf16 %v2696, %v2695
      %v2717 = vpack.c.bf16 %v2698, %v2697
      %v2718 = vpack.c.bf16 %v2700, %v2699
      %s2719 = scalar_lea.vmem %s3, 192
      %v2720 = vld [vmem:[%s2719] sm:$0xf]
      %v2721 = vld [vmem:[%s2719 + $0x4] sm:$0xf]
      %v2722 = vld [vmem:[%s2719 + $0x8] sm:$0xf]
      %v2723 = vld [vmem:[%s2719 + $0xc] sm:$0xf]
      %v2724 = vld [vmem:[%s2719 + $0x10] sm:$0xf]
      %v2725 = vld [vmem:[%s2719 + $0x14] sm:$0xf]
      %v2726 = vld [vmem:[%s2719 + $0x18] sm:$0xf]
      %v2727 = vld [vmem:[%s2719 + $0x1c] sm:$0xf]
      %v2728 = vld [vmem:[%s2719 + $0x20] sm:$0xf]
      %v2729 = vld [vmem:[%s2719 + $0x24] sm:$0xf]
      %v2730 = vld [vmem:[%s2719 + $0x28] sm:$0xf]
      %v2731 = vld [vmem:[%s2719 + $0x2c] sm:$0xf]
      %v2732 = vld [vmem:[%s2719 + $0x30] sm:$0xf]
      %v2733 = vld [vmem:[%s2719 + $0x34] sm:$0xf]
      %v2734 = vld [vmem:[%s2719 + $0x38] sm:$0xf]
      %v2735 = vld [vmem:[%s2719 + $0x3c] sm:$0xf]
      %v2752 = vunpack.c.l.b16 %v2720
      %v2753 = vunpack.c.l.b16 %v2721
      %v2754 = vunpack.c.l.b16 %v2722
      %v2755 = vunpack.c.l.b16 %v2723
      %v2756 = vunpack.c.l.b16 %v2724
      %v2757 = vunpack.c.l.b16 %v2725
      %v2758 = vunpack.c.l.b16 %v2726
      %v2759 = vunpack.c.l.b16 %v2727
      %v2760 = vunpack.c.l.b16 %v2728
      %v2761 = vunpack.c.l.b16 %v2729
      %v2762 = vunpack.c.l.b16 %v2730
      %v2763 = vunpack.c.l.b16 %v2731
      %v2764 = vunpack.c.l.b16 %v2732
      %v2765 = vunpack.c.l.b16 %v2733
      %v2766 = vunpack.c.l.b16 %v2734
      %v2767 = vunpack.c.l.b16 %v2735
      %v2768 = vpack.c.b16 %v2753, %v2752
      %v2769 = vpack.c.b16 %v2755, %v2754
      %v2770 = vpack.c.b16 %v2757, %v2756
      %v2771 = vpack.c.b16 %v2759, %v2758
      %v2772 = vpack.c.b16 %v2761, %v2760
      %v2773 = vpack.c.b16 %v2763, %v2762
      %v2774 = vpack.c.b16 %v2765, %v2764
      %v2775 = vpack.c.b16 %v2767, %v2766
      %2784 = vmatpush.bf16.msra.mxu0 %v2775
      %2785 = vmatpush.bf16.msra.mxu0 %v2774
      %2786 = vmatpush.bf16.msra.mxu0 %v2773
      %2787 = vmatpush.bf16.msra.mxu0 %v2772
      %2788 = vmatpush.bf16.msra.mxu0 %v2771
      %2789 = vmatpush.bf16.msra.mxu0 %v2770
      %2790 = vmatpush.bf16.msra.mxu0 %v2769
      %2791 = vmatpush.bf16.msra.mxu0 %v2768
      %2792 = vmatmul.bf16.gmra.mxu0 %v2701
      %v2793 = vpop.f32.mrf.mxu0
      %v2794 = vadd.f32 0.0, %v2793
      %v2795 = vpop.f32.mrf.mxu0
      %v2796 = vadd.f32 0.0, %v2795
      %2797 = vmatmul.bf16.gmra.mxu0 %v2702
      %v2798 = vpop.f32.mrf.mxu0
      %v2799 = vadd.f32 0.0, %v2798
      %v2800 = vpop.f32.mrf.mxu0
      %v2801 = vadd.f32 0.0, %v2800
      %2802 = vmatmul.bf16.gmra.mxu0 %v2703
      %v2803 = vpop.f32.mrf.mxu0
      %v2804 = vadd.f32 0.0, %v2803
      %v2805 = vpop.f32.mrf.mxu0
      %v2806 = vadd.f32 0.0, %v2805
      %2807 = vmatmul.bf16.gmra.mxu0 %v2704
      %v2808 = vpop.f32.mrf.mxu0
      %v2809 = vadd.f32 0.0, %v2808
      %v2810 = vpop.f32.mrf.mxu0
      %v2811 = vadd.f32 0.0, %v2810
      %2812 = vmatmul.bf16.gmra.mxu0 %v2705
      %v2813 = vpop.f32.mrf.mxu0
      %v2814 = vadd.f32 0.0, %v2813
      %v2815 = vpop.f32.mrf.mxu0
      %v2816 = vadd.f32 0.0, %v2815
      %2817 = vmatmul.bf16.gmra.mxu0 %v2706
      %v2818 = vpop.f32.mrf.mxu0
      %v2819 = vadd.f32 0.0, %v2818
      %v2820 = vpop.f32.mrf.mxu0
      %v2821 = vadd.f32 0.0, %v2820
      %2822 = vmatmul.bf16.gmra.mxu0 %v2707
      %v2823 = vpop.f32.mrf.mxu0
      %v2824 = vadd.f32 0.0, %v2823
      %v2825 = vpop.f32.mrf.mxu0
      %v2826 = vadd.f32 0.0, %v2825
      %2827 = vmatmul.bf16.gmra.mxu0 %v2708
      %v2828 = vpop.f32.mrf.mxu0
      %v2829 = vadd.f32 0.0, %v2828
      %v2830 = vpop.f32.mrf.mxu0
      %v2831 = vadd.f32 0.0, %v2830
      %2832 = vmatmul.bf16.gmra.mxu0 %v2709
      %v2833 = vpop.f32.mrf.mxu0
      %v2834 = vadd.f32 0.0, %v2833
      %v2835 = vpop.f32.mrf.mxu0
      %v2836 = vadd.f32 0.0, %v2835
      %2837 = vmatmul.bf16.gmra.mxu0 %v2710
      %v2838 = vpop.f32.mrf.mxu0
      %v2839 = vadd.f32 0.0, %v2838
      %v2840 = vpop.f32.mrf.mxu0
      %v2841 = vadd.f32 0.0, %v2840
      %2842 = vmatmul.bf16.gmra.mxu0 %v2711
      %v2843 = vpop.f32.mrf.mxu0
      %v2844 = vadd.f32 0.0, %v2843
      %v2845 = vpop.f32.mrf.mxu0
      %v2846 = vadd.f32 0.0, %v2845
      %2847 = vmatmul.bf16.gmra.mxu0 %v2712
      %v2848 = vpop.f32.mrf.mxu0
      %v2849 = vadd.f32 0.0, %v2848
      %v2850 = vpop.f32.mrf.mxu0
      %v2851 = vadd.f32 0.0, %v2850
      %2852 = vmatmul.bf16.gmra.mxu0 %v2713
      %v2853 = vpop.f32.mrf.mxu0
      %v2854 = vadd.f32 0.0, %v2853
      %v2855 = vpop.f32.mrf.mxu0
      %v2856 = vadd.f32 0.0, %v2855
      %2857 = vmatmul.bf16.gmra.mxu0 %v2714
      %v2858 = vpop.f32.mrf.mxu0
      %v2859 = vadd.f32 0.0, %v2858
      %v2860 = vpop.f32.mrf.mxu0
      %v2861 = vadd.f32 0.0, %v2860
      %2862 = vmatmul.bf16.gmra.mxu0 %v2715
      %v2863 = vpop.f32.mrf.mxu0
      %v2864 = vadd.f32 0.0, %v2863
      %v2865 = vpop.f32.mrf.mxu0
      %v2866 = vadd.f32 0.0, %v2865
      %2867 = vmatmul.bf16.gmra.mxu0 %v2716
      %v2868 = vpop.f32.mrf.mxu0
      %v2869 = vadd.f32 0.0, %v2868
      %v2870 = vpop.f32.mrf.mxu0
      %v2871 = vadd.f32 0.0, %v2870
      %2872 = vmatmul.bf16.gmra.mxu0 %v2717
      %v2873 = vpop.f32.mrf.mxu0
      %v2874 = vadd.f32 0.0, %v2873
      %v2875 = vpop.f32.mrf.mxu0
      %v2876 = vadd.f32 0.0, %v2875
      %2877 = vmatmul.bf16.gmra.mxu0 %v2718
      %v2878 = vpop.f32.mrf.mxu0
      %v2879 = vadd.f32 0.0, %v2878
      %v2880 = vpop.f32.mrf.mxu0
      %v2881 = vadd.f32 0.0, %v2880
      %2882 = vdwg.mxu0
      %v2883 = vadd.f32 %v2629, %v2794
      %v2884 = vadd.f32 %v2630, %v2796
      %v2885 = vadd.f32 %v2631, %v2799
      %v2886 = vadd.f32 %v2632, %v2801
      %v2887 = vadd.f32 %v2633, %v2804
      %v2888 = vadd.f32 %v2634, %v2806
      %v2889 = vadd.f32 %v2635, %v2809
      %v2890 = vadd.f32 %v2636, %v2811
      %v2891 = vadd.f32 %v2637, %v2814
      %v2892 = vadd.f32 %v2638, %v2816
      %v2893 = vadd.f32 %v2639, %v2819
      %v2894 = vadd.f32 %v2640, %v2821
      %v2895 = vadd.f32 %v2641, %v2824
      %v2896 = vadd.f32 %v2642, %v2826
      %v2897 = vadd.f32 %v2643, %v2829
      %v2898 = vadd.f32 %v2644, %v2831
      %v2899 = vadd.f32 %v2645, %v2834
      %v2900 = vadd.f32 %v2646, %v2836
      %v2901 = vadd.f32 %v2647, %v2839
      %v2902 = vadd.f32 %v2648, %v2841
      %v2903 = vadd.f32 %v2649, %v2844
      %v2904 = vadd.f32 %v2650, %v2846
      %v2905 = vadd.f32 %v2651, %v2849
      %v2906 = vadd.f32 %v2652, %v2851
      %v2907 = vadd.f32 %v2653, %v2854
      %v2908 = vadd.f32 %v2654, %v2856
      %v2909 = vadd.f32 %v2655, %v2859
      %v2910 = vadd.f32 %v2656, %v2861
      %v2911 = vadd.f32 %v2657, %v2864
      %v2912 = vadd.f32 %v2658, %v2866
      %v2913 = vadd.f32 %v2659, %v2869
      %v2914 = vadd.f32 %v2660, %v2871
      %v2915 = vadd.f32 %v2661, %v2874
      %v2916 = vadd.f32 %v2662, %v2876
      %v2917 = vadd.f32 %v2663, %v2879
      %v2918 = vadd.f32 %v2664, %v2881
      %v2919 = vld [vmem:[#allocation2 + $0x18] sm:$0xff]
      %v2920 = vld [vmem:[#allocation2 + $0x20] sm:$0xff]
      %v2921 = vld [vmem:[#allocation2 + $0x28] sm:$0xff]
      %v2922 = vld [vmem:[#allocation2 + $0x30] sm:$0xff]
      %v2923 = vld [vmem:[#allocation2 + $0x38] sm:$0xff]
      %v2924 = vld [vmem:[#allocation2 + $0x40] sm:$0xff]
      %v2925 = vld [vmem:[#allocation2 + $0x48] sm:$0xff]
      %v2926 = vld [vmem:[#allocation2 + $0x50] sm:$0xff]
      %v2927 = vld [vmem:[#allocation2 + $0x58] sm:$0xff]
      %v2928 = vld [vmem:[#allocation2 + $0x60] sm:$0xff]
      %v2929 = vld [vmem:[#allocation2 + $0x68] sm:$0xff]
      %v2930 = vld [vmem:[#allocation2 + $0x70] sm:$0xff]
      %v2931 = vld [vmem:[#allocation2 + $0x78] sm:$0xff]
      %v2932 = vld [vmem:[#allocation2 + $0x80] sm:$0xff]
      %v2933 = vld [vmem:[#allocation2 + $0x88] sm:$0xff]
      %v2934 = vld [vmem:[#allocation2 + $0x90] sm:$0xff]
      %v2935 = vld [vmem:[#allocation2 + $0x98] sm:$0xff]
      %v2936 = vld [vmem:[#allocation2 + $0xa0] sm:$0xff]
      %v2937 = vld [vmem:[#allocation2 + $0xa8] sm:$0xff]
      %v2938 = vld [vmem:[#allocation2 + $0xb0] sm:$0xff]
      %v2939 = vld [vmem:[#allocation2 + $0xb8] sm:$0xff]
      %v2940 = vld [vmem:[#allocation2 + $0xc0] sm:$0xff]
      %v2941 = vld [vmem:[#allocation2 + $0xc8] sm:$0xff]
      %v2942 = vld [vmem:[#allocation2 + $0xd0] sm:$0xff]
      %v2943 = vld [vmem:[#allocation2 + $0xd8] sm:$0xff]
      %v2944 = vld [vmem:[#allocation2 + $0xe0] sm:$0xff]
      %v2945 = vld [vmem:[#allocation2 + $0xe8] sm:$0xff]
      %v2946 = vld [vmem:[#allocation2 + $0xf0] sm:$0xff]
      %v2947 = vld [vmem:[#allocation2 + $0xf8] sm:$0xff]
      %v2948 = vld [vmem:[#allocation2 + $0x100] sm:$0xff]
      %v2949 = vld [vmem:[#allocation2 + $0x108] sm:$0xff]
      %v2950 = vld [vmem:[#allocation2 + $0x110] sm:$0xff]
      %v2951 = vld [vmem:[#allocation2 + $0x118] sm:$0xff]
      %v2952 = vld [vmem:[#allocation2 + $0x120] sm:$0xff]
      %v2953 = vld [vmem:[#allocation2 + $0x128] sm:$0xff]
      %v2954 = vld [vmem:[#allocation2 + $0x130] sm:$0xff]
      %v2955 = vpack.c.bf16 %v2920, %v2919
      %v2956 = vpack.c.bf16 %v2922, %v2921
      %v2957 = vpack.c.bf16 %v2924, %v2923
      %v2958 = vpack.c.bf16 %v2926, %v2925
      %v2959 = vpack.c.bf16 %v2928, %v2927
      %v2960 = vpack.c.bf16 %v2930, %v2929
      %v2961 = vpack.c.bf16 %v2932, %v2931
      %v2962 = vpack.c.bf16 %v2934, %v2933
      %v2963 = vpack.c.bf16 %v2936, %v2935
      %v2964 = vpack.c.bf16 %v2938, %v2937
      %v2965 = vpack.c.bf16 %v2940, %v2939
      %v2966 = vpack.c.bf16 %v2942, %v2941
      %v2967 = vpack.c.bf16 %v2944, %v2943
      %v2968 = vpack.c.bf16 %v2946, %v2945
      %v2969 = vpack.c.bf16 %v2948, %v2947
      %v2970 = vpack.c.bf16 %v2950, %v2949
      %v2971 = vpack.c.bf16 %v2952, %v2951
      %v2972 = vpack.c.bf16 %v2954, %v2953
      %s2973 = scalar_lea.vmem %s3, 256
      %v2974 = vld [vmem:[%s2973] sm:$0xf]
      %v2975 = vld [vmem:[%s2973 + $0x4] sm:$0xf]
      %v2976 = vld [vmem:[%s2973 + $0x8] sm:$0xf]
      %v2977 = vld [vmem:[%s2973 + $0xc] sm:$0xf]
      %v2978 = vld [vmem:[%s2973 + $0x10] sm:$0xf]
      %v2979 = vld [vmem:[%s2973 + $0x14] sm:$0xf]
      %v2980 = vld [vmem:[%s2973 + $0x18] sm:$0xf]
      %v2981 = vld [vmem:[%s2973 + $0x1c] sm:$0xf]
      %v2982 = vld [vmem:[%s2973 + $0x20] sm:$0xf]
      %v2983 = vld [vmem:[%s2973 + $0x24] sm:$0xf]
      %v2984 = vld [vmem:[%s2973 + $0x28] sm:$0xf]
      %v2985 = vld [vmem:[%s2973 + $0x2c] sm:$0xf]
      %v2986 = vld [vmem:[%s2973 + $0x30] sm:$0xf]
      %v2987 = vld [vmem:[%s2973 + $0x34] sm:$0xf]
      %v2988 = vld [vmem:[%s2973 + $0x38] sm:$0xf]
      %v2989 = vld [vmem:[%s2973 + $0x3c] sm:$0xf]
      %v3006 = vunpack.c.l.b16 %v2974
      %v3007 = vunpack.c.l.b16 %v2975
      %v3008 = vunpack.c.l.b16 %v2976
      %v3009 = vunpack.c.l.b16 %v2977
      %v3010 = vunpack.c.l.b16 %v2978
      %v3011 = vunpack.c.l.b16 %v2979
      %v3012 = vunpack.c.l.b16 %v2980
      %v3013 = vunpack.c.l.b16 %v2981
      %v3014 = vunpack.c.l.b16 %v2982
      %v3015 = vunpack.c.l.b16 %v2983
      %v3016 = vunpack.c.l.b16 %v2984
      %v3017 = vunpack.c.l.b16 %v2985
      %v3018 = vunpack.c.l.b16 %v2986
      %v3019 = vunpack.c.l.b16 %v2987
      %v3020 = vunpack.c.l.b16 %v2988
      %v3021 = vunpack.c.l.b16 %v2989
      %v3022 = vpack.c.b16 %v3007, %v3006
      %v3023 = vpack.c.b16 %v3009, %v3008
      %v3024 = vpack.c.b16 %v3011, %v3010
      %v3025 = vpack.c.b16 %v3013, %v3012
      %v3026 = vpack.c.b16 %v3015, %v3014
      %v3027 = vpack.c.b16 %v3017, %v3016
      %v3028 = vpack.c.b16 %v3019, %v3018
      %v3029 = vpack.c.b16 %v3021, %v3020
      %3038 = vmatpush.bf16.msra.mxu0 %v3029
      %3039 = vmatpush.bf16.msra.mxu0 %v3028
      %3040 = vmatpush.bf16.msra.mxu0 %v3027
      %3041 = vmatpush.bf16.msra.mxu0 %v3026
      %3042 = vmatpush.bf16.msra.mxu0 %v3025
      %3043 = vmatpush.bf16.msra.mxu0 %v3024
      %3044 = vmatpush.bf16.msra.mxu0 %v3023
      %3045 = vmatpush.bf16.msra.mxu0 %v3022
      %3046 = vmatmul.bf16.gmra.mxu0 %v2955
      %v3047 = vpop.f32.mrf.mxu0
      %v3048 = vadd.f32 0.0, %v3047
      %v3049 = vpop.f32.mrf.mxu0
      %v3050 = vadd.f32 0.0, %v3049
      %3051 = vmatmul.bf16.gmra.mxu0 %v2956
      %v3052 = vpop.f32.mrf.mxu0
      %v3053 = vadd.f32 0.0, %v3052
      %v3054 = vpop.f32.mrf.mxu0
      %v3055 = vadd.f32 0.0, %v3054
      %3056 = vmatmul.bf16.gmra.mxu0 %v2957
      %v3057 = vpop.f32.mrf.mxu0
      %v3058 = vadd.f32 0.0, %v3057
      %v3059 = vpop.f32.mrf.mxu0
      %v3060 = vadd.f32 0.0, %v3059
      %3061 = vmatmul.bf16.gmra.mxu0 %v2958
      %v3062 = vpop.f32.mrf.mxu0
      %v3063 = vadd.f32 0.0, %v3062
      %v3064 = vpop.f32.mrf.mxu0
      %v3065 = vadd.f32 0.0, %v3064
      %3066 = vmatmul.bf16.gmra.mxu0 %v2959
      %v3067 = vpop.f32.mrf.mxu0
      %v3068 = vadd.f32 0.0, %v3067
      %v3069 = vpop.f32.mrf.mxu0
      %v3070 = vadd.f32 0.0, %v3069
      %3071 = vmatmul.bf16.gmra.mxu0 %v2960
      %v3072 = vpop.f32.mrf.mxu0
      %v3073 = vadd.f32 0.0, %v3072
      %v3074 = vpop.f32.mrf.mxu0
      %v3075 = vadd.f32 0.0, %v3074
      %3076 = vmatmul.bf16.gmra.mxu0 %v2961
      %v3077 = vpop.f32.mrf.mxu0
      %v3078 = vadd.f32 0.0, %v3077
      %v3079 = vpop.f32.mrf.mxu0
      %v3080 = vadd.f32 0.0, %v3079
      %3081 = vmatmul.bf16.gmra.mxu0 %v2962
      %v3082 = vpop.f32.mrf.mxu0
      %v3083 = vadd.f32 0.0, %v3082
      %v3084 = vpop.f32.mrf.mxu0
      %v3085 = vadd.f32 0.0, %v3084
      %3086 = vmatmul.bf16.gmra.mxu0 %v2963
      %v3087 = vpop.f32.mrf.mxu0
      %v3088 = vadd.f32 0.0, %v3087
      %v3089 = vpop.f32.mrf.mxu0
      %v3090 = vadd.f32 0.0, %v3089
      %3091 = vmatmul.bf16.gmra.mxu0 %v2964
      %v3092 = vpop.f32.mrf.mxu0
      %v3093 = vadd.f32 0.0, %v3092
      %v3094 = vpop.f32.mrf.mxu0
      %v3095 = vadd.f32 0.0, %v3094
      %3096 = vmatmul.bf16.gmra.mxu0 %v2965
      %v3097 = vpop.f32.mrf.mxu0
      %v3098 = vadd.f32 0.0, %v3097
      %v3099 = vpop.f32.mrf.mxu0
      %v3100 = vadd.f32 0.0, %v3099
      %3101 = vmatmul.bf16.gmra.mxu0 %v2966
      %v3102 = vpop.f32.mrf.mxu0
      %v3103 = vadd.f32 0.0, %v3102
      %v3104 = vpop.f32.mrf.mxu0
      %v3105 = vadd.f32 0.0, %v3104
      %3106 = vmatmul.bf16.gmra.mxu0 %v2967
      %v3107 = vpop.f32.mrf.mxu0
      %v3108 = vadd.f32 0.0, %v3107
      %v3109 = vpop.f32.mrf.mxu0
      %v3110 = vadd.f32 0.0, %v3109
      %3111 = vmatmul.bf16.gmra.mxu0 %v2968
      %v3112 = vpop.f32.mrf.mxu0
      %v3113 = vadd.f32 0.0, %v3112
      %v3114 = vpop.f32.mrf.mxu0
      %v3115 = vadd.f32 0.0, %v3114
      %3116 = vmatmul.bf16.gmra.mxu0 %v2969
      %v3117 = vpop.f32.mrf.mxu0
      %v3118 = vadd.f32 0.0, %v3117
      %v3119 = vpop.f32.mrf.mxu0
      %v3120 = vadd.f32 0.0, %v3119
      %3121 = vmatmul.bf16.gmra.mxu0 %v2970
      %v3122 = vpop.f32.mrf.mxu0
      %v3123 = vadd.f32 0.0, %v3122
      %v3124 = vpop.f32.mrf.mxu0
      %v3125 = vadd.f32 0.0, %v3124
      %3126 = vmatmul.bf16.gmra.mxu0 %v2971
      %v3127 = vpop.f32.mrf.mxu0
      %v3128 = vadd.f32 0.0, %v3127
      %v3129 = vpop.f32.mrf.mxu0
      %v3130 = vadd.f32 0.0, %v3129
      %3131 = vmatmul.bf16.gmra.mxu0 %v2972
      %v3132 = vpop.f32.mrf.mxu0
      %v3133 = vadd.f32 0.0, %v3132
      %v3134 = vpop.f32.mrf.mxu0
      %v3135 = vadd.f32 0.0, %v3134
      %3136 = vdwg.mxu0
      %v3137 = vadd.f32 %v2883, %v3048
      %v3138 = vadd.f32 %v2884, %v3050
      %v3139 = vadd.f32 %v2885, %v3053
      %v3140 = vadd.f32 %v2886, %v3055
      %v3141 = vadd.f32 %v2887, %v3058
      %v3142 = vadd.f32 %v2888, %v3060
      %v3143 = vadd.f32 %v2889, %v3063
      %v3144 = vadd.f32 %v2890, %v3065
      %v3145 = vadd.f32 %v2891, %v3068
      %v3146 = vadd.f32 %v2892, %v3070
      %v3147 = vadd.f32 %v2893, %v3073
      %v3148 = vadd.f32 %v2894, %v3075
      %v3149 = vadd.f32 %v2895, %v3078
      %v3150 = vadd.f32 %v2896, %v3080
      %v3151 = vadd.f32 %v2897, %v3083
      %v3152 = vadd.f32 %v2898, %v3085
      %v3153 = vadd.f32 %v2899, %v3088
      %v3154 = vadd.f32 %v2900, %v3090
      %v3155 = vadd.f32 %v2901, %v3093
      %v3156 = vadd.f32 %v2902, %v3095
      %v3157 = vadd.f32 %v2903, %v3098
      %v3158 = vadd.f32 %v2904, %v3100
      %v3159 = vadd.f32 %v2905, %v3103
      %v3160 = vadd.f32 %v2906, %v3105
      %v3161 = vadd.f32 %v2907, %v3108
      %v3162 = vadd.f32 %v2908, %v3110
      %v3163 = vadd.f32 %v2909, %v3113
      %v3164 = vadd.f32 %v2910, %v3115
      %v3165 = vadd.f32 %v2911, %v3118
      %v3166 = vadd.f32 %v2912, %v3120
      %v3167 = vadd.f32 %v2913, %v3123
      %v3168 = vadd.f32 %v2914, %v3125
      %v3169 = vadd.f32 %v2915, %v3128
      %v3170 = vadd.f32 %v2916, %v3130
      %v3171 = vadd.f32 %v2917, %v3133
      %v3172 = vadd.f32 %v2918, %v3135
      %v3173 = vld [vmem:[#allocation2 + $0x19] sm:$0xff]
      %v3174 = vld [vmem:[#allocation2 + $0x21] sm:$0xff]
      %v3175 = vld [vmem:[#allocation2 + $0x29] sm:$0xff]
      %v3176 = vld [vmem:[#allocation2 + $0x31] sm:$0xff]
      %v3177 = vld [vmem:[#allocation2 + $0x39] sm:$0xff]
      %v3178 = vld [vmem:[#allocation2 + $0x41] sm:$0xff]
      %v3179 = vld [vmem:[#allocation2 + $0x49] sm:$0xff]
      %v3180 = vld [vmem:[#allocation2 + $0x51] sm:$0xff]
      %v3181 = vld [vmem:[#allocation2 + $0x59] sm:$0xff]
      %v3182 = vld [vmem:[#allocation2 + $0x61] sm:$0xff]
      %v3183 = vld [vmem:[#allocation2 + $0x69] sm:$0xff]
      %v3184 = vld [vmem:[#allocation2 + $0x71] sm:$0xff]
      %v3185 = vld [vmem:[#allocation2 + $0x79] sm:$0xff]
      %v3186 = vld [vmem:[#allocation2 + $0x81] sm:$0xff]
      %v3187 = vld [vmem:[#allocation2 + $0x89] sm:$0xff]
      %v3188 = vld [vmem:[#allocation2 + $0x91] sm:$0xff]
      %v3189 = vld [vmem:[#allocation2 + $0x99] sm:$0xff]
      %v3190 = vld [vmem:[#allocation2 + $0xa1] sm:$0xff]
      %v3191 = vld [vmem:[#allocation2 + $0xa9] sm:$0xff]
      %v3192 = vld [vmem:[#allocation2 + $0xb1] sm:$0xff]
      %v3193 = vld [vmem:[#allocation2 + $0xb9] sm:$0xff]
      %v3194 = vld [vmem:[#allocation2 + $0xc1] sm:$0xff]
      %v3195 = vld [vmem:[#allocation2 + $0xc9] sm:$0xff]
      %v3196 = vld [vmem:[#allocation2 + $0xd1] sm:$0xff]
      %v3197 = vld [vmem:[#allocation2 + $0xd9] sm:$0xff]
      %v3198 = vld [vmem:[#allocation2 + $0xe1] sm:$0xff]
      %v3199 = vld [vmem:[#allocation2 + $0xe9] sm:$0xff]
      %v3200 = vld [vmem:[#allocation2 + $0xf1] sm:$0xff]
      %v3201 = vld [vmem:[#allocation2 + $0xf9] sm:$0xff]
      %v3202 = vld [vmem:[#allocation2 + $0x101] sm:$0xff]
      %v3203 = vld [vmem:[#allocation2 + $0x109] sm:$0xff]
      %v3204 = vld [vmem:[#allocation2 + $0x111] sm:$0xff]
      %v3205 = vld [vmem:[#allocation2 + $0x119] sm:$0xff]
      %v3206 = vld [vmem:[#allocation2 + $0x121] sm:$0xff]
      %v3207 = vld [vmem:[#allocation2 + $0x129] sm:$0xff]
      %v3208 = vld [vmem:[#allocation2 + $0x131] sm:$0xff]
      %v3209 = vpack.c.bf16 %v3174, %v3173
      %v3210 = vpack.c.bf16 %v3176, %v3175
      %v3211 = vpack.c.bf16 %v3178, %v3177
      %v3212 = vpack.c.bf16 %v3180, %v3179
      %v3213 = vpack.c.bf16 %v3182, %v3181
      %v3214 = vpack.c.bf16 %v3184, %v3183
      %v3215 = vpack.c.bf16 %v3186, %v3185
      %v3216 = vpack.c.bf16 %v3188, %v3187
      %v3217 = vpack.c.bf16 %v3190, %v3189
      %v3218 = vpack.c.bf16 %v3192, %v3191
      %v3219 = vpack.c.bf16 %v3194, %v3193
      %v3220 = vpack.c.bf16 %v3196, %v3195
      %v3221 = vpack.c.bf16 %v3198, %v3197
      %v3222 = vpack.c.bf16 %v3200, %v3199
      %v3223 = vpack.c.bf16 %v3202, %v3201
      %v3224 = vpack.c.bf16 %v3204, %v3203
      %v3225 = vpack.c.bf16 %v3206, %v3205
      %v3226 = vpack.c.bf16 %v3208, %v3207
      %s3227 = scalar_lea.vmem %s3, 320
      %v3228 = vld [vmem:[%s3227] sm:$0xf]
      %v3229 = vld [vmem:[%s3227 + $0x4] sm:$0xf]
      %v3230 = vld [vmem:[%s3227 + $0x8] sm:$0xf]
      %v3231 = vld [vmem:[%s3227 + $0xc] sm:$0xf]
      %v3232 = vld [vmem:[%s3227 + $0x10] sm:$0xf]
      %v3233 = vld [vmem:[%s3227 + $0x14] sm:$0xf]
      %v3234 = vld [vmem:[%s3227 + $0x18] sm:$0xf]
      %v3235 = vld [vmem:[%s3227 + $0x1c] sm:$0xf]
      %v3236 = vld [vmem:[%s3227 + $0x20] sm:$0xf]
      %v3237 = vld [vmem:[%s3227 + $0x24] sm:$0xf]
      %v3238 = vld [vmem:[%s3227 + $0x28] sm:$0xf]
      %v3239 = vld [vmem:[%s3227 + $0x2c] sm:$0xf]
      %v3240 = vld [vmem:[%s3227 + $0x30] sm:$0xf]
      %v3241 = vld [vmem:[%s3227 + $0x34] sm:$0xf]
      %v3242 = vld [vmem:[%s3227 + $0x38] sm:$0xf]
      %v3243 = vld [vmem:[%s3227 + $0x3c] sm:$0xf]
      %v3260 = vunpack.c.l.b16 %v3228
      %v3261 = vunpack.c.l.b16 %v3229
      %v3262 = vunpack.c.l.b16 %v3230
      %v3263 = vunpack.c.l.b16 %v3231
      %v3264 = vunpack.c.l.b16 %v3232
      %v3265 = vunpack.c.l.b16 %v3233
      %v3266 = vunpack.c.l.b16 %v3234
      %v3267 = vunpack.c.l.b16 %v3235
      %v3268 = vunpack.c.l.b16 %v3236
      %v3269 = vunpack.c.l.b16 %v3237
      %v3270 = vunpack.c.l.b16 %v3238
      %v3271 = vunpack.c.l.b16 %v3239
      %v3272 = vunpack.c.l.b16 %v3240
      %v3273 = vunpack.c.l.b16 %v3241
      %v3274 = vunpack.c.l.b16 %v3242
      %v3275 = vunpack.c.l.b16 %v3243
      %v3276 = vpack.c.b16 %v3261, %v3260
      %v3277 = vpack.c.b16 %v3263, %v3262
      %v3278 = vpack.c.b16 %v3265, %v3264
      %v3279 = vpack.c.b16 %v3267, %v3266
      %v3280 = vpack.c.b16 %v3269, %v3268
      %v3281 = vpack.c.b16 %v3271, %v3270
      %v3282 = vpack.c.b16 %v3273, %v3272
      %v3283 = vpack.c.b16 %v3275, %v3274
      %3292 = vmatpush.bf16.msra.mxu0 %v3283
      %3293 = vmatpush.bf16.msra.mxu0 %v3282
      %3294 = vmatpush.bf16.msra.mxu0 %v3281
      %3295 = vmatpush.bf16.msra.mxu0 %v3280
      %3296 = vmatpush.bf16.msra.mxu0 %v3279
      %3297 = vmatpush.bf16.msra.mxu0 %v3278
      %3298 = vmatpush.bf16.msra.mxu0 %v3277
      %3299 = vmatpush.bf16.msra.mxu0 %v3276
      %3300 = vmatmul.bf16.gmra.mxu0 %v3209
      %v3301 = vpop.f32.mrf.mxu0
      %v3302 = vadd.f32 0.0, %v3301
      %v3303 = vpop.f32.mrf.mxu0
      %v3304 = vadd.f32 0.0, %v3303
      %3305 = vmatmul.bf16.gmra.mxu0 %v3210
      %v3306 = vpop.f32.mrf.mxu0
      %v3307 = vadd.f32 0.0, %v3306
      %v3308 = vpop.f32.mrf.mxu0
      %v3309 = vadd.f32 0.0, %v3308
      %3310 = vmatmul.bf16.gmra.mxu0 %v3211
      %v3311 = vpop.f32.mrf.mxu0
      %v3312 = vadd.f32 0.0, %v3311
      %v3313 = vpop.f32.mrf.mxu0
      %v3314 = vadd.f32 0.0, %v3313
      %3315 = vmatmul.bf16.gmra.mxu0 %v3212
      %v3316 = vpop.f32.mrf.mxu0
      %v3317 = vadd.f32 0.0, %v3316
      %v3318 = vpop.f32.mrf.mxu0
      %v3319 = vadd.f32 0.0, %v3318
      %3320 = vmatmul.bf16.gmra.mxu0 %v3213
      %v3321 = vpop.f32.mrf.mxu0
      %v3322 = vadd.f32 0.0, %v3321
      %v3323 = vpop.f32.mrf.mxu0
      %v3324 = vadd.f32 0.0, %v3323
      %3325 = vmatmul.bf16.gmra.mxu0 %v3214
      %v3326 = vpop.f32.mrf.mxu0
      %v3327 = vadd.f32 0.0, %v3326
      %v3328 = vpop.f32.mrf.mxu0
      %v3329 = vadd.f32 0.0, %v3328
      %3330 = vmatmul.bf16.gmra.mxu0 %v3215
      %v3331 = vpop.f32.mrf.mxu0
      %v3332 = vadd.f32 0.0, %v3331
      %v3333 = vpop.f32.mrf.mxu0
      %v3334 = vadd.f32 0.0, %v3333
      %3335 = vmatmul.bf16.gmra.mxu0 %v3216
      %v3336 = vpop.f32.mrf.mxu0
      %v3337 = vadd.f32 0.0, %v3336
      %v3338 = vpop.f32.mrf.mxu0
      %v3339 = vadd.f32 0.0, %v3338
      %3340 = vmatmul.bf16.gmra.mxu0 %v3217
      %v3341 = vpop.f32.mrf.mxu0
      %v3342 = vadd.f32 0.0, %v3341
      %v3343 = vpop.f32.mrf.mxu0
      %v3344 = vadd.f32 0.0, %v3343
      %3345 = vmatmul.bf16.gmra.mxu0 %v3218
      %v3346 = vpop.f32.mrf.mxu0
      %v3347 = vadd.f32 0.0, %v3346
      %v3348 = vpop.f32.mrf.mxu0
      %v3349 = vadd.f32 0.0, %v3348
      %3350 = vmatmul.bf16.gmra.mxu0 %v3219
      %v3351 = vpop.f32.mrf.mxu0
      %v3352 = vadd.f32 0.0, %v3351
      %v3353 = vpop.f32.mrf.mxu0
      %v3354 = vadd.f32 0.0, %v3353
      %3355 = vmatmul.bf16.gmra.mxu0 %v3220
      %v3356 = vpop.f32.mrf.mxu0
      %v3357 = vadd.f32 0.0, %v3356
      %v3358 = vpop.f32.mrf.mxu0
      %v3359 = vadd.f32 0.0, %v3358
      %3360 = vmatmul.bf16.gmra.mxu0 %v3221
      %v3361 = vpop.f32.mrf.mxu0
      %v3362 = vadd.f32 0.0, %v3361
      %v3363 = vpop.f32.mrf.mxu0
      %v3364 = vadd.f32 0.0, %v3363
      %3365 = vmatmul.bf16.gmra.mxu0 %v3222
      %v3366 = vpop.f32.mrf.mxu0
      %v3367 = vadd.f32 0.0, %v3366
      %v3368 = vpop.f32.mrf.mxu0
      %v3369 = vadd.f32 0.0, %v3368
      %3370 = vmatmul.bf16.gmra.mxu0 %v3223
      %v3371 = vpop.f32.mrf.mxu0
      %v3372 = vadd.f32 0.0, %v3371
      %v3373 = vpop.f32.mrf.mxu0
      %v3374 = vadd.f32 0.0, %v3373
      %3375 = vmatmul.bf16.gmra.mxu0 %v3224
      %v3376 = vpop.f32.mrf.mxu0
      %v3377 = vadd.f32 0.0, %v3376
      %v3378 = vpop.f32.mrf.mxu0
      %v3379 = vadd.f32 0.0, %v3378
      %3380 = vmatmul.bf16.gmra.mxu0 %v3225
      %v3381 = vpop.f32.mrf.mxu0
      %v3382 = vadd.f32 0.0, %v3381
      %v3383 = vpop.f32.mrf.mxu0
      %v3384 = vadd.f32 0.0, %v3383
      %3385 = vmatmul.bf16.gmra.mxu0 %v3226
      %v3386 = vpop.f32.mrf.mxu0
      %v3387 = vadd.f32 0.0, %v3386
      %v3388 = vpop.f32.mrf.mxu0
      %v3389 = vadd.f32 0.0, %v3388
      %3390 = vdwg.mxu0
      %v3391 = vadd.f32 %v3137, %v3302
      %v3392 = vadd.f32 %v3138, %v3304
      %v3393 = vadd.f32 %v3139, %v3307
      %v3394 = vadd.f32 %v3140, %v3309
      %v3395 = vadd.f32 %v3141, %v3312
      %v3396 = vadd.f32 %v3142, %v3314
      %v3397 = vadd.f32 %v3143, %v3317
      %v3398 = vadd.f32 %v3144, %v3319
      %v3399 = vadd.f32 %v3145, %v3322
      %v3400 = vadd.f32 %v3146, %v3324
      %v3401 = vadd.f32 %v3147, %v3327
      %v3402 = vadd.f32 %v3148, %v3329
      %v3403 = vadd.f32 %v3149, %v3332
      %v3404 = vadd.f32 %v3150, %v3334
      %v3405 = vadd.f32 %v3151, %v3337
      %v3406 = vadd.f32 %v3152, %v3339
      %v3407 = vadd.f32 %v3153, %v3342
      %v3408 = vadd.f32 %v3154, %v3344
      %v3409 = vadd.f32 %v3155, %v3347
      %v3410 = vadd.f32 %v3156, %v3349
      %v3411 = vadd.f32 %v3157, %v3352
      %v3412 = vadd.f32 %v3158, %v3354
      %v3413 = vadd.f32 %v3159, %v3357
      %v3414 = vadd.f32 %v3160, %v3359
      %v3415 = vadd.f32 %v3161, %v3362
      %v3416 = vadd.f32 %v3162, %v3364
      %v3417 = vadd.f32 %v3163, %v3367
      %v3418 = vadd.f32 %v3164, %v3369
      %v3419 = vadd.f32 %v3165, %v3372
      %v3420 = vadd.f32 %v3166, %v3374
      %v3421 = vadd.f32 %v3167, %v3377
      %v3422 = vadd.f32 %v3168, %v3379
      %v3423 = vadd.f32 %v3169, %v3382
      %v3424 = vadd.f32 %v3170, %v3384
      %v3425 = vadd.f32 %v3171, %v3387
      %v3426 = vadd.f32 %v3172, %v3389
      %v3427 = vld [vmem:[#allocation2 + $0x29] sm:$0xff]
      %v3428 = vld [vmem:[#allocation2 + $0x31] sm:$0xff]
      %v3429 = vld [vmem:[#allocation2 + $0x39] sm:$0xff]
      %v3430 = vld [vmem:[#allocation2 + $0x41] sm:$0xff]
      %v3431 = vld [vmem:[#allocation2 + $0x49] sm:$0xff]
      %v3432 = vld [vmem:[#allocation2 + $0x51] sm:$0xff]
      %v3433 = vld [vmem:[#allocation2 + $0x59] sm:$0xff]
      %v3434 = vld [vmem:[#allocation2 + $0x61] sm:$0xff]
      %v3435 = vld [vmem:[#allocation2 + $0x69] sm:$0xff]
      %v3436 = vld [vmem:[#allocation2 + $0x71] sm:$0xff]
      %v3437 = vld [vmem:[#allocation2 + $0x79] sm:$0xff]
      %v3438 = vld [vmem:[#allocation2 + $0x81] sm:$0xff]
      %v3439 = vld [vmem:[#allocation2 + $0x89] sm:$0xff]
      %v3440 = vld [vmem:[#allocation2 + $0x91] sm:$0xff]
      %v3441 = vld [vmem:[#allocation2 + $0x99] sm:$0xff]
      %v3442 = vld [vmem:[#allocation2 + $0xa1] sm:$0xff]
      %v3443 = vld [vmem:[#allocation2 + $0xa9] sm:$0xff]
      %v3444 = vld [vmem:[#allocation2 + $0xb1] sm:$0xff]
      %v3445 = vld [vmem:[#allocation2 + $0xb9] sm:$0xff]
      %v3446 = vld [vmem:[#allocation2 + $0xc1] sm:$0xff]
      %v3447 = vld [vmem:[#allocation2 + $0xc9] sm:$0xff]
      %v3448 = vld [vmem:[#allocation2 + $0xd1] sm:$0xff]
      %v3449 = vld [vmem:[#allocation2 + $0xd9] sm:$0xff]
      %v3450 = vld [vmem:[#allocation2 + $0xe1] sm:$0xff]
      %v3451 = vld [vmem:[#allocation2 + $0xe9] sm:$0xff]
      %v3452 = vld [vmem:[#allocation2 + $0xf1] sm:$0xff]
      %v3453 = vld [vmem:[#allocation2 + $0xf9] sm:$0xff]
      %v3454 = vld [vmem:[#allocation2 + $0x101] sm:$0xff]
      %v3455 = vld [vmem:[#allocation2 + $0x109] sm:$0xff]
      %v3456 = vld [vmem:[#allocation2 + $0x111] sm:$0xff]
      %v3457 = vld [vmem:[#allocation2 + $0x119] sm:$0xff]
      %v3458 = vld [vmem:[#allocation2 + $0x121] sm:$0xff]
      %v3459 = vld [vmem:[#allocation2 + $0x129] sm:$0xff]
      %v3460 = vld [vmem:[#allocation2 + $0x131] sm:$0xff]
      %v3461 = vld [vmem:[#allocation2 + $0x139] sm:$0xff]
      %v3462 = vld [vmem:[#allocation2 + $0x141] sm:$0xff]
      %v3463 = vpack.c.bf16 %v3428, %v3427
      %v3464 = vpack.c.bf16 %v3430, %v3429
      %v3465 = vpack.c.bf16 %v3432, %v3431
      %v3466 = vpack.c.bf16 %v3434, %v3433
      %v3467 = vpack.c.bf16 %v3436, %v3435
      %v3468 = vpack.c.bf16 %v3438, %v3437
      %v3469 = vpack.c.bf16 %v3440, %v3439
      %v3470 = vpack.c.bf16 %v3442, %v3441
      %v3471 = vpack.c.bf16 %v3444, %v3443
      %v3472 = vpack.c.bf16 %v3446, %v3445
      %v3473 = vpack.c.bf16 %v3448, %v3447
      %v3474 = vpack.c.bf16 %v3450, %v3449
      %v3475 = vpack.c.bf16 %v3452, %v3451
      %v3476 = vpack.c.bf16 %v3454, %v3453
      %v3477 = vpack.c.bf16 %v3456, %v3455
      %v3478 = vpack.c.bf16 %v3458, %v3457
      %v3479 = vpack.c.bf16 %v3460, %v3459
      %v3480 = vpack.c.bf16 %v3462, %v3461
      %s3481 = scalar_lea.vmem %s3, 384
      %v3482 = vld [vmem:[%s3481] sm:$0xf]
      %v3483 = vld [vmem:[%s3481 + $0x4] sm:$0xf]
      %v3484 = vld [vmem:[%s3481 + $0x8] sm:$0xf]
      %v3485 = vld [vmem:[%s3481 + $0xc] sm:$0xf]
      %v3486 = vld [vmem:[%s3481 + $0x10] sm:$0xf]
      %v3487 = vld [vmem:[%s3481 + $0x14] sm:$0xf]
      %v3488 = vld [vmem:[%s3481 + $0x18] sm:$0xf]
      %v3489 = vld [vmem:[%s3481 + $0x1c] sm:$0xf]
      %v3490 = vld [vmem:[%s3481 + $0x20] sm:$0xf]
      %v3491 = vld [vmem:[%s3481 + $0x24] sm:$0xf]
      %v3492 = vld [vmem:[%s3481 + $0x28] sm:$0xf]
      %v3493 = vld [vmem:[%s3481 + $0x2c] sm:$0xf]
      %v3494 = vld [vmem:[%s3481 + $0x30] sm:$0xf]
      %v3495 = vld [vmem:[%s3481 + $0x34] sm:$0xf]
      %v3496 = vld [vmem:[%s3481 + $0x38] sm:$0xf]
      %v3497 = vld [vmem:[%s3481 + $0x3c] sm:$0xf]
      %v3514 = vunpack.c.l.b16 %v3482
      %v3515 = vunpack.c.l.b16 %v3483
      %v3516 = vunpack.c.l.b16 %v3484
      %v3517 = vunpack.c.l.b16 %v3485
      %v3518 = vunpack.c.l.b16 %v3486
      %v3519 = vunpack.c.l.b16 %v3487
      %v3520 = vunpack.c.l.b16 %v3488
      %v3521 = vunpack.c.l.b16 %v3489
      %v3522 = vunpack.c.l.b16 %v3490
      %v3523 = vunpack.c.l.b16 %v3491
      %v3524 = vunpack.c.l.b16 %v3492
      %v3525 = vunpack.c.l.b16 %v3493
      %v3526 = vunpack.c.l.b16 %v3494
      %v3527 = vunpack.c.l.b16 %v3495
      %v3528 = vunpack.c.l.b16 %v3496
      %v3529 = vunpack.c.l.b16 %v3497
      %v3530 = vpack.c.b16 %v3515, %v3514
      %v3531 = vpack.c.b16 %v3517, %v3516
      %v3532 = vpack.c.b16 %v3519, %v3518
      %v3533 = vpack.c.b16 %v3521, %v3520
      %v3534 = vpack.c.b16 %v3523, %v3522
      %v3535 = vpack.c.b16 %v3525, %v3524
      %v3536 = vpack.c.b16 %v3527, %v3526
      %v3537 = vpack.c.b16 %v3529, %v3528
      %3546 = vmatpush.bf16.msra.mxu0 %v3537
      %3547 = vmatpush.bf16.msra.mxu0 %v3536
      %3548 = vmatpush.bf16.msra.mxu0 %v3535
      %3549 = vmatpush.bf16.msra.mxu0 %v3534
      %3550 = vmatpush.bf16.msra.mxu0 %v3533
      %3551 = vmatpush.bf16.msra.mxu0 %v3532
      %3552 = vmatpush.bf16.msra.mxu0 %v3531
      %3553 = vmatpush.bf16.msra.mxu0 %v3530
      %3554 = vmatmul.bf16.gmra.mxu0 %v3463
      %v3555 = vpop.f32.mrf.mxu0
      %v3556 = vadd.f32 0.0, %v3555
      %v3557 = vpop.f32.mrf.mxu0
      %v3558 = vadd.f32 0.0, %v3557
      %3559 = vmatmul.bf16.gmra.mxu0 %v3464
      %v3560 = vpop.f32.mrf.mxu0
      %v3561 = vadd.f32 0.0, %v3560
      %v3562 = vpop.f32.mrf.mxu0
      %v3563 = vadd.f32 0.0, %v3562
      %3564 = vmatmul.bf16.gmra.mxu0 %v3465
      %v3565 = vpop.f32.mrf.mxu0
      %v3566 = vadd.f32 0.0, %v3565
      %v3567 = vpop.f32.mrf.mxu0
      %v3568 = vadd.f32 0.0, %v3567
      %3569 = vmatmul.bf16.gmra.mxu0 %v3466
      %v3570 = vpop.f32.mrf.mxu0
      %v3571 = vadd.f32 0.0, %v3570
      %v3572 = vpop.f32.mrf.mxu0
      %v3573 = vadd.f32 0.0, %v3572
      %3574 = vmatmul.bf16.gmra.mxu0 %v3467
      %v3575 = vpop.f32.mrf.mxu0
      %v3576 = vadd.f32 0.0, %v3575
      %v3577 = vpop.f32.mrf.mxu0
      %v3578 = vadd.f32 0.0, %v3577
      %3579 = vmatmul.bf16.gmra.mxu0 %v3468
      %v3580 = vpop.f32.mrf.mxu0
      %v3581 = vadd.f32 0.0, %v3580
      %v3582 = vpop.f32.mrf.mxu0
      %v3583 = vadd.f32 0.0, %v3582
      %3584 = vmatmul.bf16.gmra.mxu0 %v3469
      %v3585 = vpop.f32.mrf.mxu0
      %v3586 = vadd.f32 0.0, %v3585
      %v3587 = vpop.f32.mrf.mxu0
      %v3588 = vadd.f32 0.0, %v3587
      %3589 = vmatmul.bf16.gmra.mxu0 %v3470
      %v3590 = vpop.f32.mrf.mxu0
      %v3591 = vadd.f32 0.0, %v3590
      %v3592 = vpop.f32.mrf.mxu0
      %v3593 = vadd.f32 0.0, %v3592
      %3594 = vmatmul.bf16.gmra.mxu0 %v3471
      %v3595 = vpop.f32.mrf.mxu0
      %v3596 = vadd.f32 0.0, %v3595
      %v3597 = vpop.f32.mrf.mxu0
      %v3598 = vadd.f32 0.0, %v3597
      %3599 = vmatmul.bf16.gmra.mxu0 %v3472
      %v3600 = vpop.f32.mrf.mxu0
      %v3601 = vadd.f32 0.0, %v3600
      %v3602 = vpop.f32.mrf.mxu0
      %v3603 = vadd.f32 0.0, %v3602
      %3604 = vmatmul.bf16.gmra.mxu0 %v3473
      %v3605 = vpop.f32.mrf.mxu0
      %v3606 = vadd.f32 0.0, %v3605
      %v3607 = vpop.f32.mrf.mxu0
      %v3608 = vadd.f32 0.0, %v3607
      %3609 = vmatmul.bf16.gmra.mxu0 %v3474
      %v3610 = vpop.f32.mrf.mxu0
      %v3611 = vadd.f32 0.0, %v3610
      %v3612 = vpop.f32.mrf.mxu0
      %v3613 = vadd.f32 0.0, %v3612
      %3614 = vmatmul.bf16.gmra.mxu0 %v3475
      %v3615 = vpop.f32.mrf.mxu0
      %v3616 = vadd.f32 0.0, %v3615
      %v3617 = vpop.f32.mrf.mxu0
      %v3618 = vadd.f32 0.0, %v3617
      %3619 = vmatmul.bf16.gmra.mxu0 %v3476
      %v3620 = vpop.f32.mrf.mxu0
      %v3621 = vadd.f32 0.0, %v3620
      %v3622 = vpop.f32.mrf.mxu0
      %v3623 = vadd.f32 0.0, %v3622
      %3624 = vmatmul.bf16.gmra.mxu0 %v3477
      %v3625 = vpop.f32.mrf.mxu0
      %v3626 = vadd.f32 0.0, %v3625
      %v3627 = vpop.f32.mrf.mxu0
      %v3628 = vadd.f32 0.0, %v3627
      %3629 = vmatmul.bf16.gmra.mxu0 %v3478
      %v3630 = vpop.f32.mrf.mxu0
      %v3631 = vadd.f32 0.0, %v3630
      %v3632 = vpop.f32.mrf.mxu0
      %v3633 = vadd.f32 0.0, %v3632
      %3634 = vmatmul.bf16.gmra.mxu0 %v3479
      %v3635 = vpop.f32.mrf.mxu0
      %v3636 = vadd.f32 0.0, %v3635
      %v3637 = vpop.f32.mrf.mxu0
      %v3638 = vadd.f32 0.0, %v3637
      %3639 = vmatmul.bf16.gmra.mxu0 %v3480
      %v3640 = vpop.f32.mrf.mxu0
      %v3641 = vadd.f32 0.0, %v3640
      %v3642 = vpop.f32.mrf.mxu0
      %v3643 = vadd.f32 0.0, %v3642
      %3644 = vdwg.mxu0
      %v3645 = vadd.f32 %v3391, %v3556
      %v3646 = vadd.f32 %v3392, %v3558
      %v3647 = vadd.f32 %v3393, %v3561
      %v3648 = vadd.f32 %v3394, %v3563
      %v3649 = vadd.f32 %v3395, %v3566
      %v3650 = vadd.f32 %v3396, %v3568
      %v3651 = vadd.f32 %v3397, %v3571
      %v3652 = vadd.f32 %v3398, %v3573
      %v3653 = vadd.f32 %v3399, %v3576
      %v3654 = vadd.f32 %v3400, %v3578
      %v3655 = vadd.f32 %v3401, %v3581
      %v3656 = vadd.f32 %v3402, %v3583
      %v3657 = vadd.f32 %v3403, %v3586
      %v3658 = vadd.f32 %v3404, %v3588
      %v3659 = vadd.f32 %v3405, %v3591
      %v3660 = vadd.f32 %v3406, %v3593
      %v3661 = vadd.f32 %v3407, %v3596
      %v3662 = vadd.f32 %v3408, %v3598
      %v3663 = vadd.f32 %v3409, %v3601
      %v3664 = vadd.f32 %v3410, %v3603
      %v3665 = vadd.f32 %v3411, %v3606
      %v3666 = vadd.f32 %v3412, %v3608
      %v3667 = vadd.f32 %v3413, %v3611
      %v3668 = vadd.f32 %v3414, %v3613
      %v3669 = vadd.f32 %v3415, %v3616
      %v3670 = vadd.f32 %v3416, %v3618
      %v3671 = vadd.f32 %v3417, %v3621
      %v3672 = vadd.f32 %v3418, %v3623
      %v3673 = vadd.f32 %v3419, %v3626
      %v3674 = vadd.f32 %v3420, %v3628
      %v3675 = vadd.f32 %v3421, %v3631
      %v3676 = vadd.f32 %v3422, %v3633
      %v3677 = vadd.f32 %v3423, %v3636
      %v3678 = vadd.f32 %v3424, %v3638
      %v3679 = vadd.f32 %v3425, %v3641
      %v3680 = vadd.f32 %v3426, %v3643
      %v3681 = vld [vmem:[#allocation2 + $0x2a] sm:$0xff]
      %v3682 = vld [vmem:[#allocation2 + $0x32] sm:$0xff]
      %v3683 = vld [vmem:[#allocation2 + $0x3a] sm:$0xff]
      %v3684 = vld [vmem:[#allocation2 + $0x42] sm:$0xff]
      %v3685 = vld [vmem:[#allocation2 + $0x4a] sm:$0xff]
      %v3686 = vld [vmem:[#allocation2 + $0x52] sm:$0xff]
      %v3687 = vld [vmem:[#allocation2 + $0x5a] sm:$0xff]
      %v3688 = vld [vmem:[#allocation2 + $0x62] sm:$0xff]
      %v3689 = vld [vmem:[#allocation2 + $0x6a] sm:$0xff]
      %v3690 = vld [vmem:[#allocation2 + $0x72] sm:$0xff]
      %v3691 = vld [vmem:[#allocation2 + $0x7a] sm:$0xff]
      %v3692 = vld [vmem:[#allocation2 + $0x82] sm:$0xff]
      %v3693 = vld [vmem:[#allocation2 + $0x8a] sm:$0xff]
      %v3694 = vld [vmem:[#allocation2 + $0x92] sm:$0xff]
      %v3695 = vld [vmem:[#allocation2 + $0x9a] sm:$0xff]
      %v3696 = vld [vmem:[#allocation2 + $0xa2] sm:$0xff]
      %v3697 = vld [vmem:[#allocation2 + $0xaa] sm:$0xff]
      %v3698 = vld [vmem:[#allocation2 + $0xb2] sm:$0xff]
      %v3699 = vld [vmem:[#allocation2 + $0xba] sm:$0xff]
      %v3700 = vld [vmem:[#allocation2 + $0xc2] sm:$0xff]
      %v3701 = vld [vmem:[#allocation2 + $0xca] sm:$0xff]
      %v3702 = vld [vmem:[#allocation2 + $0xd2] sm:$0xff]
      %v3703 = vld [vmem:[#allocation2 + $0xda] sm:$0xff]
      %v3704 = vld [vmem:[#allocation2 + $0xe2] sm:$0xff]
      %v3705 = vld [vmem:[#allocation2 + $0xea] sm:$0xff]
      %v3706 = vld [vmem:[#allocation2 + $0xf2] sm:$0xff]
      %v3707 = vld [vmem:[#allocation2 + $0xfa] sm:$0xff]
      %v3708 = vld [vmem:[#allocation2 + $0x102] sm:$0xff]
      %v3709 = vld [vmem:[#allocation2 + $0x10a] sm:$0xff]
      %v3710 = vld [vmem:[#allocation2 + $0x112] sm:$0xff]
      %v3711 = vld [vmem:[#allocation2 + $0x11a] sm:$0xff]
      %v3712 = vld [vmem:[#allocation2 + $0x122] sm:$0xff]
      %v3713 = vld [vmem:[#allocation2 + $0x12a] sm:$0xff]
      %v3714 = vld [vmem:[#allocation2 + $0x132] sm:$0xff]
      %v3715 = vld [vmem:[#allocation2 + $0x13a] sm:$0xff]
      %v3716 = vld [vmem:[#allocation2 + $0x142] sm:$0xff]
      %v3717 = vpack.c.bf16 %v3682, %v3681
      %v3718 = vpack.c.bf16 %v3684, %v3683
      %v3719 = vpack.c.bf16 %v3686, %v3685
      %v3720 = vpack.c.bf16 %v3688, %v3687
      %v3721 = vpack.c.bf16 %v3690, %v3689
      %v3722 = vpack.c.bf16 %v3692, %v3691
      %v3723 = vpack.c.bf16 %v3694, %v3693
      %v3724 = vpack.c.bf16 %v3696, %v3695
      %v3725 = vpack.c.bf16 %v3698, %v3697
      %v3726 = vpack.c.bf16 %v3700, %v3699
      %v3727 = vpack.c.bf16 %v3702, %v3701
      %v3728 = vpack.c.bf16 %v3704, %v3703
      %v3729 = vpack.c.bf16 %v3706, %v3705
      %v3730 = vpack.c.bf16 %v3708, %v3707
      %v3731 = vpack.c.bf16 %v3710, %v3709
      %v3732 = vpack.c.bf16 %v3712, %v3711
      %v3733 = vpack.c.bf16 %v3714, %v3713
      %v3734 = vpack.c.bf16 %v3716, %v3715
      %s3735 = scalar_lea.vmem %s3, 448
      %v3736 = vld [vmem:[%s3735] sm:$0xf]
      %v3737 = vld [vmem:[%s3735 + $0x4] sm:$0xf]
      %v3738 = vld [vmem:[%s3735 + $0x8] sm:$0xf]
      %v3739 = vld [vmem:[%s3735 + $0xc] sm:$0xf]
      %v3740 = vld [vmem:[%s3735 + $0x10] sm:$0xf]
      %v3741 = vld [vmem:[%s3735 + $0x14] sm:$0xf]
      %v3742 = vld [vmem:[%s3735 + $0x18] sm:$0xf]
      %v3743 = vld [vmem:[%s3735 + $0x1c] sm:$0xf]
      %v3744 = vld [vmem:[%s3735 + $0x20] sm:$0xf]
      %v3745 = vld [vmem:[%s3735 + $0x24] sm:$0xf]
      %v3746 = vld [vmem:[%s3735 + $0x28] sm:$0xf]
      %v3747 = vld [vmem:[%s3735 + $0x2c] sm:$0xf]
      %v3748 = vld [vmem:[%s3735 + $0x30] sm:$0xf]
      %v3749 = vld [vmem:[%s3735 + $0x34] sm:$0xf]
      %v3750 = vld [vmem:[%s3735 + $0x38] sm:$0xf]
      %v3751 = vld [vmem:[%s3735 + $0x3c] sm:$0xf]
      %v3768 = vunpack.c.l.b16 %v3736
      %v3769 = vunpack.c.l.b16 %v3737
      %v3770 = vunpack.c.l.b16 %v3738
      %v3771 = vunpack.c.l.b16 %v3739
      %v3772 = vunpack.c.l.b16 %v3740
      %v3773 = vunpack.c.l.b16 %v3741
      %v3774 = vunpack.c.l.b16 %v3742
      %v3775 = vunpack.c.l.b16 %v3743
      %v3776 = vunpack.c.l.b16 %v3744
      %v3777 = vunpack.c.l.b16 %v3745
      %v3778 = vunpack.c.l.b16 %v3746
      %v3779 = vunpack.c.l.b16 %v3747
      %v3780 = vunpack.c.l.b16 %v3748
      %v3781 = vunpack.c.l.b16 %v3749
      %v3782 = vunpack.c.l.b16 %v3750
      %v3783 = vunpack.c.l.b16 %v3751
      %v3784 = vpack.c.b16 %v3769, %v3768
      %v3785 = vpack.c.b16 %v3771, %v3770
      %v3786 = vpack.c.b16 %v3773, %v3772
      %v3787 = vpack.c.b16 %v3775, %v3774
      %v3788 = vpack.c.b16 %v3777, %v3776
      %v3789 = vpack.c.b16 %v3779, %v3778
      %v3790 = vpack.c.b16 %v3781, %v3780
      %v3791 = vpack.c.b16 %v3783, %v3782
      %3800 = vmatpush.bf16.msra.mxu0 %v3791
      %3801 = vmatpush.bf16.msra.mxu0 %v3790
      %3802 = vmatpush.bf16.msra.mxu0 %v3789
      %3803 = vmatpush.bf16.msra.mxu0 %v3788
      %3804 = vmatpush.bf16.msra.mxu0 %v3787
      %3805 = vmatpush.bf16.msra.mxu0 %v3786
      %3806 = vmatpush.bf16.msra.mxu0 %v3785
      %3807 = vmatpush.bf16.msra.mxu0 %v3784
      %3808 = vmatmul.bf16.gmra.mxu0 %v3717
      %v3809 = vpop.f32.mrf.mxu0
      %v3810 = vadd.f32 0.0, %v3809
      %v3811 = vpop.f32.mrf.mxu0
      %v3812 = vadd.f32 0.0, %v3811
      %3813 = vmatmul.bf16.gmra.mxu0 %v3718
      %v3814 = vpop.f32.mrf.mxu0
      %v3815 = vadd.f32 0.0, %v3814
      %v3816 = vpop.f32.mrf.mxu0
      %v3817 = vadd.f32 0.0, %v3816
      %3818 = vmatmul.bf16.gmra.mxu0 %v3719
      %v3819 = vpop.f32.mrf.mxu0
      %v3820 = vadd.f32 0.0, %v3819
      %v3821 = vpop.f32.mrf.mxu0
      %v3822 = vadd.f32 0.0, %v3821
      %3823 = vmatmul.bf16.gmra.mxu0 %v3720
      %v3824 = vpop.f32.mrf.mxu0
      %v3825 = vadd.f32 0.0, %v3824
      %v3826 = vpop.f32.mrf.mxu0
      %v3827 = vadd.f32 0.0, %v3826
      %3828 = vmatmul.bf16.gmra.mxu0 %v3721
      %v3829 = vpop.f32.mrf.mxu0
      %v3830 = vadd.f32 0.0, %v3829
      %v3831 = vpop.f32.mrf.mxu0
      %v3832 = vadd.f32 0.0, %v3831
      %3833 = vmatmul.bf16.gmra.mxu0 %v3722
      %v3834 = vpop.f32.mrf.mxu0
      %v3835 = vadd.f32 0.0, %v3834
      %v3836 = vpop.f32.mrf.mxu0
      %v3837 = vadd.f32 0.0, %v3836
      %3838 = vmatmul.bf16.gmra.mxu0 %v3723
      %v3839 = vpop.f32.mrf.mxu0
      %v3840 = vadd.f32 0.0, %v3839
      %v3841 = vpop.f32.mrf.mxu0
      %v3842 = vadd.f32 0.0, %v3841
      %3843 = vmatmul.bf16.gmra.mxu0 %v3724
      %v3844 = vpop.f32.mrf.mxu0
      %v3845 = vadd.f32 0.0, %v3844
      %v3846 = vpop.f32.mrf.mxu0
      %v3847 = vadd.f32 0.0, %v3846
      %3848 = vmatmul.bf16.gmra.mxu0 %v3725
      %v3849 = vpop.f32.mrf.mxu0
      %v3850 = vadd.f32 0.0, %v3849
      %v3851 = vpop.f32.mrf.mxu0
      %v3852 = vadd.f32 0.0, %v3851
      %3853 = vmatmul.bf16.gmra.mxu0 %v3726
      %v3854 = vpop.f32.mrf.mxu0
      %v3855 = vadd.f32 0.0, %v3854
      %v3856 = vpop.f32.mrf.mxu0
      %v3857 = vadd.f32 0.0, %v3856
      %3858 = vmatmul.bf16.gmra.mxu0 %v3727
      %v3859 = vpop.f32.mrf.mxu0
      %v3860 = vadd.f32 0.0, %v3859
      %v3861 = vpop.f32.mrf.mxu0
      %v3862 = vadd.f32 0.0, %v3861
      %3863 = vmatmul.bf16.gmra.mxu0 %v3728
      %v3864 = vpop.f32.mrf.mxu0
      %v3865 = vadd.f32 0.0, %v3864
      %v3866 = vpop.f32.mrf.mxu0
      %v3867 = vadd.f32 0.0, %v3866
      %3868 = vmatmul.bf16.gmra.mxu0 %v3729
      %v3869 = vpop.f32.mrf.mxu0
      %v3870 = vadd.f32 0.0, %v3869
      %v3871 = vpop.f32.mrf.mxu0
      %v3872 = vadd.f32 0.0, %v3871
      %3873 = vmatmul.bf16.gmra.mxu0 %v3730
      %v3874 = vpop.f32.mrf.mxu0
      %v3875 = vadd.f32 0.0, %v3874
      %v3876 = vpop.f32.mrf.mxu0
      %v3877 = vadd.f32 0.0, %v3876
      %3878 = vmatmul.bf16.gmra.mxu0 %v3731
      %v3879 = vpop.f32.mrf.mxu0
      %v3880 = vadd.f32 0.0, %v3879
      %v3881 = vpop.f32.mrf.mxu0
      %v3882 = vadd.f32 0.0, %v3881
      %3883 = vmatmul.bf16.gmra.mxu0 %v3732
      %v3884 = vpop.f32.mrf.mxu0
      %v3885 = vadd.f32 0.0, %v3884
      %v3886 = vpop.f32.mrf.mxu0
      %v3887 = vadd.f32 0.0, %v3886
      %3888 = vmatmul.bf16.gmra.mxu0 %v3733
      %v3889 = vpop.f32.mrf.mxu0
      %v3890 = vadd.f32 0.0, %v3889
      %v3891 = vpop.f32.mrf.mxu0
      %v3892 = vadd.f32 0.0, %v3891
      %3893 = vmatmul.bf16.gmra.mxu0 %v3734
      %v3894 = vpop.f32.mrf.mxu0
      %v3895 = vadd.f32 0.0, %v3894
      %v3896 = vpop.f32.mrf.mxu0
      %v3897 = vadd.f32 0.0, %v3896
      %3898 = vdwg.mxu0
      %v3899 = vadd.f32 %v3645, %v3810
      %v3900 = vadd.f32 %v3646, %v3812
      %v3901 = vadd.f32 %v3647, %v3815
      %v3902 = vadd.f32 %v3648, %v3817
      %v3903 = vadd.f32 %v3649, %v3820
      %v3904 = vadd.f32 %v3650, %v3822
      %v3905 = vadd.f32 %v3651, %v3825
      %v3906 = vadd.f32 %v3652, %v3827
      %v3907 = vadd.f32 %v3653, %v3830
      %v3908 = vadd.f32 %v3654, %v3832
      %v3909 = vadd.f32 %v3655, %v3835
      %v3910 = vadd.f32 %v3656, %v3837
      %v3911 = vadd.f32 %v3657, %v3840
      %v3912 = vadd.f32 %v3658, %v3842
      %v3913 = vadd.f32 %v3659, %v3845
      %v3914 = vadd.f32 %v3660, %v3847
      %v3915 = vadd.f32 %v3661, %v3850
      %v3916 = vadd.f32 %v3662, %v3852
      %v3917 = vadd.f32 %v3663, %v3855
      %v3918 = vadd.f32 %v3664, %v3857
      %v3919 = vadd.f32 %v3665, %v3860
      %v3920 = vadd.f32 %v3666, %v3862
      %v3921 = vadd.f32 %v3667, %v3865
      %v3922 = vadd.f32 %v3668, %v3867
      %v3923 = vadd.f32 %v3669, %v3870
      %v3924 = vadd.f32 %v3670, %v3872
      %v3925 = vadd.f32 %v3671, %v3875
      %v3926 = vadd.f32 %v3672, %v3877
      %v3927 = vadd.f32 %v3673, %v3880
      %v3928 = vadd.f32 %v3674, %v3882
      %v3929 = vadd.f32 %v3675, %v3885
      %v3930 = vadd.f32 %v3676, %v3887
      %v3931 = vadd.f32 %v3677, %v3890
      %v3932 = vadd.f32 %v3678, %v3892
      %v3933 = vadd.f32 %v3679, %v3895
      %v3934 = vadd.f32 %v3680, %v3897
      %v3935 = vld [vmem:[#allocation2 + $0x2b] sm:$0xff]
      %v3936 = vld [vmem:[#allocation2 + $0x33] sm:$0xff]
      %v3937 = vld [vmem:[#allocation2 + $0x3b] sm:$0xff]
      %v3938 = vld [vmem:[#allocation2 + $0x43] sm:$0xff]
      %v3939 = vld [vmem:[#allocation2 + $0x4b] sm:$0xff]
      %v3940 = vld [vmem:[#allocation2 + $0x53] sm:$0xff]
      %v3941 = vld [vmem:[#allocation2 + $0x5b] sm:$0xff]
      %v3942 = vld [vmem:[#allocation2 + $0x63] sm:$0xff]
      %v3943 = vld [vmem:[#allocation2 + $0x6b] sm:$0xff]
      %v3944 = vld [vmem:[#allocation2 + $0x73] sm:$0xff]
      %v3945 = vld [vmem:[#allocation2 + $0x7b] sm:$0xff]
      %v3946 = vld [vmem:[#allocation2 + $0x83] sm:$0xff]
      %v3947 = vld [vmem:[#allocation2 + $0x8b] sm:$0xff]
      %v3948 = vld [vmem:[#allocation2 + $0x93] sm:$0xff]
      %v3949 = vld [vmem:[#allocation2 + $0x9b] sm:$0xff]
      %v3950 = vld [vmem:[#allocation2 + $0xa3] sm:$0xff]
      %v3951 = vld [vmem:[#allocation2 + $0xab] sm:$0xff]
      %v3952 = vld [vmem:[#allocation2 + $0xb3] sm:$0xff]
      %v3953 = vld [vmem:[#allocation2 + $0xbb] sm:$0xff]
      %v3954 = vld [vmem:[#allocation2 + $0xc3] sm:$0xff]
      %v3955 = vld [vmem:[#allocation2 + $0xcb] sm:$0xff]
      %v3956 = vld [vmem:[#allocation2 + $0xd3] sm:$0xff]
      %v3957 = vld [vmem:[#allocation2 + $0xdb] sm:$0xff]
      %v3958 = vld [vmem:[#allocation2 + $0xe3] sm:$0xff]
      %v3959 = vld [vmem:[#allocation2 + $0xeb] sm:$0xff]
      %v3960 = vld [vmem:[#allocation2 + $0xf3] sm:$0xff]
      %v3961 = vld [vmem:[#allocation2 + $0xfb] sm:$0xff]
      %v3962 = vld [vmem:[#allocation2 + $0x103] sm:$0xff]
      %v3963 = vld [vmem:[#allocation2 + $0x10b] sm:$0xff]
      %v3964 = vld [vmem:[#allocation2 + $0x113] sm:$0xff]
      %v3965 = vld [vmem:[#allocation2 + $0x11b] sm:$0xff]
      %v3966 = vld [vmem:[#allocation2 + $0x123] sm:$0xff]
      %v3967 = vld [vmem:[#allocation2 + $0x12b] sm:$0xff]
      %v3968 = vld [vmem:[#allocation2 + $0x133] sm:$0xff]
      %v3969 = vld [vmem:[#allocation2 + $0x13b] sm:$0xff]
      %v3970 = vld [vmem:[#allocation2 + $0x143] sm:$0xff]
      %v3971 = vpack.c.bf16 %v3936, %v3935
      %v3972 = vpack.c.bf16 %v3938, %v3937
      %v3973 = vpack.c.bf16 %v3940, %v3939
      %v3974 = vpack.c.bf16 %v3942, %v3941
      %v3975 = vpack.c.bf16 %v3944, %v3943
      %v3976 = vpack.c.bf16 %v3946, %v3945
      %v3977 = vpack.c.bf16 %v3948, %v3947
      %v3978 = vpack.c.bf16 %v3950, %v3949
      %v3979 = vpack.c.bf16 %v3952, %v3951
      %v3980 = vpack.c.bf16 %v3954, %v3953
      %v3981 = vpack.c.bf16 %v3956, %v3955
      %v3982 = vpack.c.bf16 %v3958, %v3957
      %v3983 = vpack.c.bf16 %v3960, %v3959
      %v3984 = vpack.c.bf16 %v3962, %v3961
      %v3985 = vpack.c.bf16 %v3964, %v3963
      %v3986 = vpack.c.bf16 %v3966, %v3965
      %v3987 = vpack.c.bf16 %v3968, %v3967
      %v3988 = vpack.c.bf16 %v3970, %v3969
      %s3989 = scalar_lea.vmem %s3, 512
      %v3990 = vld [vmem:[%s3989] sm:$0xf]
      %v3991 = vld [vmem:[%s3989 + $0x4] sm:$0xf]
      %v3992 = vld [vmem:[%s3989 + $0x8] sm:$0xf]
      %v3993 = vld [vmem:[%s3989 + $0xc] sm:$0xf]
      %v3994 = vld [vmem:[%s3989 + $0x10] sm:$0xf]
      %v3995 = vld [vmem:[%s3989 + $0x14] sm:$0xf]
      %v3996 = vld [vmem:[%s3989 + $0x18] sm:$0xf]
      %v3997 = vld [vmem:[%s3989 + $0x1c] sm:$0xf]
      %v3998 = vld [vmem:[%s3989 + $0x20] sm:$0xf]
      %v3999 = vld [vmem:[%s3989 + $0x24] sm:$0xf]
      %v4000 = vld [vmem:[%s3989 + $0x28] sm:$0xf]
      %v4001 = vld [vmem:[%s3989 + $0x2c] sm:$0xf]
      %v4002 = vld [vmem:[%s3989 + $0x30] sm:$0xf]
      %v4003 = vld [vmem:[%s3989 + $0x34] sm:$0xf]
      %v4004 = vld [vmem:[%s3989 + $0x38] sm:$0xf]
      %v4005 = vld [vmem:[%s3989 + $0x3c] sm:$0xf]
      %v4022 = vunpack.c.l.b16 %v3990
      %v4023 = vunpack.c.l.b16 %v3991
      %v4024 = vunpack.c.l.b16 %v3992
      %v4025 = vunpack.c.l.b16 %v3993
      %v4026 = vunpack.c.l.b16 %v3994
      %v4027 = vunpack.c.l.b16 %v3995
      %v4028 = vunpack.c.l.b16 %v3996
      %v4029 = vunpack.c.l.b16 %v3997
      %v4030 = vunpack.c.l.b16 %v3998
      %v4031 = vunpack.c.l.b16 %v3999
      %v4032 = vunpack.c.l.b16 %v4000
      %v4033 = vunpack.c.l.b16 %v4001
      %v4034 = vunpack.c.l.b16 %v4002
      %v4035 = vunpack.c.l.b16 %v4003
      %v4036 = vunpack.c.l.b16 %v4004
      %v4037 = vunpack.c.l.b16 %v4005
      %v4038 = vpack.c.b16 %v4023, %v4022
      %v4039 = vpack.c.b16 %v4025, %v4024
      %v4040 = vpack.c.b16 %v4027, %v4026
      %v4041 = vpack.c.b16 %v4029, %v4028
      %v4042 = vpack.c.b16 %v4031, %v4030
      %v4043 = vpack.c.b16 %v4033, %v4032
      %v4044 = vpack.c.b16 %v4035, %v4034
      %v4045 = vpack.c.b16 %v4037, %v4036
      %4054 = vmatpush.bf16.msra.mxu0 %v4045
      %4055 = vmatpush.bf16.msra.mxu0 %v4044
      %4056 = vmatpush.bf16.msra.mxu0 %v4043
      %4057 = vmatpush.bf16.msra.mxu0 %v4042
      %4058 = vmatpush.bf16.msra.mxu0 %v4041
      %4059 = vmatpush.bf16.msra.mxu0 %v4040
      %4060 = vmatpush.bf16.msra.mxu0 %v4039
      %4061 = vmatpush.bf16.msra.mxu0 %v4038
      %4062 = vmatmul.bf16.gmra.mxu0 %v3971
      %v4063 = vpop.f32.mrf.mxu0
      %v4064 = vadd.f32 0.0, %v4063
      %v4065 = vpop.f32.mrf.mxu0
      %v4066 = vadd.f32 0.0, %v4065
      %4067 = vmatmul.bf16.gmra.mxu0 %v3972
      %v4068 = vpop.f32.mrf.mxu0
      %v4069 = vadd.f32 0.0, %v4068
      %v4070 = vpop.f32.mrf.mxu0
      %v4071 = vadd.f32 0.0, %v4070
      %4072 = vmatmul.bf16.gmra.mxu0 %v3973
      %v4073 = vpop.f32.mrf.mxu0
      %v4074 = vadd.f32 0.0, %v4073
      %v4075 = vpop.f32.mrf.mxu0
      %v4076 = vadd.f32 0.0, %v4075
      %4077 = vmatmul.bf16.gmra.mxu0 %v3974
      %v4078 = vpop.f32.mrf.mxu0
      %v4079 = vadd.f32 0.0, %v4078
      %v4080 = vpop.f32.mrf.mxu0
      %v4081 = vadd.f32 0.0, %v4080
      %4082 = vmatmul.bf16.gmra.mxu0 %v3975
      %v4083 = vpop.f32.mrf.mxu0
      %v4084 = vadd.f32 0.0, %v4083
      %v4085 = vpop.f32.mrf.mxu0
      %v4086 = vadd.f32 0.0, %v4085
      %4087 = vmatmul.bf16.gmra.mxu0 %v3976
      %v4088 = vpop.f32.mrf.mxu0
      %v4089 = vadd.f32 0.0, %v4088
      %v4090 = vpop.f32.mrf.mxu0
      %v4091 = vadd.f32 0.0, %v4090
      %4092 = vmatmul.bf16.gmra.mxu0 %v3977
      %v4093 = vpop.f32.mrf.mxu0
      %v4094 = vadd.f32 0.0, %v4093
      %v4095 = vpop.f32.mrf.mxu0
      %v4096 = vadd.f32 0.0, %v4095
      %4097 = vmatmul.bf16.gmra.mxu0 %v3978
      %v4098 = vpop.f32.mrf.mxu0
      %v4099 = vadd.f32 0.0, %v4098
      %v4100 = vpop.f32.mrf.mxu0
      %v4101 = vadd.f32 0.0, %v4100
      %4102 = vmatmul.bf16.gmra.mxu0 %v3979
      %v4103 = vpop.f32.mrf.mxu0
      %v4104 = vadd.f32 0.0, %v4103
      %v4105 = vpop.f32.mrf.mxu0
      %v4106 = vadd.f32 0.0, %v4105
      %4107 = vmatmul.bf16.gmra.mxu0 %v3980
      %v4108 = vpop.f32.mrf.mxu0
      %v4109 = vadd.f32 0.0, %v4108
      %v4110 = vpop.f32.mrf.mxu0
      %v4111 = vadd.f32 0.0, %v4110
      %4112 = vmatmul.bf16.gmra.mxu0 %v3981
      %v4113 = vpop.f32.mrf.mxu0
      %v4114 = vadd.f32 0.0, %v4113
      %v4115 = vpop.f32.mrf.mxu0
      %v4116 = vadd.f32 0.0, %v4115
      %4117 = vmatmul.bf16.gmra.mxu0 %v3982
      %v4118 = vpop.f32.mrf.mxu0
      %v4119 = vadd.f32 0.0, %v4118
      %v4120 = vpop.f32.mrf.mxu0
      %v4121 = vadd.f32 0.0, %v4120
      %4122 = vmatmul.bf16.gmra.mxu0 %v3983
      %v4123 = vpop.f32.mrf.mxu0
      %v4124 = vadd.f32 0.0, %v4123
      %v4125 = vpop.f32.mrf.mxu0
      %v4126 = vadd.f32 0.0, %v4125
      %4127 = vmatmul.bf16.gmra.mxu0 %v3984
      %v4128 = vpop.f32.mrf.mxu0
      %v4129 = vadd.f32 0.0, %v4128
      %v4130 = vpop.f32.mrf.mxu0
      %v4131 = vadd.f32 0.0, %v4130
      %4132 = vmatmul.bf16.gmra.mxu0 %v3985
      %v4133 = vpop.f32.mrf.mxu0
      %v4134 = vadd.f32 0.0, %v4133
      %v4135 = vpop.f32.mrf.mxu0
      %v4136 = vadd.f32 0.0, %v4135
      %4137 = vmatmul.bf16.gmra.mxu0 %v3986
      %v4138 = vpop.f32.mrf.mxu0
      %v4139 = vadd.f32 0.0, %v4138
      %v4140 = vpop.f32.mrf.mxu0
      %v4141 = vadd.f32 0.0, %v4140
      %4142 = vmatmul.bf16.gmra.mxu0 %v3987
      %v4143 = vpop.f32.mrf.mxu0
      %v4144 = vadd.f32 0.0, %v4143
      %v4145 = vpop.f32.mrf.mxu0
      %v4146 = vadd.f32 0.0, %v4145
      %4147 = vmatmul.bf16.gmra.mxu0 %v3988
      %v4148 = vpop.f32.mrf.mxu0
      %v4149 = vadd.f32 0.0, %v4148
      %v4150 = vpop.f32.mrf.mxu0
      %v4151 = vadd.f32 0.0, %v4150
      %4152 = vdwg.mxu0
      %v4153 = vadd.f32 %v3899, %v4064
      %v4154 = vadd.f32 %v3900, %v4066
      %v4155 = vadd.f32 %v3901, %v4069
      %v4156 = vadd.f32 %v3902, %v4071
      %v4157 = vadd.f32 %v3903, %v4074
      %v4158 = vadd.f32 %v3904, %v4076
      %v4159 = vadd.f32 %v3905, %v4079
      %v4160 = vadd.f32 %v3906, %v4081
      %v4161 = vadd.f32 %v3907, %v4084
      %v4162 = vadd.f32 %v3908, %v4086
      %v4163 = vadd.f32 %v3909, %v4089
      %v4164 = vadd.f32 %v3910, %v4091
      %v4165 = vadd.f32 %v3911, %v4094
      %v4166 = vadd.f32 %v3912, %v4096
      %v4167 = vadd.f32 %v3913, %v4099
      %v4168 = vadd.f32 %v3914, %v4101
      %v4169 = vadd.f32 %v3915, %v4104
      %v4170 = vadd.f32 %v3916, %v4106
      %v4171 = vadd.f32 %v3917, %v4109
      %v4172 = vadd.f32 %v3918, %v4111
      %v4173 = vadd.f32 %v3919, %v4114
      %v4174 = vadd.f32 %v3920, %v4116
      %v4175 = vadd.f32 %v3921, %v4119
      %v4176 = vadd.f32 %v3922, %v4121
      %v4177 = vadd.f32 %v3923, %v4124
      %v4178 = vadd.f32 %v3924, %v4126
      %v4179 = vadd.f32 %v3925, %v4129
      %v4180 = vadd.f32 %v3926, %v4131
      %v4181 = vadd.f32 %v3927, %v4134
      %v4182 = vadd.f32 %v3928, %v4136
      %v4183 = vadd.f32 %v3929, %v4139
      %v4184 = vadd.f32 %v3930, %v4141
      %v4185 = vadd.f32 %v3931, %v4144
      %v4186 = vadd.f32 %v3932, %v4146
      %v4187 = vadd.f32 %v3933, %v4149
      %v4188 = vadd.f32 %v3934, %v4151
      %v4189 = vlaneseq
      %v4190 = vand.u32 %v4189, 127
      %v4191 = vadd.s32 %v4190, 128
      %v4192 = vadd.s32 %v4190, 256
      %vm4193 = vcmp.lt.s32.totalorder %v4190, 0
      %v4194 = vsub.s32 0, %v4190
      %v4195 = vsel %vm4193, %v4194, %v4190
      %v4196 = vand.u32 %v4195, 65535
      %v4197 = vshrl.u32 %v4195, 16
      %v4199 = vmul.u32 %v4196, 14564
      %v4200 = vmul.u32 %v4196, 58254
      %v4201 = vmul.u32 %v4197, 14564
      %v4202 = vmul.u32 %v4197, 58254
      %v4203 = vshll.u32 %v4200, 16
      %v4204 = vshrl.u32 %v4200, 16
      %v4205 = vshll.u32 %v4201, 16
      %v4206 = vshrl.u32 %v4201, 16
      %vm4207 = vc.u32 %v4199, %v4203
      %v4208 = vsel %vm4207, 1, 0
      %v4209 = vadd.s32 %v4199, %v4203
      %v4210 = vadd.s32 %v4202, %v4208
      %vm4211 = vc.u32 %v4209, %v4205
      %v4212 = vsel %vm4211, 1, 0
      %v4213 = vadd.s32 %v4209, %v4205
      %v4214 = vadd.s32 %v4210, %v4212
      %v4215 = vadd.s32 %v4214, %v4204
      %v4216 = vadd.s32 %v4215, %v4206
      %v4217 = vshrl.u32 %v4216, 4
      %v4218 = vmul.u32 %v4217, 18
      %v4219 = vsub.s32 %v4195, %v4218
      %v4220 = vsub.s32 0, %v4219
      %v4221 = vsel %vm4193, %v4220, %v4219
      %vm4222 = vcmp.lt.s32.totalorder %v4191, 0
      %v4223 = vsub.s32 0, %v4191
      %v4224 = vsel %vm4222, %v4223, %v4191
      %v4225 = vand.u32 %v4224, 65535
      %v4226 = vshrl.u32 %v4224, 16
      %v4228 = vmul.u32 %v4225, 14564
      %v4229 = vmul.u32 %v4225, 58254
      %v4230 = vmul.u32 %v4226, 14564
      %v4231 = vmul.u32 %v4226, 58254
      %v4232 = vshll.u32 %v4229, 16
      %v4233 = vshrl.u32 %v4229, 16
      %v4234 = vshll.u32 %v4230, 16
      %v4235 = vshrl.u32 %v4230, 16
      %vm4236 = vc.u32 %v4228, %v4232
      %v4237 = vsel %vm4236, 1, 0
      %v4238 = vadd.s32 %v4228, %v4232
      %v4239 = vadd.s32 %v4231, %v4237
      %vm4240 = vc.u32 %v4238, %v4234
      %v4241 = vsel %vm4240, 1, 0
      %v4242 = vadd.s32 %v4238, %v4234
      %v4243 = vadd.s32 %v4239, %v4241
      %v4244 = vadd.s32 %v4243, %v4233
      %v4245 = vadd.s32 %v4244, %v4235
      %v4246 = vshrl.u32 %v4245, 4
      %v4247 = vmul.u32 %v4246, 18
      %v4248 = vsub.s32 %v4224, %v4247
      %v4249 = vsub.s32 0, %v4248
      %v4250 = vsel %vm4222, %v4249, %v4248
      %vm4251 = vcmp.lt.s32.totalorder %v4192, 0
      %v4252 = vsub.s32 0, %v4192
      %v4253 = vsel %vm4251, %v4252, %v4192
      %v4254 = vand.u32 %v4253, 65535
      %v4255 = vshrl.u32 %v4253, 16
      %v4257 = vmul.u32 %v4254, 14564
      %v4258 = vmul.u32 %v4254, 58254
      %v4259 = vmul.u32 %v4255, 14564
      %v4260 = vmul.u32 %v4255, 58254
      %v4261 = vshll.u32 %v4258, 16
      %v4262 = vshrl.u32 %v4258, 16
      %v4263 = vshll.u32 %v4259, 16
      %v4264 = vshrl.u32 %v4259, 16
      %vm4265 = vc.u32 %v4257, %v4261
      %v4266 = vsel %vm4265, 1, 0
      %v4267 = vadd.s32 %v4257, %v4261
      %v4268 = vadd.s32 %v4260, %v4266
      %vm4269 = vc.u32 %v4267, %v4263
      %v4270 = vsel %vm4269, 1, 0
      %v4271 = vadd.s32 %v4267, %v4263
      %v4272 = vadd.s32 %v4268, %v4270
      %v4273 = vadd.s32 %v4272, %v4262
      %v4274 = vadd.s32 %v4273, %v4264
      %v4275 = vshrl.u32 %v4274, 4
      %v4276 = vmul.u32 %v4275, 18
      %v4277 = vsub.s32 %v4253, %v4276
      %v4278 = vsub.s32 0, %v4277
      %v4279 = vsel %vm4251, %v4278, %v4277
      %vm4280 = vcmp.ne.s32.totalorder %v4221, 0
      %vm4281 = vcmp.ne.s32.totalorder %v4250, 0
      %vm4282 = vcmp.ne.s32.totalorder %v4279, 0
      %vm4283 = vcmp.lt.s32.totalorder %v4221, 0
      %vm4284 = vcmp.lt.s32.totalorder %v4250, 0
      %vm4285 = vcmp.lt.s32.totalorder %v4279, 0
      %vm4286 = vmand %vm4283, %vm4280
      %vm4287 = vmand %vm4284, %vm4281
      %vm4288 = vmand %vm4285, %vm4282
      %v4289 = vadd.s32 %v4221, 18
      %v4290 = vadd.s32 %v4250, 18
      %v4291 = vadd.s32 %v4279, 18
      %v4292 = vsel %vm4286, %v4289, %v4221
      %v4293 = vsel %vm4287, %v4290, %v4250
      %v4294 = vsel %vm4288, %v4291, %v4279
      %vm4295 = vcmp.lt.s32.totalorder %v4292, 16
      %vm4296 = vcmp.lt.s32.totalorder %v4293, 16
      %vm4297 = vcmp.lt.s32.totalorder %v4294, 16
      %v4298 = vsel %vm4295, 1, 0
      %v4299 = vsel %vm4296, 1, 0
      %v4300 = vsel %vm4297, 1, 0
      %v4301 = vcvt.s32.f32 %v4298
      %v4302 = vcvt.s32.f32 %v4299
      %v4303 = vcvt.s32.f32 %v4300
      %vm4304 = vcmask 261120
      %v4306 = vsel %vm4304, %v4303, 0
      %4308 = vmatpush.msra.mxu0 %v4168
      %4309 = vmatpush.msra.mxu0 %v4167
      %4310 = vmatpush.msra.mxu0 %v4166
      %4311 = vmatpush.msra.mxu0 %v4165
      %4312 = vmatpush.msra.mxu0 %v4164
      %4313 = vmatpush.msra.mxu0 %v4163
      %4314 = vmatpush.msra.mxu0 %v4162
      %4315 = vmatpush.msra.mxu0 %v4161
      %4316 = vmatpush.msra.mxu0 %v4160
      %4317 = vmatpush.msra.mxu0 %v4159
      %4318 = vmatpush.msra.mxu0 %v4158
      %4319 = vmatpush.msra.mxu0 %v4157
      %4320 = vmatpush.msra.mxu0 %v4156
      %4321 = vmatpush.msra.mxu0 %v4155
      %4322 = vmatpush.msra.mxu0 %v4154
      %4323 = vmatpush.msra.mxu0 %v4153
      %4324 = vmatmul.f32.gmra.mxu0 %v4301
      %v4325 = vpop.f32.mrf.mxu0
      %v4326 = vadd.f32 0.0, %v4325
      %4327 = vdwg.mxu0
      %4328 = vmatpush.msra.mxu0 %v4184
      %4329 = vmatpush.msra.mxu0 %v4183
      %4330 = vmatpush.msra.mxu0 %v4182
      %4331 = vmatpush.msra.mxu0 %v4181
      %4332 = vmatpush.msra.mxu0 %v4180
      %4333 = vmatpush.msra.mxu0 %v4179
      %4334 = vmatpush.msra.mxu0 %v4178
      %4335 = vmatpush.msra.mxu0 %v4177
      %4336 = vmatpush.msra.mxu0 %v4176
      %4337 = vmatpush.msra.mxu0 %v4175
      %4338 = vmatpush.msra.mxu0 %v4174
      %4339 = vmatpush.msra.mxu0 %v4173
      %4340 = vmatpush.msra.mxu0 %v4172
      %4341 = vmatpush.msra.mxu0 %v4171
      %4342 = vmatpush.msra.mxu0 %v4170
      %4343 = vmatpush.msra.mxu0 %v4169
      %4344 = vmatmul.f32.gmra.mxu0 %v4302
      %v4345 = vpop.f32.mrf.mxu0
      %v4346 = vadd.f32 %v4326, %v4345
      %4347 = vdwg.mxu0
      %4348 = vmatpush.msra.mxu0 0.0
      %4349 = vmatpush.msra.mxu0 0.0
      %4350 = vmatpush.msra.mxu0 0.0
      %4351 = vmatpush.msra.mxu0 0.0
      %4352 = vmatpush.msra.mxu0 0.0
      %4353 = vmatpush.msra.mxu0 0.0
      %4354 = vmatpush.msra.mxu0 0.0
      %4355 = vmatpush.msra.mxu0 0.0
      %4356 = vmatpush.msra.mxu0 0.0
      %4357 = vmatpush.msra.mxu0 0.0
      %4358 = vmatpush.msra.mxu0 0.0
      %4359 = vmatpush.msra.mxu0 0.0
      %4360 = vmatpush.msra.mxu0 %v4188
      %4361 = vmatpush.msra.mxu0 %v4187
      %4362 = vmatpush.msra.mxu0 %v4186
      %4363 = vmatpush.msra.mxu0 %v4185
      %4364 = vmatmul.f32.gmra.mxu0 %v4306
      %v4365 = vpop.f32.mrf.mxu0
      %v4366 = vadd.f32 %v4346, %v4365
      %4367 = vdwg.mxu0
      %v4368 = vmul.f32 %v4153, %v4153
      %v4369 = vmul.f32 %v4154, %v4154
      %v4370 = vmul.f32 %v4155, %v4155
      %v4371 = vmul.f32 %v4156, %v4156
      %v4372 = vmul.f32 %v4157, %v4157
      %v4373 = vmul.f32 %v4158, %v4158
      %v4374 = vmul.f32 %v4159, %v4159
      %v4375 = vmul.f32 %v4160, %v4160
      %v4376 = vmul.f32 %v4161, %v4161
      %v4377 = vmul.f32 %v4162, %v4162
      %v4378 = vmul.f32 %v4163, %v4163
      %v4379 = vmul.f32 %v4164, %v4164
      %v4380 = vmul.f32 %v4165, %v4165
      %v4381 = vmul.f32 %v4166, %v4166
      %v4382 = vmul.f32 %v4167, %v4167
      %v4383 = vmul.f32 %v4168, %v4168
      %v4384 = vmul.f32 %v4169, %v4169
      %v4385 = vmul.f32 %v4170, %v4170
      %v4386 = vmul.f32 %v4171, %v4171
      %v4387 = vmul.f32 %v4172, %v4172
      %v4388 = vmul.f32 %v4173, %v4173
      %v4389 = vmul.f32 %v4174, %v4174
      %v4390 = vmul.f32 %v4175, %v4175
      %v4391 = vmul.f32 %v4176, %v4176
      %v4392 = vmul.f32 %v4177, %v4177
      %v4393 = vmul.f32 %v4178, %v4178
      %v4394 = vmul.f32 %v4179, %v4179
      %v4395 = vmul.f32 %v4180, %v4180
      %v4396 = vmul.f32 %v4181, %v4181
      %v4397 = vmul.f32 %v4182, %v4182
      %v4398 = vmul.f32 %v4183, %v4183
      %v4399 = vmul.f32 %v4184, %v4184
      %v4400 = vmul.f32 %v4185, %v4185
      %v4401 = vmul.f32 %v4186, %v4186
      %v4402 = vmul.f32 %v4187, %v4187
      %v4403 = vmul.f32 %v4188, %v4188
      %4404 = vmatpush.msra.mxu0 %v4383
      %4405 = vmatpush.msra.mxu0 %v4382
      %4406 = vmatpush.msra.mxu0 %v4381
      %4407 = vmatpush.msra.mxu0 %v4380
      %4408 = vmatpush.msra.mxu0 %v4379
      %4409 = vmatpush.msra.mxu0 %v4378
      %4410 = vmatpush.msra.mxu0 %v4377
      %4411 = vmatpush.msra.mxu0 %v4376
      %4412 = vmatpush.msra.mxu0 %v4375
      %4413 = vmatpush.msra.mxu0 %v4374
      %4414 = vmatpush.msra.mxu0 %v4373
      %4415 = vmatpush.msra.mxu0 %v4372
      %4416 = vmatpush.msra.mxu0 %v4371
      %4417 = vmatpush.msra.mxu0 %v4370
      %4418 = vmatpush.msra.mxu0 %v4369
      %4419 = vmatpush.msra.mxu0 %v4368
      %4420 = vmatmul.f32.gmra.mxu0 %v4301
      %v4421 = vpop.f32.mrf.mxu0
      %v4422 = vadd.f32 0.0, %v4421
      %4423 = vdwg.mxu0
      %4424 = vmatpush.msra.mxu0 %v4399
      %4425 = vmatpush.msra.mxu0 %v4398
      %4426 = vmatpush.msra.mxu0 %v4397
      %4427 = vmatpush.msra.mxu0 %v4396
      %4428 = vmatpush.msra.mxu0 %v4395
      %4429 = vmatpush.msra.mxu0 %v4394
      %4430 = vmatpush.msra.mxu0 %v4393
      %4431 = vmatpush.msra.mxu0 %v4392
      %4432 = vmatpush.msra.mxu0 %v4391
      %4433 = vmatpush.msra.mxu0 %v4390
      %4434 = vmatpush.msra.mxu0 %v4389
      %4435 = vmatpush.msra.mxu0 %v4388
      %4436 = vmatpush.msra.mxu0 %v4387
      %4437 = vmatpush.msra.mxu0 %v4386
      %4438 = vmatpush.msra.mxu0 %v4385
      %4439 = vmatpush.msra.mxu0 %v4384
      %4440 = vmatmul.f32.gmra.mxu0 %v4302
      %v4441 = vpop.f32.mrf.mxu0
      %v4442 = vadd.f32 %v4422, %v4441
      %4443 = vdwg.mxu0
      %4444 = vmatpush.msra.mxu0 0.0
      %4445 = vmatpush.msra.mxu0 0.0
      %4446 = vmatpush.msra.mxu0 0.0
      %4447 = vmatpush.msra.mxu0 0.0
      %4448 = vmatpush.msra.mxu0 0.0
      %4449 = vmatpush.msra.mxu0 0.0
      %4450 = vmatpush.msra.mxu0 0.0
      %4451 = vmatpush.msra.mxu0 0.0
      %4452 = vmatpush.msra.mxu0 0.0
      %4453 = vmatpush.msra.mxu0 0.0
      %4454 = vmatpush.msra.mxu0 0.0
      %4455 = vmatpush.msra.mxu0 0.0
      %4456 = vmatpush.msra.mxu0 %v4403
      %4457 = vmatpush.msra.mxu0 %v4402
      %4458 = vmatpush.msra.mxu0 %v4401
      %4459 = vmatpush.msra.mxu0 %v4400
      %4460 = vmatmul.f32.gmra.mxu0 %v4306
      %v4461 = vpop.f32.mrf.mxu0
      %v4462 = vadd.f32 %v4442, %v4461
      %4463 = vdwg.mxu0
      %4464 = vst [vmem:[%s265] sm:$0x1] %v4366
      %4465 = vst [vmem:[%s268] sm:$0x1] %v4462
      %v4466 = vpack.c.bf16 %v4153, %v4153
      %v4467 = vpack.c.bf16 %v4154, %v4154
      %v4468 = vpack.c.bf16 %v4155, %v4155
      %v4469 = vpack.c.bf16 %v4156, %v4156
      %v4470 = vpack.c.bf16 %v4157, %v4157
      %v4471 = vpack.c.bf16 %v4158, %v4158
      %v4472 = vpack.c.bf16 %v4159, %v4159
      %v4473 = vpack.c.bf16 %v4160, %v4160
      %v4474 = vpack.c.bf16 %v4161, %v4161
      %v4475 = vpack.c.bf16 %v4162, %v4162
      %v4476 = vpack.c.bf16 %v4163, %v4163
      %v4477 = vpack.c.bf16 %v4164, %v4164
      %v4478 = vpack.c.bf16 %v4165, %v4165
      %v4479 = vpack.c.bf16 %v4166, %v4166
      %v4480 = vpack.c.bf16 %v4167, %v4167
      %v4481 = vpack.c.bf16 %v4168, %v4168
      %v4482 = vpack.c.bf16 %v4169, %v4169
      %v4483 = vpack.c.bf16 %v4170, %v4170
      %v4484 = vpack.c.bf16 %v4171, %v4171
      %v4485 = vpack.c.bf16 %v4172, %v4172
      %v4486 = vpack.c.bf16 %v4173, %v4173
      %v4487 = vpack.c.bf16 %v4174, %v4174
      %v4488 = vpack.c.bf16 %v4175, %v4175
      %v4489 = vpack.c.bf16 %v4176, %v4176
      %v4490 = vpack.c.bf16 %v4177, %v4177
      %v4491 = vpack.c.bf16 %v4178, %v4178
      %v4492 = vpack.c.bf16 %v4179, %v4179
      %v4493 = vpack.c.bf16 %v4180, %v4180
      %v4494 = vpack.c.bf16 %v4181, %v4181
      %v4495 = vpack.c.bf16 %v4182, %v4182
      %v4496 = vpack.c.bf16 %v4183, %v4183
      %v4497 = vpack.c.bf16 %v4184, %v4184
      %v4498 = vpack.c.bf16 %v4185, %v4185
      %v4499 = vpack.c.bf16 %v4186, %v4186
      %v4500 = vpack.c.bf16 %v4187, %v4187
      %v4501 = vpack.c.bf16 %v4188, %v4188
      %4502 = vst [vmem:[%s262] sm:$0xf] %v4466
      %4503 = vst [vmem:[%s262 + $0x4] sm:$0xf] %v4467
      %4504 = vst [vmem:[%s262 + $0x8] sm:$0xf] %v4468
      %4505 = vst [vmem:[%s262 + $0xc] sm:$0xf] %v4469
      %4506 = vst [vmem:[%s262 + $0x10] sm:$0xf] %v4470
      %4507 = vst [vmem:[%s262 + $0x14] sm:$0xf] %v4471
      %4508 = vst [vmem:[%s262 + $0x18] sm:$0xf] %v4472
      %4509 = vst [vmem:[%s262 + $0x1c] sm:$0xf] %v4473
      %4510 = vst [vmem:[%s262 + $0x20] sm:$0xf] %v4474
      %4511 = vst [vmem:[%s262 + $0x24] sm:$0xf] %v4475
      %4512 = vst [vmem:[%s262 + $0x28] sm:$0xf] %v4476
      %4513 = vst [vmem:[%s262 + $0x2c] sm:$0xf] %v4477
      %4514 = vst [vmem:[%s262 + $0x30] sm:$0xf] %v4478
      %4515 = vst [vmem:[%s262 + $0x34] sm:$0xf] %v4479
      %4516 = vst [vmem:[%s262 + $0x38] sm:$0xf] %v4480
      %4517 = vst [vmem:[%s262 + $0x3c] sm:$0xf] %v4481
      %4518 = vst [vmem:[%s262 + $0x40] sm:$0xf] %v4482
      %4519 = vst [vmem:[%s262 + $0x44] sm:$0xf] %v4483
      %4520 = vst [vmem:[%s262 + $0x48] sm:$0xf] %v4484
      %4521 = vst [vmem:[%s262 + $0x4c] sm:$0xf] %v4485
      %4522 = vst [vmem:[%s262 + $0x50] sm:$0xf] %v4486
      %4523 = vst [vmem:[%s262 + $0x54] sm:$0xf] %v4487
      %4524 = vst [vmem:[%s262 + $0x58] sm:$0xf] %v4488
      %4525 = vst [vmem:[%s262 + $0x5c] sm:$0xf] %v4489
      %4526 = vst [vmem:[%s262 + $0x60] sm:$0xf] %v4490
      %4527 = vst [vmem:[%s262 + $0x64] sm:$0xf] %v4491
      %4528 = vst [vmem:[%s262 + $0x68] sm:$0xf] %v4492
      %4529 = vst [vmem:[%s262 + $0x6c] sm:$0xf] %v4493
      %4530 = vst [vmem:[%s262 + $0x70] sm:$0xf] %v4494
      %4531 = vst [vmem:[%s262 + $0x74] sm:$0xf] %v4495
      %4532 = vst [vmem:[%s262 + $0x78] sm:$0xf] %v4496
      %4533 = vst [vmem:[%s262 + $0x7c] sm:$0xf] %v4497
      %4534 = vst [vmem:[%s262 + $0x80] sm:$0xf] %v4498
      %4535 = vst [vmem:[%s262 + $0x84] sm:$0xf] %v4499
      %4536 = vst [vmem:[%s262 + $0x88] sm:$0xf] %v4500
      %4537 = vst [vmem:[%s262 + $0x8c] sm:$0xf] %v4501
      %p4538 = scmp.lt.s32.totalorder %s18, 1
      %s4539 = scalar_select %p4538, %s18, 1
      %s4540 = smul.addr %s4539, 36
      %s4541 = smul.addr %s4540, 4
      %s4542 = scalar_lea.vmem %s4, %s4541
      %p4543 = scmp.lt.s32.totalorder %s18, 1
      %s4544 = scalar_select %p4543, %s18, 1
      %s4545 = scalar_lea.vmem %s5, %s4544
      %p4546 = scmp.lt.s32.totalorder %s18, 1
      %s4547 = scalar_select %p4546, %s18, 1
      %s4548 = scalar_lea.vmem %s6, %s4547
      // Predicated region
      $region37: #{conv_block_forward.3} parent=35 // pred_check
        %p4549 = pneg %p125
      $region38: #{conv_block_forward.3} parent=35 // pred_check_branch
        %4551 = sbr.rel (%p4549) target = $region40
      $region39: #{conv_block_forward.3} parent=35 // pred_region
        _
      $region40: #{conv_block_forward.3} parent=35 // pred_fallthru
        _
      // Predicated region
      $region41: #{conv_block_forward.3} parent=35 // pred_check
        %p4552 = pneg %p151
      $region42: #{conv_block_forward.3} parent=35 // pred_check_branch
        %4554 = sbr.rel (%p4552) target = $region44
      $region43: #{conv_block_forward.3} parent=35 // pred_region
        _
      $region44: #{conv_block_forward.3} parent=35 // pred_fallthru
        _
      // Predicated region
      $region45: #{conv_block_forward.3} parent=35 // pred_check
        %p4555 = pneg %p177
      $region46: #{conv_block_forward.3} parent=35 // pred_check_branch
        %4557 = sbr.rel (%p4555) target = $region48
      $region47: #{conv_block_forward.3} parent=35 // pred_region
        _
      $region48: #{conv_block_forward.3} parent=35 // pred_fallthru
        _
    $region36: #{conv_block_forward.3} parent=5 // pred_fallthru
      _
    %p4558 = scmp.le.s32.totalorder 2, %s13
    // Predicated region
    $region49: #{conv_block_forward.3} parent=5 // pred_check
      %p4559 = pneg %p4558
    $region50: #{conv_block_forward.3} parent=5 // pred_check_branch
      %4561 = sbr.rel (%p4559) target = $region52
    $region51: #{conv_block_forward.3} parent=5 // pred_region
      %s4562 = ssub.s32 %s13, 2
      // Predicated region
      $region53: #{conv_block_forward.3} parent=51 // pred_check
        %p4563 = pneg %p131
      $region54: #{conv_block_forward.3} parent=51 // pred_check_branch
        %4565 = sbr.rel (%p4563) target = $region56
      $region55: #{conv_block_forward.3} parent=51 // pred_region
        %p4566 = scmp.lt.s32.totalorder %s19, 1
        %s4567 = scalar_select %p4566, %s19, 1
        %s4568 = smul.addr %s4567, 36
        %s4569 = smul.addr %s4568, 4
        %s4570 = scalar_lea.vmem %s4, %s4569
      $region56: #{conv_block_forward.3} parent=51 // pred_fallthru
        _
      // Predicated region
      $region57: #{conv_block_forward.3} parent=51 // pred_check
        %p4571 = pneg %p157
      $region58: #{conv_block_forward.3} parent=51 // pred_check_branch
        %4573 = sbr.rel (%p4571) target = $region60
      $region59: #{conv_block_forward.3} parent=51 // pred_region
        %p4574 = scmp.lt.s32.totalorder %s19, 1
        %s4575 = scalar_select %p4574, %s19, 1
        %s4576 = scalar_lea.vmem %s5, %s4575
      $region60: #{conv_block_forward.3} parent=51 // pred_fallthru
        _
      // Predicated region
      $region61: #{conv_block_forward.3} parent=51 // pred_check
        %p4577 = pneg %p183
      $region62: #{conv_block_forward.3} parent=51 // pred_check_branch
        %4579 = sbr.rel (%p4577) target = $region64
      $region63: #{conv_block_forward.3} parent=51 // pred_region
        %p4580 = scmp.lt.s32.totalorder %s19, 1
        %s4581 = scalar_select %p4580, %s19, 1
        %s4582 = scalar_lea.vmem %s6, %s4581
      $region64: #{conv_block_forward.3} parent=51 // pred_fallthru
        _
    $region52: #{conv_block_forward.3} parent=5 // pred_fallthru
      _
  $region6: #{conv_block_forward.3} parent=0 // loop_footer
    %s17 = sadd.s32 1, %s13
  $region7: #{conv_block_forward.3} parent=0 // loop_footer_branch
    %12 = sbr.rel target = $region3
  $region8: #{conv_block_forward.3} parent=0 // loop_exit
    _

</llo_original>
